<compile_context>
chip_gen: v7x
topology: tpu7x:2x2x1
jax: 0.10.0
libtpu: 0.0.40
codegen_flags: <defaults>
</compile_context>

<pallas_src>
import functools

import jax
import jax.numpy as jnp
from jax import lax
from jax.experimental import pallas as pl
from jax.experimental.pallas import tpu as pltpu


# Finite stand-ins for -inf in the online softmax (avoid -inf - -inf = NaN).
_MASK = -1e38    # masked attention score (phantom h_{-1} / padded tail steps)
_M_INIT = -1e30  # initial running max; _MASK << _M_INIT so exp(_MASK-_M_INIT)=0


def _attn_lstm_kernel(xw_ref, wf_ref, ba1_ref, wa2_ref, wfc_ref, bfc_ref,
                      out_ref,
                      h_sc, c_sc, m_sc, l_sc, acc_sc,
                      *, seq_len, time_block, mask_tail):
    blk_t = pl.program_id(1)          # time-block index (serial / "arbitrary")
    Hp = h_sc.shape[1]

    @pl.when(blk_t == 0)
    def _():
        h_sc[...] = jnp.zeros_like(h_sc)
        c_sc[...] = jnp.zeros_like(c_sc)
        m_sc[...] = jnp.full_like(m_sc, _M_INIT)
        l_sc[...] = jnp.zeros_like(l_sc)
        acc_sc[...] = jnp.zeros_like(acc_sc)

    # Grid-invariant weights: loaded once per grid step, reused by the loop.
    wf = wf_ref[...]                                # (Hp, 5Hp)  [W_hh | W_a1]
    ba1 = ba1_ref[...].astype(jnp.float32)          # (1, Hp)
    wa2 = wa2_ref[...].astype(jnp.float32)          # (1, Hp)
    t0 = blk_t * time_block

    def step(s, carry):
        h, c, m, l, acc = carry
        g = t0 + s                                  # global timestep index

        # ONE fused MXU matmul per step: [gate preact. | attention hidden].
        fused = jnp.dot(h.astype(wf.dtype), wf,
                        preferred_element_type=jnp.float32)       # (B, 5Hp)

        # ---- deferred attention score of the PREVIOUS hidden state (h) ----
        a_hid = jnp.tanh(fused[:, 4 * Hp:] + ba1)
        score = jnp.sum(a_hid * wa2, axis=-1, keepdims=True)      # (B, 1)
        valid_prev = g >= 1                          # exclude phantom h_{-1}=0
        if mask_tail:                                # exclude padded tail h's
            valid_prev = valid_prev & (g <= seq_len - 1)
        score = jnp.where(valid_prev, score, _MASK)
        m_new = jnp.maximum(m, score)
        alpha = jnp.exp(m - m_new)
        p = jnp.exp(score - m_new)
        l = alpha * l + p
        acc = alpha * acc + p * h

        # ---- LSTM cell for timestep g ----
        gates = xw_ref[s].astype(jnp.float32) + fused[:, :4 * Hp]
        i_g = jax.nn.sigmoid(gates[:, 0 * Hp:1 * Hp])
        f_g = jax.nn.sigmoid(gates[:, 1 * Hp:2 * Hp])
        g_g = jnp.tanh(gates[:, 2 * Hp:3 * Hp])
        o_g = jax.nn.sigmoid(gates[:, 3 * Hp:4 * Hp])
        c_new = f_g * c + i_g * g_g
        h_new = o_g * jnp.tanh(c_new)
        if mask_tail:                                # only compiled if T % Tb
            step_valid = g < seq_len
            c_new = jnp.where(step_valid, c_new, c)
            h_new = jnp.where(step_valid, h_new, h)
        return h_new, c_new, m_new, l, acc

    carry0 = (h_sc[...], c_sc[...], m_sc[...], l_sc[...], acc_sc[...])
    h, c, m, l, acc = lax.fori_loop(0, time_block, step, carry0,
                                    unroll=min(8, time_block))
    h_sc[...] = h
    c_sc[...] = c
    m_sc[...] = m
    l_sc[...] = l
    acc_sc[...] = acc

    @pl.when(blk_t == pl.num_programs(1) - 1)
    def _():
        # Epilogue (once per batch block): score of the FINAL hidden state
        # (its scoring was deferred past the loop), softmax normalization and
        # the width-1 fc head as a VPU multiply + lane reduction.
        a_hid = jnp.tanh(
            jnp.dot(h.astype(wf.dtype), wf[:, 4 * Hp:],
                    preferred_element_type=jnp.float32) + ba1)
        score = jnp.sum(a_hid * wa2, axis=-1, keepdims=True)
        m_f = jnp.maximum(m, score)
        alpha_f = jnp.exp(m - m_f)
        p_f = jnp.exp(score - m_f)
        l_f = alpha_f * l + p_f
        ctx = (alpha_f * acc + p_f * h) / l_f                      # (B, Hp)
        wfc = wfc_ref[...].astype(jnp.float32)
        out_ref[...] = (jnp.sum(ctx * wfc, axis=-1, keepdims=True)
                        + bfc_ref[...]).astype(out_ref.dtype)


def _round_up(x, m):
    return (x + m - 1) // m * m


def _vmem_limit_bytes():
    """Generation-aware scoped-VMEM limit (≈3/4 of physical, capped)."""
    try:
        cap = int(pltpu.get_tpu_info().vmem_capacity_bytes)
    except Exception:
        cap = 128 * 1024 * 1024
    return max(32 * 1024 * 1024, min(cap * 3 // 4, 100 * 1024 * 1024))


def attention_lstm_forward(x, params, *, time_block=32, batch_block=None,
                           weight_dtype=jnp.bfloat16, stream_dtype=None):
    """x: (B, T, D) batch-first like the PyTorch module. Returns (B, 1) f32."""
    if stream_dtype is None:
        stream_dtype = weight_dtype
    x = x.astype(jnp.float32)
    B, T, D = x.shape
    H = params["w_hh"].shape[0] // 4
    Hp = _round_up(H, 128)                       # lane-aligned hidden size

    # ---- batch padding / blocking: fill the 8 f32 sublanes; a leading
    #      "parallel" batch-block grid axis lets v7x use both TensorCores.
    if batch_block is None:
        Bb = min(128, _round_up(B, 8))
    else:
        Bb = _round_up(batch_block, 8)
    Bp = _round_up(B, Bb)
    if Bp != B:
        x = jnp.pad(x, ((0, Bp - B), (0, 0), (0, 0)))

    # ---- zero-pad weights so each gate occupies a full lane-aligned Hp chunk
    #      (padded hidden units stay exactly zero through the whole network).
    def pad_gate_rows(w):                        # (4H, K) -> (4Hp, K) gatewise
        k = w.shape[1]
        return jnp.pad(w.reshape(4, H, k),
                       ((0, 0), (0, Hp - H), (0, 0))).reshape(4 * Hp, k)

    def pad_gate_vec(b):                         # (4H,) -> (4Hp,)
        return jnp.pad(b.reshape(4, H), ((0, 0), (0, Hp - H))).reshape(4 * Hp)

    w_ih_t = pad_gate_rows(params["w_ih"]).T                       # (D, 4Hp)
    w_hh_t = jnp.pad(pad_gate_rows(params["w_hh"]),
                     ((0, 0), (0, Hp - H))).T                      # (Hp, 4Hp)
    w_a1_t = jnp.pad(params["w_a1"].T, ((0, Hp - H), (0, Hp - H)))  # (Hp, Hp)
    # Fused recurrent weight [W_hh | W_a1]: one MXU matmul per timestep.
    w_fused = jnp.concatenate([w_hh_t, w_a1_t], axis=1).astype(weight_dtype)

    bias = pad_gate_vec(params["b_ih"] + params["b_hh"]).reshape(1, 4 * Hp)
    b_a1 = jnp.pad(params["b_a1"], (0, Hp - H)).reshape(1, Hp).astype(jnp.float32)
    w_a2 = jnp.pad(params["w_a2"].reshape(-1), (0, Hp - H)).reshape(1, Hp).astype(jnp.float32)
    w_fc = jnp.pad(params["w_fc"].reshape(-1), (0, Hp - H)).reshape(1, Hp).astype(jnp.float32)
    b_fc = params["b_fc"].reshape(1, 1).astype(jnp.float32)
    # b_a2 is dropped: softmax over time is shift-invariant.

    # ---- hoisted input projection: one (T*Bp, D) @ (D, 4Hp) matmul, bias
    #      folded in; streamed to the kernel in stream_dtype (bf16 by default
    #      -> halves the dominant HBM traffic, the main win on v5e).
    x_tm = jnp.transpose(x, (1, 0, 2)).reshape(T * Bp, D)
    xw = jnp.dot(x_tm.astype(weight_dtype), w_ih_t.astype(weight_dtype),
                 preferred_element_type=jnp.float32) + bias
    xw = xw.reshape(T, Bp, 4 * Hp).astype(stream_dtype)

    # ---- size the time block against the per-generation VMEM budget:
    #      2 * (xw slab) + single-buffered weights + scratch must fit.
    vmem_limit = _vmem_limit_bytes()
    wsize = jnp.dtype(weight_dtype).itemsize
    ssize = jnp.dtype(stream_dtype).itemsize
    weight_bytes = Hp * 5 * Hp * wsize + 3 * Hp * 4 + 4
    scratch_bytes = (3 * Bb * Hp + 2 * Bb) * 4
    slab_row = Bb * 4 * Hp * ssize
    budget = vmem_limit - weight_bytes - scratch_bytes - (4 << 20)
    tb_cap = max(1, budget // (2 * slab_row))
    Tb = int(max(1, min(time_block, T, tb_cap)))
    # Prefer a Tb that divides T so the tail-masking selects are compiled out.
    for d in range(Tb, max(1, Tb // 2) - 1, -1):
        if T % d == 0:
            Tb = d
            break
    n_t = pl.cdiv(T, Tb)
    Tp = n_t * Tb
    mask_tail = Tp != T
    if mask_tail:
        xw = jnp.pad(xw, ((0, Tp - T), (0, 0), (0, 0)))

    kernel = functools.partial(_attn_lstm_kernel, seq_len=T, time_block=Tb,
                               mask_tail=mask_tail)

    def _build(single_buffer_weights):
        def inv(shape):
            n = len(shape)
            idx = lambda b, t: (0,) * n
            if single_buffer_weights:
                # Grid-invariant: one VMEM copy instead of double-buffering.
                return pl.BlockSpec(shape, idx, pipeline_mode=pl.Buffered(1))
            return pl.BlockSpec(shape, idx)

        grid_spec = pltpu.PrefetchScalarGridSpec(
            num_scalar_prefetch=0,
            grid=(Bp // Bb, n_t),
            in_specs=[
                pl.BlockSpec((Tb, Bb, 4 * Hp), lambda b, t: (t, b, 0)),  # xw
                inv((Hp, 5 * Hp)),           # fused [W_hh | W_a1]
                inv((1, Hp)),                # b_a1
                inv((1, Hp)),                # w_a2 row
                inv((1, Hp)),                # w_fc row
                inv((1, 1)),                 # b_fc
            ],
            out_specs=pl.BlockSpec((Bb, 1), lambda b, t: (b, 0)),
            scratch_shapes=[
                pltpu.VMEM((Bb, Hp), jnp.float32),   # h
                pltpu.VMEM((Bb, Hp), jnp.float32),   # c
                pltpu.VMEM((Bb, 1), jnp.float32),    # running max m
                pltpu.VMEM((Bb, 1), jnp.float32),    # running denom l
                pltpu.VMEM((Bb, Hp), jnp.float32),   # running context acc
            ],
        )
        return pl.pallas_call(
            kernel,
            out_shape=jax.ShapeDtypeStruct((Bp, 1), jnp.float32),
            grid_spec=grid_spec,
            compiler_params=pltpu.CompilerParams(
                dimension_semantics=("parallel", "arbitrary"),
                vmem_limit_bytes=vmem_limit),
        )(xw, w_fused, b_a1, w_a2, w_fc, b_fc)

    try:
        out = _build(True)
    except Exception:
        # Fallback for jax builds where Buffered(1) single-buffering is not
        # supported by the pallas_call pipeliner.
        out = _build(False)
    return out[:B]


def init_params(key, input_dim, hidden_dim):
    """Deterministic init mirroring PyTorch default uniform(-1/sqrt(fan), ...)."""
    ks = jax.random.split(key, 12)
    k_lstm = 1.0 / jnp.sqrt(hidden_dim)
    k_lin = 1.0 / jnp.sqrt(hidden_dim)
    u = lambda k, shape, bound: jax.random.uniform(
        k, shape, jnp.float32, -bound, bound)
    return {
        "w_ih": u(ks[0], (4 * hidden_dim, input_dim), k_lstm),
        "w_hh": u(ks[1], (4 * hidden_dim, hidden_dim), k_lstm),
        "b_ih": u(ks[2], (4 * hidden_dim,), k_lstm),
        "b_hh": u(ks[3], (4 * hidden_dim,), k_lstm),
        "w_a1": u(ks[4], (hidden_dim, hidden_dim), k_lin),
        "b_a1": u(ks[5], (hidden_dim,), k_lin),
        "w_a2": u(ks[6], (1, hidden_dim), k_lin),
        "b_a2": u(ks[7], (1,), k_lin),
        "w_fc": u(ks[8], (1, hidden_dim), k_lin),
        "b_fc": u(ks[9], (1,), k_lin),
    }


def reference_forward(x, params):
    """Pure-JAX reference replicating the PyTorch module exactly."""
    H = params["w_hh"].shape[0] // 4
    B, T, D = x.shape

    def step(carry, x_t):
        h, c = carry
        gates = (x_t @ params["w_ih"].T + params["b_ih"]
                 + h @ params["w_hh"].T + params["b_hh"])
        i = jax.nn.sigmoid(gates[:, 0:H])
        f = jax.nn.sigmoid(gates[:, H:2 * H])
        g = jnp.tanh(gates[:, 2 * H:3 * H])
        o = jax.nn.sigmoid(gates[:, 3 * H:4 * H])
        c = f * c + i * g
        h = o * jnp.tanh(c)
        return (h, c), h

    h0 = jnp.zeros((B, H), jnp.float32)
    _, hs = jax.lax.scan(step, (h0, h0), jnp.transpose(x, (1, 0, 2)))
    lstm_out = jnp.transpose(hs, (1, 0, 2))             # (B, T, H)

    scores = (jnp.tanh(lstm_out @ params["w_a1"].T + params["b_a1"])
              @ params["w_a2"].T + params["b_a2"])      # (B, T, 1)
    attn = jax.nn.softmax(scores, axis=1)
    context = jnp.sum(attn * lstm_out, axis=1)          # (B, H)
    return context @ params["w_fc"].T + params["b_fc"]  # (B, 1)


if __name__ == "__main__":
    D, H = 16, 32
    key = jax.random.PRNGKey(0)
    k_x1, k_x2, k_p = jax.random.split(key, 3)
    params = init_params(k_p, D, H)

    # Case 1: B=2 (padded to 8), T=8, Tb=4 -> 2 serial time blocks.
    x1 = jax.random.normal(k_x1, (2, 8, D), dtype=jnp.float32)
    ref1 = reference_forward(x1, params)

    out1_f32 = jax.block_until_ready(
        attention_lstm_forward(x1, params, time_block=4,
                               weight_dtype=jnp.float32))
    assert out1_f32.shape == (2, 1)
    assert jnp.allclose(out1_f32, ref1, atol=1e-4, rtol=1e-4), (out1_f32, ref1)

    out1_bf16 = jax.block_until_ready(
        attention_lstm_forward(x1, params, time_block=4))   # default bf16
    assert out1_bf16.shape == (2, 1)
    assert bool(jnp.all(jnp.isfinite(out1_bf16)))
    # bf16 weights + stream compound rounding over the recurrence -> loose tol.
    assert jnp.allclose(out1_bf16, ref1, atol=1e-1, rtol=1e-1), (out1_bf16, ref1)

    # Case 2: ragged shapes -> batch padding (9 -> 16, two batch blocks of 8
    # on the parallel axis), time-tail masking (T=11, Tb=4 -> Tp=12) and the
    # deferred-score epilogue.  Exact f32 check.
    x2 = jax.random.normal(k_x2, (9, 11, D), dtype=jnp.float32)
    ref2 = reference_forward(x2, params)
    out2 = jax.block_until_ready(
        attention_lstm_forward(x2, params, time_block=4, batch_block=8,
                               weight_dtype=jnp.float32))
    assert out2.shape == (9, 1)
    assert jnp.allclose(out2, ref2, atol=1e-4, rtol=1e-4), (out2, ref2)

    print("KERNEL_OK")
</pallas_src>

<mosaic_0001>
module attributes {stable_mosaic.version = 11 : i64} {
  func.func @_attn_lstm_kernel(%arg0: i32, %arg1: i32, %arg2: memref<4x8x512xf32, #tpu.memory_space<vmem>>, %arg3: memref<128x640xf32, #tpu.memory_space<vmem>>, %arg4: memref<1x128xf32, #tpu.memory_space<vmem>>, %arg5: memref<1x128xf32, #tpu.memory_space<vmem>>, %arg6: memref<1x128xf32, #tpu.memory_space<vmem>>, %arg7: memref<1x1xf32, #tpu.memory_space<vmem>>, %arg8: memref<8x1xf32, #tpu.memory_space<vmem>>, %arg9: memref<8x128xf32, #tpu.memory_space<vmem>>, %arg10: memref<8x128xf32, #tpu.memory_space<vmem>>, %arg11: memref<8x1xf32, #tpu.memory_space<vmem>>, %arg12: memref<8x1xf32, #tpu.memory_space<vmem>>, %arg13: memref<8x128xf32, #tpu.memory_space<vmem>>) attributes {dimension_semantics = [#tpu.dimension_semantics<parallel>, #tpu.dimension_semantics<arbitrary>], iteration_bounds = array<i64: 1, 2>, scalar_prefetch = 0 : i64, scratch_operands = 5 : i64, tpu.core_type = #tpu.core_type<tc>, window_params = [{transform_indices = @transform_0, window_bounds = array<i64: 4, 8, 512>}, {pipeline_mode = #tpu.pipeline_mode<synchronous>, transform_indices = @transform_1, window_bounds = array<i64: 128, 640>}, {pipeline_mode = #tpu.pipeline_mode<synchronous>, transform_indices = @transform_2, window_bounds = array<i64: 1, 128>}, {pipeline_mode = #tpu.pipeline_mode<synchronous>, transform_indices = @transform_3, window_bounds = array<i64: 1, 128>}, {pipeline_mode = #tpu.pipeline_mode<synchronous>, transform_indices = @transform_4, window_bounds = array<i64: 1, 128>}, {pipeline_mode = #tpu.pipeline_mode<synchronous>, transform_indices = @transform_5, window_bounds = array<i64: 1, 1>}, {transform_indices = @transform_6, window_bounds = array<i64: 8, 1>}]} {
    %c0_i32 = arith.constant 0 : i32
    %0 = arith.cmpi eq, %arg1, %c0_i32 : i32
    %1 = arith.extui %0 : i1 to i32
    %c0_i32_0 = arith.constant 0 : i32
    %2 = arith.cmpi ne, %1, %c0_i32_0 : i32
    scf.if %2 {
      %cst_65 = arith.constant 0.000000e+00 : f32
      %240 = vector.broadcast %cst_65 : f32 to vector<8x128xf32>
      %c0_66 = arith.constant 0 : index
      %c0_67 = arith.constant 0 : index
      %241 = vector.load %arg9[%c0_66, %c0_67] : memref<8x128xf32, #tpu.memory_space<vmem>>, vector<8x128xf32>
      tpu.vector_store %arg9[%c0_66, %c0_67], %240 {strides = array<i32>} : memref<8x128xf32, #tpu.memory_space<vmem>>, vector<8x128xf32>,
      %cst_68 = arith.constant 0.000000e+00 : f32
      %242 = vector.broadcast %cst_68 : f32 to vector<8x128xf32>
      %c0_69 = arith.constant 0 : index
      %c0_70 = arith.constant 0 : index
      %243 = vector.load %arg10[%c0_69, %c0_70] : memref<8x128xf32, #tpu.memory_space<vmem>>, vector<8x128xf32>
      tpu.vector_store %arg10[%c0_69, %c0_70], %242 {strides = array<i32>} : memref<8x128xf32, #tpu.memory_space<vmem>>, vector<8x128xf32>,
      %cst_71 = arith.constant -1.000000e+30 : f32
      %244 = vector.broadcast %cst_71 : f32 to vector<8x1xf32>
      %c0_72 = arith.constant 0 : index
      %c0_73 = arith.constant 0 : index
      %245 = vector.load %arg11[%c0_72, %c0_73] : memref<8x1xf32, #tpu.memory_space<vmem>>, vector<8x1xf32>
      tpu.vector_store %arg11[%c0_72, %c0_73], %244 {strides = array<i32>} : memref<8x1xf32, #tpu.memory_space<vmem>>, vector<8x1xf32>,
      %cst_74 = arith.constant 0.000000e+00 : f32
      %246 = vector.broadcast %cst_74 : f32 to vector<8x1xf32>
      %c0_75 = arith.constant 0 : index
      %c0_76 = arith.constant 0 : index
      %247 = vector.load %arg12[%c0_75, %c0_76] : memref<8x1xf32, #tpu.memory_space<vmem>>, vector<8x1xf32>
      tpu.vector_store %arg12[%c0_75, %c0_76], %246 {strides = array<i32>} : memref<8x1xf32, #tpu.memory_space<vmem>>, vector<8x1xf32>,
      %cst_77 = arith.constant 0.000000e+00 : f32
      %248 = vector.broadcast %cst_77 : f32 to vector<8x128xf32>
      %c0_78 = arith.constant 0 : index
      %c0_79 = arith.constant 0 : index
      %249 = vector.load %arg13[%c0_78, %c0_79] : memref<8x128xf32, #tpu.memory_space<vmem>>, vector<8x128xf32>
      tpu.vector_store %arg13[%c0_78, %c0_79], %248 {strides = array<i32>} : memref<8x128xf32, #tpu.memory_space<vmem>>, vector<8x128xf32>,
    } else {
    }
    %c0 = arith.constant 0 : index
    %c0_1 = arith.constant 0 : index
    %3 = vector.load %arg3[%c0, %c0_1] : memref<128x640xf32, #tpu.memory_space<vmem>>, vector<128x640xf32>
    %c0_2 = arith.constant 0 : index
    %c0_3 = arith.constant 0 : index
    %4 = vector.load %arg4[%c0_2, %c0_3] : memref<1x128xf32, #tpu.memory_space<vmem>>, vector<1x128xf32>
    %c0_4 = arith.constant 0 : index
    %c0_5 = arith.constant 0 : index
    %5 = vector.load %arg5[%c0_4, %c0_5] : memref<1x128xf32, #tpu.memory_space<vmem>>, vector<1x128xf32>
    %c4_i32 = arith.constant 4 : i32
    %6 = arith.muli %arg1, %c4_i32 : i32
    %c0_6 = arith.constant 0 : index
    %c0_7 = arith.constant 0 : index
    %7 = vector.load %arg9[%c0_6, %c0_7] : memref<8x128xf32, #tpu.memory_space<vmem>>, vector<8x128xf32>
    %c0_8 = arith.constant 0 : index
    %c0_9 = arith.constant 0 : index
    %8 = vector.load %arg10[%c0_8, %c0_9] : memref<8x128xf32, #tpu.memory_space<vmem>>, vector<8x128xf32>
    %c0_10 = arith.constant 0 : index
    %c0_11 = arith.constant 0 : index
    %9 = vector.load %arg11[%c0_10, %c0_11] : memref<8x1xf32, #tpu.memory_space<vmem>>, vector<8x1xf32>
    %c0_12 = arith.constant 0 : index
    %c0_13 = arith.constant 0 : index
    %10 = vector.load %arg12[%c0_12, %c0_13] : memref<8x1xf32, #tpu.memory_space<vmem>>, vector<8x1xf32>
    %c0_14 = arith.constant 0 : index
    %c0_15 = arith.constant 0 : index
    %11 = vector.load %arg13[%c0_14, %c0_15] : memref<8x128xf32, #tpu.memory_space<vmem>>, vector<8x128xf32>
    %c0_i32_16 = arith.constant 0 : i32
    %12 = arith.addi %6, %c0_i32_16 : i32
    %cst = arith.constant dense<0.000000e+00> : vector<8x640xf32>
    %13 = tpu.matmul %7, %3, %cst {dimension_numbers = #tpu.dot_dimension_numbers<[1], [0], [0], [1], [0, 0, 1, 1], [], []>} : vector<8x128xf32>, vector<128x640xf32>, vector<8x640xf32> -> vector<8x640xf32>
    %14 = vector.extract_strided_slice %13 {offsets = [0, 512], sizes = [8, 128], strides = [1, 1]} : vector<8x640xf32> to vector<8x128xf32>
    %15 = vector.broadcast %4 : vector<1x128xf32> to vector<8x128xf32>
    %16 = arith.addf %14, %15 : vector<8x128xf32>
    %17 = math.tanh %16 : vector<8x128xf32>
    %18 = vector.broadcast %5 : vector<1x128xf32> to vector<8x128xf32>
    %19 = arith.mulf %17, %18 : vector<8x128xf32>
    %cst_17 = arith.constant dense<0.000000e+00> : vector<8xf32>
    %20 = vector.multi_reduction <add>, %19, %cst_17 [1] : vector<8x128xf32> to vector<8xf32>
    %21 = vector.shape_cast %20 : vector<8xf32> to vector<8x1xf32>
    %c1_i32 = arith.constant 1 : i32
    %22 = arith.cmpi sge, %12, %c1_i32 : i32
    %cst_18 = arith.constant -9.99999968E+37 : f32
    %23 = vector.broadcast %cst_18 : f32 to vector<8x1xf32>
    %24 = arith.select %22, %21, %23 : vector<8x1xf32>
    %25 = arith.maximumf %9, %24 : vector<8x1xf32>
    %26 = arith.subf %9, %25 : vector<8x1xf32>
    %27 = math.exp %26 : vector<8x1xf32>
    %28 = arith.subf %24, %25 : vector<8x1xf32>
    %29 = math.exp %28 : vector<8x1xf32>
    %30 = arith.mulf %27, %10 : vector<8x1xf32>
    %31 = arith.addf %30, %29 : vector<8x1xf32>
    %32 = vector.broadcast %27 : vector<8x1xf32> to vector<8x128xf32>
    %33 = arith.mulf %32, %11 : vector<8x128xf32>
    %34 = vector.broadcast %29 : vector<8x1xf32> to vector<8x128xf32>
    %35 = arith.mulf %34, %7 : vector<8x128xf32>
    %36 = arith.addf %33, %35 : vector<8x128xf32>
    %37 = arith.index_cast %c0_i32_16 : i32 to index
    %c0_19 = arith.constant 0 : index
    %c0_20 = arith.constant 0 : index
    %38 = vector.load %arg2[%37, %c0_19, %c0_20] : memref<4x8x512xf32, #tpu.memory_space<vmem>>, vector<1x8x512xf32>
    %39 = vector.shape_cast %38 : vector<1x8x512xf32> to vector<8x512xf32>
    %40 = vector.extract_strided_slice %13 {offsets = [0, 0], sizes = [8, 512], strides = [1, 1]} : vector<8x640xf32> to vector<8x512xf32>
    %41 = arith.addf %39, %40 : vector<8x512xf32>
    %42 = vector.extract_strided_slice %41 {offsets = [0, 0], sizes = [8, 128], strides = [1, 1]} : vector<8x512xf32> to vector<8x128xf32>
    %43 = arith.negf %42 : vector<8x128xf32>
    %44 = math.exp %43 : vector<8x128xf32>
    %cst_21 = arith.constant 1.000000e+00 : f32
    %45 = vector.broadcast %cst_21 : f32 to vector<8x128xf32>
    %46 = arith.addf %45, %44 : vector<8x128xf32>
    %47 = arith.divf %45, %46 : vector<8x128xf32>
    %48 = vector.extract_strided_slice %41 {offsets = [0, 128], sizes = [8, 128], strides = [1, 1]} : vector<8x512xf32> to vector<8x128xf32>
    %49 = arith.negf %48 : vector<8x128xf32>
    %50 = math.exp %49 : vector<8x128xf32>
    %cst_22 = arith.constant 1.000000e+00 : f32
    %51 = vector.broadcast %cst_22 : f32 to vector<8x128xf32>
    %52 = arith.addf %51, %50 : vector<8x128xf32>
    %53 = arith.divf %51, %52 : vector<8x128xf32>
    %54 = vector.extract_strided_slice %41 {offsets = [0, 256], sizes = [8, 128], strides = [1, 1]} : vector<8x512xf32> to vector<8x128xf32>
    %55 = math.tanh %54 : vector<8x128xf32>
    %56 = vector.extract_strided_slice %41 {offsets = [0, 384], sizes = [8, 128], strides = [1, 1]} : vector<8x512xf32> to vector<8x128xf32>
    %57 = arith.negf %56 : vector<8x128xf32>
    %58 = math.exp %57 : vector<8x128xf32>
    %cst_23 = arith.constant 1.000000e+00 : f32
    %59 = vector.broadcast %cst_23 : f32 to vector<8x128xf32>
    %60 = arith.addf %59, %58 : vector<8x128xf32>
    %61 = arith.divf %59, %60 : vector<8x128xf32>
    %62 = arith.mulf %53, %8 : vector<8x128xf32>
    %63 = arith.mulf %47, %55 : vector<8x128xf32>
    %64 = arith.addf %62, %63 : vector<8x128xf32>
    %65 = math.tanh %64 : vector<8x128xf32>
    %66 = arith.mulf %61, %65 : vector<8x128xf32>
    %c1_i32_24 = arith.constant 1 : i32
    %67 = arith.addi %6, %c1_i32_24 : i32
    %cst_25 = arith.constant dense<0.000000e+00> : vector<8x640xf32>
    %68 = tpu.matmul %66, %3, %cst_25 {dimension_numbers = #tpu.dot_dimension_numbers<[1], [0], [0], [1], [0, 0, 1, 1], [], []>} : vector<8x128xf32>, vector<128x640xf32>, vector<8x640xf32> -> vector<8x640xf32>
    %69 = vector.extract_strided_slice %68 {offsets = [0, 512], sizes = [8, 128], strides = [1, 1]} : vector<8x640xf32> to vector<8x128xf32>
    %70 = vector.broadcast %4 : vector<1x128xf32> to vector<8x128xf32>
    %71 = arith.addf %69, %70 : vector<8x128xf32>
    %72 = math.tanh %71 : vector<8x128xf32>
    %73 = vector.broadcast %5 : vector<1x128xf32> to vector<8x128xf32>
    %74 = arith.mulf %72, %73 : vector<8x128xf32>
    %cst_26 = arith.constant dense<0.000000e+00> : vector<8xf32>
    %75 = vector.multi_reduction <add>, %74, %cst_26 [1] : vector<8x128xf32> to vector<8xf32>
    %76 = vector.shape_cast %75 : vector<8xf32> to vector<8x1xf32>
    %c1_i32_27 = arith.constant 1 : i32
    %77 = arith.cmpi sge, %67, %c1_i32_27 : i32
    %cst_28 = arith.constant -9.99999968E+37 : f32
    %78 = vector.broadcast %cst_28 : f32 to vector<8x1xf32>
    %79 = arith.select %77, %76, %78 : vector<8x1xf32>
    %80 = arith.maximumf %25, %79 : vector<8x1xf32>
    %81 = arith.subf %25, %80 : vector<8x1xf32>
    %82 = math.exp %81 : vector<8x1xf32>
    %83 = arith.subf %79, %80 : vector<8x1xf32>
    %84 = math.exp %83 : vector<8x1xf32>
    %85 = arith.mulf %82, %31 : vector<8x1xf32>
    %86 = arith.addf %85, %84 : vector<8x1xf32>
    %87 = vector.broadcast %82 : vector<8x1xf32> to vector<8x128xf32>
    %88 = arith.mulf %87, %36 : vector<8x128xf32>
    %89 = vector.broadcast %84 : vector<8x1xf32> to vector<8x128xf32>
    %90 = arith.mulf %89, %66 : vector<8x128xf32>
    %91 = arith.addf %88, %90 : vector<8x128xf32>
    %92 = arith.index_cast %c1_i32_24 : i32 to index
    %c0_29 = arith.constant 0 : index
    %c0_30 = arith.constant 0 : index
    %93 = vector.load %arg2[%92, %c0_29, %c0_30] : memref<4x8x512xf32, #tpu.memory_space<vmem>>, vector<1x8x512xf32>
    %94 = vector.shape_cast %93 : vector<1x8x512xf32> to vector<8x512xf32>
    %95 = vector.extract_strided_slice %68 {offsets = [0, 0], sizes = [8, 512], strides = [1, 1]} : vector<8x640xf32> to vector<8x512xf32>
    %96 = arith.addf %94, %95 : vector<8x512xf32>
    %97 = vector.extract_strided_slice %96 {offsets = [0, 0], sizes = [8, 128], strides = [1, 1]} : vector<8x512xf32> to vector<8x128xf32>
    %98 = arith.negf %97 : vector<8x128xf32>
    %99 = math.exp %98 : vector<8x128xf32>
    %cst_31 = arith.constant 1.000000e+00 : f32
    %100 = vector.broadcast %cst_31 : f32 to vector<8x128xf32>
    %101 = arith.addf %100, %99 : vector<8x128xf32>
    %102 = arith.divf %100, %101 : vector<8x128xf32>
    %103 = vector.extract_strided_slice %96 {offsets = [0, 128], sizes = [8, 128], strides = [1, 1]} : vector<8x512xf32> to vector<8x128xf32>
    %104 = arith.negf %103 : vector<8x128xf32>
    %105 = math.exp %104 : vector<8x128xf32>
    %cst_32 = arith.constant 1.000000e+00 : f32
    %106 = vector.broadcast %cst_32 : f32 to vector<8x128xf32>
    %107 = arith.addf %106, %105 : vector<8x128xf32>
    %108 = arith.divf %106, %107 : vector<8x128xf32>
    %109 = vector.extract_strided_slice %96 {offsets = [0, 256], sizes = [8, 128], strides = [1, 1]} : vector<8x512xf32> to vector<8x128xf32>
    %110 = math.tanh %109 : vector<8x128xf32>
    %111 = vector.extract_strided_slice %96 {offsets = [0, 384], sizes = [8, 128], strides = [1, 1]} : vector<8x512xf32> to vector<8x128xf32>
    %112 = arith.negf %111 : vector<8x128xf32>
    %113 = math.exp %112 : vector<8x128xf32>
    %cst_33 = arith.constant 1.000000e+00 : f32
    %114 = vector.broadcast %cst_33 : f32 to vector<8x128xf32>
    %115 = arith.addf %114, %113 : vector<8x128xf32>
    %116 = arith.divf %114, %115 : vector<8x128xf32>
    %117 = arith.mulf %108, %64 : vector<8x128xf32>
    %118 = arith.mulf %102, %110 : vector<8x128xf32>
    %119 = arith.addf %117, %118 : vector<8x128xf32>
    %120 = math.tanh %119 : vector<8x128xf32>
    %121 = arith.mulf %116, %120 : vector<8x128xf32>
    %c2_i32 = arith.constant 2 : i32
    %122 = arith.addi %6, %c2_i32 : i32
    %cst_34 = arith.constant dense<0.000000e+00> : vector<8x640xf32>
    %123 = tpu.matmul %121, %3, %cst_34 {dimension_numbers = #tpu.dot_dimension_numbers<[1], [0], [0], [1], [0, 0, 1, 1], [], []>} : vector<8x128xf32>, vector<128x640xf32>, vector<8x640xf32> -> vector<8x640xf32>
    %124 = vector.extract_strided_slice %123 {offsets = [0, 512], sizes = [8, 128], strides = [1, 1]} : vector<8x640xf32> to vector<8x128xf32>
    %125 = vector.broadcast %4 : vector<1x128xf32> to vector<8x128xf32>
    %126 = arith.addf %124, %125 : vector<8x128xf32>
    %127 = math.tanh %126 : vector<8x128xf32>
    %128 = vector.broadcast %5 : vector<1x128xf32> to vector<8x128xf32>
    %129 = arith.mulf %127, %128 : vector<8x128xf32>
    %cst_35 = arith.constant dense<0.000000e+00> : vector<8xf32>
    %130 = vector.multi_reduction <add>, %129, %cst_35 [1] : vector<8x128xf32> to vector<8xf32>
    %131 = vector.shape_cast %130 : vector<8xf32> to vector<8x1xf32>
    %c1_i32_36 = arith.constant 1 : i32
    %132 = arith.cmpi sge, %122, %c1_i32_36 : i32
    %cst_37 = arith.constant -9.99999968E+37 : f32
    %133 = vector.broadcast %cst_37 : f32 to vector<8x1xf32>
    %134 = arith.select %132, %131, %133 : vector<8x1xf32>
    %135 = arith.maximumf %80, %134 : vector<8x1xf32>
    %136 = arith.subf %80, %135 : vector<8x1xf32>
    %137 = math.exp %136 : vector<8x1xf32>
    %138 = arith.subf %134, %135 : vector<8x1xf32>
    %139 = math.exp %138 : vector<8x1xf32>
    %140 = arith.mulf %137, %86 : vector<8x1xf32>
    %141 = arith.addf %140, %139 : vector<8x1xf32>
    %142 = vector.broadcast %137 : vector<8x1xf32> to vector<8x128xf32>
    %143 = arith.mulf %142, %91 : vector<8x128xf32>
    %144 = vector.broadcast %139 : vector<8x1xf32> to vector<8x128xf32>
    %145 = arith.mulf %144, %121 : vector<8x128xf32>
    %146 = arith.addf %143, %145 : vector<8x128xf32>
    %147 = arith.index_cast %c2_i32 : i32 to index
    %c0_38 = arith.constant 0 : index
    %c0_39 = arith.constant 0 : index
    %148 = vector.load %arg2[%147, %c0_38, %c0_39] : memref<4x8x512xf32, #tpu.memory_space<vmem>>, vector<1x8x512xf32>
    %149 = vector.shape_cast %148 : vector<1x8x512xf32> to vector<8x512xf32>
    %150 = vector.extract_strided_slice %123 {offsets = [0, 0], sizes = [8, 512], strides = [1, 1]} : vector<8x640xf32> to vector<8x512xf32>
    %151 = arith.addf %149, %150 : vector<8x512xf32>
    %152 = vector.extract_strided_slice %151 {offsets = [0, 0], sizes = [8, 128], strides = [1, 1]} : vector<8x512xf32> to vector<8x128xf32>
    %153 = arith.negf %152 : vector<8x128xf32>
    %154 = math.exp %153 : vector<8x128xf32>
    %cst_40 = arith.constant 1.000000e+00 : f32
    %155 = vector.broadcast %cst_40 : f32 to vector<8x128xf32>
    %156 = arith.addf %155, %154 : vector<8x128xf32>
    %157 = arith.divf %155, %156 : vector<8x128xf32>
    %158 = vector.extract_strided_slice %151 {offsets = [0, 128], sizes = [8, 128], strides = [1, 1]} : vector<8x512xf32> to vector<8x128xf32>
    %159 = arith.negf %158 : vector<8x128xf32>
    %160 = math.exp %159 : vector<8x128xf32>
    %cst_41 = arith.constant 1.000000e+00 : f32
    %161 = vector.broadcast %cst_41 : f32 to vector<8x128xf32>
    %162 = arith.addf %161, %160 : vector<8x128xf32>
    %163 = arith.divf %161, %162 : vector<8x128xf32>
    %164 = vector.extract_strided_slice %151 {offsets = [0, 256], sizes = [8, 128], strides = [1, 1]} : vector<8x512xf32> to vector<8x128xf32>
    %165 = math.tanh %164 : vector<8x128xf32>
    %166 = vector.extract_strided_slice %151 {offsets = [0, 384], sizes = [8, 128], strides = [1, 1]} : vector<8x512xf32> to vector<8x128xf32>
    %167 = arith.negf %166 : vector<8x128xf32>
    %168 = math.exp %167 : vector<8x128xf32>
    %cst_42 = arith.constant 1.000000e+00 : f32
    %169 = vector.broadcast %cst_42 : f32 to vector<8x128xf32>
    %170 = arith.addf %169, %168 : vector<8x128xf32>
    %171 = arith.divf %169, %170 : vector<8x128xf32>
    %172 = arith.mulf %163, %119 : vector<8x128xf32>
    %173 = arith.mulf %157, %165 : vector<8x128xf32>
    %174 = arith.addf %172, %173 : vector<8x128xf32>
    %175 = math.tanh %174 : vector<8x128xf32>
    %176 = arith.mulf %171, %175 : vector<8x128xf32>
    %c3_i32 = arith.constant 3 : i32
    %177 = arith.addi %6, %c3_i32 : i32
    %cst_43 = arith.constant dense<0.000000e+00> : vector<8x640xf32>
    %178 = tpu.matmul %176, %3, %cst_43 {dimension_numbers = #tpu.dot_dimension_numbers<[1], [0], [0], [1], [0, 0, 1, 1], [], []>} : vector<8x128xf32>, vector<128x640xf32>, vector<8x640xf32> -> vector<8x640xf32>
    %179 = vector.extract_strided_slice %178 {offsets = [0, 512], sizes = [8, 128], strides = [1, 1]} : vector<8x640xf32> to vector<8x128xf32>
    %180 = vector.broadcast %4 : vector<1x128xf32> to vector<8x128xf32>
    %181 = arith.addf %179, %180 : vector<8x128xf32>
    %182 = math.tanh %181 : vector<8x128xf32>
    %183 = vector.broadcast %5 : vector<1x128xf32> to vector<8x128xf32>
    %184 = arith.mulf %182, %183 : vector<8x128xf32>
    %cst_44 = arith.constant dense<0.000000e+00> : vector<8xf32>
    %185 = vector.multi_reduction <add>, %184, %cst_44 [1] : vector<8x128xf32> to vector<8xf32>
    %186 = vector.shape_cast %185 : vector<8xf32> to vector<8x1xf32>
    %c1_i32_45 = arith.constant 1 : i32
    %187 = arith.cmpi sge, %177, %c1_i32_45 : i32
    %cst_46 = arith.constant -9.99999968E+37 : f32
    %188 = vector.broadcast %cst_46 : f32 to vector<8x1xf32>
    %189 = arith.select %187, %186, %188 : vector<8x1xf32>
    %190 = arith.maximumf %135, %189 : vector<8x1xf32>
    %191 = arith.subf %135, %190 : vector<8x1xf32>
    %192 = math.exp %191 : vector<8x1xf32>
    %193 = arith.subf %189, %190 : vector<8x1xf32>
    %194 = math.exp %193 : vector<8x1xf32>
    %195 = arith.mulf %192, %141 : vector<8x1xf32>
    %196 = arith.addf %195, %194 : vector<8x1xf32>
    %197 = vector.broadcast %192 : vector<8x1xf32> to vector<8x128xf32>
    %198 = arith.mulf %197, %146 : vector<8x128xf32>
    %199 = vector.broadcast %194 : vector<8x1xf32> to vector<8x128xf32>
    %200 = arith.mulf %199, %176 : vector<8x128xf32>
    %201 = arith.addf %198, %200 : vector<8x128xf32>
    %202 = arith.index_cast %c3_i32 : i32 to index
    %c0_47 = arith.constant 0 : index
    %c0_48 = arith.constant 0 : index
    %203 = vector.load %arg2[%202, %c0_47, %c0_48] : memref<4x8x512xf32, #tpu.memory_space<vmem>>, vector<1x8x512xf32>
    %204 = vector.shape_cast %203 : vector<1x8x512xf32> to vector<8x512xf32>
    %205 = vector.extract_strided_slice %178 {offsets = [0, 0], sizes = [8, 512], strides = [1, 1]} : vector<8x640xf32> to vector<8x512xf32>
    %206 = arith.addf %204, %205 : vector<8x512xf32>
    %207 = vector.extract_strided_slice %206 {offsets = [0, 0], sizes = [8, 128], strides = [1, 1]} : vector<8x512xf32> to vector<8x128xf32>
    %208 = arith.negf %207 : vector<8x128xf32>
    %209 = math.exp %208 : vector<8x128xf32>
    %cst_49 = arith.constant 1.000000e+00 : f32
    %210 = vector.broadcast %cst_49 : f32 to vector<8x128xf32>
    %211 = arith.addf %210, %209 : vector<8x128xf32>
    %212 = arith.divf %210, %211 : vector<8x128xf32>
    %213 = vector.extract_strided_slice %206 {offsets = [0, 128], sizes = [8, 128], strides = [1, 1]} : vector<8x512xf32> to vector<8x128xf32>
    %214 = arith.negf %213 : vector<8x128xf32>
    %215 = math.exp %214 : vector<8x128xf32>
    %cst_50 = arith.constant 1.000000e+00 : f32
    %216 = vector.broadcast %cst_50 : f32 to vector<8x128xf32>
    %217 = arith.addf %216, %215 : vector<8x128xf32>
    %218 = arith.divf %216, %217 : vector<8x128xf32>
    %219 = vector.extract_strided_slice %206 {offsets = [0, 256], sizes = [8, 128], strides = [1, 1]} : vector<8x512xf32> to vector<8x128xf32>
    %220 = math.tanh %219 : vector<8x128xf32>
    %221 = vector.extract_strided_slice %206 {offsets = [0, 384], sizes = [8, 128], strides = [1, 1]} : vector<8x512xf32> to vector<8x128xf32>
    %222 = arith.negf %221 : vector<8x128xf32>
    %223 = math.exp %222 : vector<8x128xf32>
    %cst_51 = arith.constant 1.000000e+00 : f32
    %224 = vector.broadcast %cst_51 : f32 to vector<8x128xf32>
    %225 = arith.addf %224, %223 : vector<8x128xf32>
    %226 = arith.divf %224, %225 : vector<8x128xf32>
    %227 = arith.mulf %218, %174 : vector<8x128xf32>
    %228 = arith.mulf %212, %220 : vector<8x128xf32>
    %229 = arith.addf %227, %228 : vector<8x128xf32>
    %230 = math.tanh %229 : vector<8x128xf32>
    %231 = arith.mulf %226, %230 : vector<8x128xf32>
    %c4_i32_52 = arith.constant 4 : i32
    %c0_53 = arith.constant 0 : index
    %c0_54 = arith.constant 0 : index
    %232 = vector.load %arg9[%c0_53, %c0_54] : memref<8x128xf32, #tpu.memory_space<vmem>>, vector<8x128xf32>
    tpu.vector_store %arg9[%c0_53, %c0_54], %231 {strides = array<i32>} : memref<8x128xf32, #tpu.memory_space<vmem>>, vector<8x128xf32>,
    %c0_55 = arith.constant 0 : index
    %c0_56 = arith.constant 0 : index
    %233 = vector.load %arg10[%c0_55, %c0_56] : memref<8x128xf32, #tpu.memory_space<vmem>>, vector<8x128xf32>
    tpu.vector_store %arg10[%c0_55, %c0_56], %229 {strides = array<i32>} : memref<8x128xf32, #tpu.memory_space<vmem>>, vector<8x128xf32>,
    %c0_57 = arith.constant 0 : index
    %c0_58 = arith.constant 0 : index
    %234 = vector.load %arg11[%c0_57, %c0_58] : memref<8x1xf32, #tpu.memory_space<vmem>>, vector<8x1xf32>
    tpu.vector_store %arg11[%c0_57, %c0_58], %190 {strides = array<i32>} : memref<8x1xf32, #tpu.memory_space<vmem>>, vector<8x1xf32>,
    %c0_59 = arith.constant 0 : index
    %c0_60 = arith.constant 0 : index
    %235 = vector.load %arg12[%c0_59, %c0_60] : memref<8x1xf32, #tpu.memory_space<vmem>>, vector<8x1xf32>
    tpu.vector_store %arg12[%c0_59, %c0_60], %196 {strides = array<i32>} : memref<8x1xf32, #tpu.memory_space<vmem>>, vector<8x1xf32>,
    %c0_61 = arith.constant 0 : index
    %c0_62 = arith.constant 0 : index
    %236 = vector.load %arg13[%c0_61, %c0_62] : memref<8x128xf32, #tpu.memory_space<vmem>>, vector<8x128xf32>
    tpu.vector_store %arg13[%c0_61, %c0_62], %201 {strides = array<i32>} : memref<8x128xf32, #tpu.memory_space<vmem>>, vector<8x128xf32>,
    %c1_i32_63 = arith.constant 1 : i32
    %237 = arith.cmpi eq, %arg1, %c1_i32_63 : i32
    %238 = arith.extui %237 : i1 to i32
    %c0_i32_64 = arith.constant 0 : i32
    %239 = arith.cmpi ne, %238, %c0_i32_64 : i32
    scf.if %239 {
      %240 = vector.extract_strided_slice %3 {offsets = [0, 512], sizes = [128, 128], strides = [1, 1]} : vector<128x640xf32> to vector<128x128xf32>
      %cst_65 = arith.constant dense<0.000000e+00> : vector<8x128xf32>
      %241 = tpu.matmul %231, %240, %cst_65 {dimension_numbers = #tpu.dot_dimension_numbers<[1], [0], [0], [1], [0, 0, 1, 1], [], []>} : vector<8x128xf32>, vector<128x128xf32>, vector<8x128xf32> -> vector<8x128xf32>
      %242 = vector.broadcast %4 : vector<1x128xf32> to vector<8x128xf32>
      %243 = arith.addf %241, %242 : vector<8x128xf32>
      %244 = math.tanh %243 : vector<8x128xf32>
      %245 = vector.broadcast %5 : vector<1x128xf32> to vector<8x128xf32>
      %246 = arith.mulf %244, %245 : vector<8x128xf32>
      %cst_66 = arith.constant dense<0.000000e+00> : vector<8xf32>
      %247 = vector.multi_reduction <add>, %246, %cst_66 [1] : vector<8x128xf32> to vector<8xf32>
      %248 = vector.shape_cast %247 : vector<8xf32> to vector<8x1xf32>
      %249 = arith.maximumf %190, %248 : vector<8x1xf32>
      %250 = arith.subf %190, %249 : vector<8x1xf32>
      %251 = math.exp %250 : vector<8x1xf32>
      %252 = arith.subf %248, %249 : vector<8x1xf32>
      %253 = math.exp %252 : vector<8x1xf32>
      %254 = arith.mulf %251, %196 : vector<8x1xf32>
      %255 = arith.addf %254, %253 : vector<8x1xf32>
      %256 = vector.broadcast %251 : vector<8x1xf32> to vector<8x128xf32>
      %257 = arith.mulf %256, %201 : vector<8x128xf32>
      %258 = vector.broadcast %253 : vector<8x1xf32> to vector<8x128xf32>
      %259 = arith.mulf %258, %231 : vector<8x128xf32>
      %260 = arith.addf %257, %259 : vector<8x128xf32>
      %261 = vector.broadcast %255 : vector<8x1xf32> to vector<8x128xf32>
      %262 = arith.divf %260, %261 : vector<8x128xf32>
      %c0_67 = arith.constant 0 : index
      %c0_68 = arith.constant 0 : index
      %263 = vector.load %arg6[%c0_67, %c0_68] : memref<1x128xf32, #tpu.memory_space<vmem>>, vector<1x128xf32>
      %264 = vector.broadcast %263 : vector<1x128xf32> to vector<8x128xf32>
      %265 = arith.mulf %262, %264 : vector<8x128xf32>
      %cst_69 = arith.constant dense<0.000000e+00> : vector<8xf32>
      %266 = vector.multi_reduction <add>, %265, %cst_69 [1] : vector<8x128xf32> to vector<8xf32>
      %267 = vector.shape_cast %266 : vector<8xf32> to vector<8x1xf32>
      %c0_70 = arith.constant 0 : index
      %c0_71 = arith.constant 0 : index
      %268 = vector.load %arg7[%c0_70, %c0_71] : memref<1x1xf32, #tpu.memory_space<vmem>>, vector<1x1xf32>
      %269 = vector.broadcast %268 : vector<1x1xf32> to vector<8x1xf32>
      %270 = arith.addf %267, %269 : vector<8x1xf32>
      %c0_72 = arith.constant 0 : index
      %c0_73 = arith.constant 0 : index
      %271 = vector.load %arg8[%c0_72, %c0_73] : memref<8x1xf32, #tpu.memory_space<vmem>>, vector<8x1xf32>
      tpu.vector_store %arg8[%c0_72, %c0_73], %270 {strides = array<i32>} : memref<8x1xf32, #tpu.memory_space<vmem>>, vector<8x1xf32>,
    } else {
    }
    return
  }
  func.func @transform_0(%arg0: i32, %arg1: i32) -> (i32, i32, i32) {
    %c0_i32 = arith.constant 0 : i32
    %c0_i32_0 = arith.constant 0 : i32
    return %arg1, %arg0, %c0_i32 : i32, i32, i32
  }
  func.func @transform_1(%arg0: i32, %arg1: i32) -> (i32, i32) {
    %c0_i32 = arith.constant 0 : i32
    %c0_i32_0 = arith.constant 0 : i32
    %c0_i32_1 = arith.constant 0 : i32
    return %c0_i32, %c0_i32_0 : i32, i32
  }
  func.func @transform_2(%arg0: i32, %arg1: i32) -> (i32, i32) {
    %c0_i32 = arith.constant 0 : i32
    %c0_i32_0 = arith.constant 0 : i32
    %c0_i32_1 = arith.constant 0 : i32
    return %c0_i32, %c0_i32_0 : i32, i32
  }
  func.func @transform_3(%arg0: i32, %arg1: i32) -> (i32, i32) {
    %c0_i32 = arith.constant 0 : i32
    %c0_i32_0 = arith.constant 0 : i32
    %c0_i32_1 = arith.constant 0 : i32
    return %c0_i32, %c0_i32_0 : i32, i32
  }
  func.func @transform_4(%arg0: i32, %arg1: i32) -> (i32, i32) {
    %c0_i32 = arith.constant 0 : i32
    %c0_i32_0 = arith.constant 0 : i32
    %c0_i32_1 = arith.constant 0 : i32
    return %c0_i32, %c0_i32_0 : i32, i32
  }
  func.func @transform_5(%arg0: i32, %arg1: i32) -> (i32, i32) {
    %c0_i32 = arith.constant 0 : i32
    %c0_i32_0 = arith.constant 0 : i32
    %c0_i32_1 = arith.constant 0 : i32
    return %c0_i32, %c0_i32_0 : i32, i32
  }
  func.func @transform_6(%arg0: i32, %arg1: i32) -> (i32, i32) {
    %c0_i32 = arith.constant 0 : i32
    %c0_i32_0 = arith.constant 0 : i32
    return %arg0, %c0_i32 : i32, i32
  }
}

module attributes {stable_mosaic.version = 11 : i64} {
  func.func @_attn_lstm_kernel(%arg0: i32, %arg1: i32, %arg2: memref<4x8x512xf32, #tpu.memory_space<vmem>>, %arg3: memref<128x640xf32, #tpu.memory_space<vmem>>, %arg4: memref<1x128xf32, #tpu.memory_space<vmem>>, %arg5: memref<1x128xf32, #tpu.memory_space<vmem>>, %arg6: memref<1x128xf32, #tpu.memory_space<vmem>>, %arg7: memref<1x1xf32, #tpu.memory_space<vmem>>, %arg8: memref<8x1xf32, #tpu.memory_space<vmem>>, %arg9: memref<8x128xf32, #tpu.memory_space<vmem>>, %arg10: memref<8x128xf32, #tpu.memory_space<vmem>>, %arg11: memref<8x1xf32, #tpu.memory_space<vmem>>, %arg12: memref<8x1xf32, #tpu.memory_space<vmem>>, %arg13: memref<8x128xf32, #tpu.memory_space<vmem>>) attributes {dimension_semantics = [#tpu.dimension_semantics<parallel>, #tpu.dimension_semantics<arbitrary>], iteration_bounds = array<i64: 1, 2>, scalar_prefetch = 0 : i64, scratch_operands = 5 : i64, tpu.core_type = #tpu.core_type<tc>, window_params = [{transform_indices = @transform_0, window_bounds = array<i64: 4, 8, 512>}, {pipeline_mode = #tpu.pipeline_mode<synchronous>, transform_indices = @transform_1, window_bounds = array<i64: 128, 640>}, {pipeline_mode = #tpu.pipeline_mode<synchronous>, transform_indices = @transform_2, window_bounds = array<i64: 1, 128>}, {pipeline_mode = #tpu.pipeline_mode<synchronous>, transform_indices = @transform_3, window_bounds = array<i64: 1, 128>}, {pipeline_mode = #tpu.pipeline_mode<synchronous>, transform_indices = @transform_4, window_bounds = array<i64: 1, 128>}, {pipeline_mode = #tpu.pipeline_mode<synchronous>, transform_indices = @transform_5, window_bounds = array<i64: 1, 1>}, {transform_indices = @transform_6, window_bounds = array<i64: 8, 1>}]} {
    %c0_i32 = arith.constant 0 : i32
    %0 = arith.cmpi eq, %arg1, %c0_i32 : i32
    %1 = arith.extui %0 : i1 to i32
    %c0_i32_0 = arith.constant 0 : i32
    %2 = arith.cmpi ne, %1, %c0_i32_0 : i32
    scf.if %2 {
      %cst_65 = arith.constant 0.000000e+00 : f32
      %240 = vector.broadcast %cst_65 : f32 to vector<8x128xf32>
      %c0_66 = arith.constant 0 : index
      %c0_67 = arith.constant 0 : index
      %241 = vector.load %arg9[%c0_66, %c0_67] : memref<8x128xf32, #tpu.memory_space<vmem>>, vector<8x128xf32>
      tpu.vector_store %arg9[%c0_66, %c0_67], %240 {strides = array<i32>} : memref<8x128xf32, #tpu.memory_space<vmem>>, vector<8x128xf32>,
      %cst_68 = arith.constant 0.000000e+00 : f32
      %242 = vector.broadcast %cst_68 : f32 to vector<8x128xf32>
      %c0_69 = arith.constant 0 : index
      %c0_70 = arith.constant 0 : index
      %243 = vector.load %arg10[%c0_69, %c0_70] : memref<8x128xf32, #tpu.memory_space<vmem>>, vector<8x128xf32>
      tpu.vector_store %arg10[%c0_69, %c0_70], %242 {strides = array<i32>} : memref<8x128xf32, #tpu.memory_space<vmem>>, vector<8x128xf32>,
      %cst_71 = arith.constant -1.000000e+30 : f32
      %244 = vector.broadcast %cst_71 : f32 to vector<8x1xf32>
      %c0_72 = arith.constant 0 : index
      %c0_73 = arith.constant 0 : index
      %245 = vector.load %arg11[%c0_72, %c0_73] : memref<8x1xf32, #tpu.memory_space<vmem>>, vector<8x1xf32>
      tpu.vector_store %arg11[%c0_72, %c0_73], %244 {strides = array<i32>} : memref<8x1xf32, #tpu.memory_space<vmem>>, vector<8x1xf32>,
      %cst_74 = arith.constant 0.000000e+00 : f32
      %246 = vector.broadcast %cst_74 : f32 to vector<8x1xf32>
      %c0_75 = arith.constant 0 : index
      %c0_76 = arith.constant 0 : index
      %247 = vector.load %arg12[%c0_75, %c0_76] : memref<8x1xf32, #tpu.memory_space<vmem>>, vector<8x1xf32>
      tpu.vector_store %arg12[%c0_75, %c0_76], %246 {strides = array<i32>} : memref<8x1xf32, #tpu.memory_space<vmem>>, vector<8x1xf32>,
      %cst_77 = arith.constant 0.000000e+00 : f32
      %248 = vector.broadcast %cst_77 : f32 to vector<8x128xf32>
      %c0_78 = arith.constant 0 : index
      %c0_79 = arith.constant 0 : index
      %249 = vector.load %arg13[%c0_78, %c0_79] : memref<8x128xf32, #tpu.memory_space<vmem>>, vector<8x128xf32>
      tpu.vector_store %arg13[%c0_78, %c0_79], %248 {strides = array<i32>} : memref<8x128xf32, #tpu.memory_space<vmem>>, vector<8x128xf32>,
    } else {
    }
    %c0 = arith.constant 0 : index
    %c0_1 = arith.constant 0 : index
    %3 = vector.load %arg3[%c0, %c0_1] : memref<128x640xf32, #tpu.memory_space<vmem>>, vector<128x640xf32>
    %c0_2 = arith.constant 0 : index
    %c0_3 = arith.constant 0 : index
    %4 = vector.load %arg4[%c0_2, %c0_3] : memref<1x128xf32, #tpu.memory_space<vmem>>, vector<1x128xf32>
    %c0_4 = arith.constant 0 : index
    %c0_5 = arith.constant 0 : index
    %5 = vector.load %arg5[%c0_4, %c0_5] : memref<1x128xf32, #tpu.memory_space<vmem>>, vector<1x128xf32>
    %c4_i32 = arith.constant 4 : i32
    %6 = arith.muli %arg1, %c4_i32 : i32
    %c0_6 = arith.constant 0 : index
    %c0_7 = arith.constant 0 : index
    %7 = vector.load %arg9[%c0_6, %c0_7] : memref<8x128xf32, #tpu.memory_space<vmem>>, vector<8x128xf32>
    %c0_8 = arith.constant 0 : index
    %c0_9 = arith.constant 0 : index
    %8 = vector.load %arg10[%c0_8, %c0_9] : memref<8x128xf32, #tpu.memory_space<vmem>>, vector<8x128xf32>
    %c0_10 = arith.constant 0 : index
    %c0_11 = arith.constant 0 : index
    %9 = vector.load %arg11[%c0_10, %c0_11] : memref<8x1xf32, #tpu.memory_space<vmem>>, vector<8x1xf32>
    %c0_12 = arith.constant 0 : index
    %c0_13 = arith.constant 0 : index
    %10 = vector.load %arg12[%c0_12, %c0_13] : memref<8x1xf32, #tpu.memory_space<vmem>>, vector<8x1xf32>
    %c0_14 = arith.constant 0 : index
    %c0_15 = arith.constant 0 : index
    %11 = vector.load %arg13[%c0_14, %c0_15] : memref<8x128xf32, #tpu.memory_space<vmem>>, vector<8x128xf32>
    %c0_i32_16 = arith.constant 0 : i32
    %12 = arith.addi %6, %c0_i32_16 : i32
    %cst = arith.constant dense<0.000000e+00> : vector<8x640xf32>
    %13 = tpu.matmul %7, %3, %cst {dimension_numbers = #tpu.dot_dimension_numbers<[1], [0], [0], [1], [0, 0, 1, 1], [], []>} : vector<8x128xf32>, vector<128x640xf32>, vector<8x640xf32> -> vector<8x640xf32>
    %14 = vector.extract_strided_slice %13 {offsets = [0, 512], sizes = [8, 128], strides = [1, 1]} : vector<8x640xf32> to vector<8x128xf32>
    %15 = vector.broadcast %4 : vector<1x128xf32> to vector<8x128xf32>
    %16 = arith.addf %14, %15 : vector<8x128xf32>
    %17 = math.tanh %16 : vector<8x128xf32>
    %18 = vector.broadcast %5 : vector<1x128xf32> to vector<8x128xf32>
    %19 = arith.mulf %17, %18 : vector<8x128xf32>
    %cst_17 = arith.constant dense<0.000000e+00> : vector<8xf32>
    %20 = vector.multi_reduction <add>, %19, %cst_17 [1] : vector<8x128xf32> to vector<8xf32>
    %21 = vector.shape_cast %20 : vector<8xf32> to vector<8x1xf32>
    %c1_i32 = arith.constant 1 : i32
    %22 = arith.cmpi sge, %12, %c1_i32 : i32
    %cst_18 = arith.constant -9.99999968E+37 : f32
    %23 = vector.broadcast %cst_18 : f32 to vector<8x1xf32>
    %24 = arith.select %22, %21, %23 : vector<8x1xf32>
    %25 = arith.maximumf %9, %24 : vector<8x1xf32>
    %26 = arith.subf %9, %25 : vector<8x1xf32>
    %27 = math.exp %26 : vector<8x1xf32>
    %28 = arith.subf %24, %25 : vector<8x1xf32>
    %29 = math.exp %28 : vector<8x1xf32>
    %30 = arith.mulf %27, %10 : vector<8x1xf32>
    %31 = arith.addf %30, %29 : vector<8x1xf32>
    %32 = vector.broadcast %27 : vector<8x1xf32> to vector<8x128xf32>
    %33 = arith.mulf %32, %11 : vector<8x128xf32>
    %34 = vector.broadcast %29 : vector<8x1xf32> to vector<8x128xf32>
    %35 = arith.mulf %34, %7 : vector<8x128xf32>
    %36 = arith.addf %33, %35 : vector<8x128xf32>
    %37 = arith.index_cast %c0_i32_16 : i32 to index
    %c0_19 = arith.constant 0 : index
    %c0_20 = arith.constant 0 : index
    %38 = vector.load %arg2[%37, %c0_19, %c0_20] : memref<4x8x512xf32, #tpu.memory_space<vmem>>, vector<1x8x512xf32>
    %39 = vector.shape_cast %38 : vector<1x8x512xf32> to vector<8x512xf32>
    %40 = vector.extract_strided_slice %13 {offsets = [0, 0], sizes = [8, 512], strides = [1, 1]} : vector<8x640xf32> to vector<8x512xf32>
    %41 = arith.addf %39, %40 : vector<8x512xf32>
    %42 = vector.extract_strided_slice %41 {offsets = [0, 0], sizes = [8, 128], strides = [1, 1]} : vector<8x512xf32> to vector<8x128xf32>
    %43 = arith.negf %42 : vector<8x128xf32>
    %44 = math.exp %43 : vector<8x128xf32>
    %cst_21 = arith.constant 1.000000e+00 : f32
    %45 = vector.broadcast %cst_21 : f32 to vector<8x128xf32>
    %46 = arith.addf %45, %44 : vector<8x128xf32>
    %47 = arith.divf %45, %46 : vector<8x128xf32>
    %48 = vector.extract_strided_slice %41 {offsets = [0, 128], sizes = [8, 128], strides = [1, 1]} : vector<8x512xf32> to vector<8x128xf32>
    %49 = arith.negf %48 : vector<8x128xf32>
    %50 = math.exp %49 : vector<8x128xf32>
    %cst_22 = arith.constant 1.000000e+00 : f32
    %51 = vector.broadcast %cst_22 : f32 to vector<8x128xf32>
    %52 = arith.addf %51, %50 : vector<8x128xf32>
    %53 = arith.divf %51, %52 : vector<8x128xf32>
    %54 = vector.extract_strided_slice %41 {offsets = [0, 256], sizes = [8, 128], strides = [1, 1]} : vector<8x512xf32> to vector<8x128xf32>
    %55 = math.tanh %54 : vector<8x128xf32>
    %56 = vector.extract_strided_slice %41 {offsets = [0, 384], sizes = [8, 128], strides = [1, 1]} : vector<8x512xf32> to vector<8x128xf32>
    %57 = arith.negf %56 : vector<8x128xf32>
    %58 = math.exp %57 : vector<8x128xf32>
    %cst_23 = arith.constant 1.000000e+00 : f32
    %59 = vector.broadcast %cst_23 : f32 to vector<8x128xf32>
    %60 = arith.addf %59, %58 : vector<8x128xf32>
    %61 = arith.divf %59, %60 : vector<8x128xf32>
    %62 = arith.mulf %53, %8 : vector<8x128xf32>
    %63 = arith.mulf %47, %55 : vector<8x128xf32>
    %64 = arith.addf %62, %63 : vector<8x128xf32>
    %65 = math.tanh %64 : vector<8x128xf32>
    %66 = arith.mulf %61, %65 : vector<8x128xf32>
    %c1_i32_24 = arith.constant 1 : i32
    %67 = arith.addi %6, %c1_i32_24 : i32
    %cst_25 = arith.constant dense<0.000000e+00> : vector<8x640xf32>
    %68 = tpu.matmul %66, %3, %cst_25 {dimension_numbers = #tpu.dot_dimension_numbers<[1], [0], [0], [1], [0, 0, 1, 1], [], []>} : vector<8x128xf32>, vector<128x640xf32>, vector<8x640xf32> -> vector<8x640xf32>
    %69 = vector.extract_strided_slice %68 {offsets = [0, 512], sizes = [8, 128], strides = [1, 1]} : vector<8x640xf32> to vector<8x128xf32>
    %70 = vector.broadcast %4 : vector<1x128xf32> to vector<8x128xf32>
    %71 = arith.addf %69, %70 : vector<8x128xf32>
    %72 = math.tanh %71 : vector<8x128xf32>
    %73 = vector.broadcast %5 : vector<1x128xf32> to vector<8x128xf32>
    %74 = arith.mulf %72, %73 : vector<8x128xf32>
    %cst_26 = arith.constant dense<0.000000e+00> : vector<8xf32>
    %75 = vector.multi_reduction <add>, %74, %cst_26 [1] : vector<8x128xf32> to vector<8xf32>
    %76 = vector.shape_cast %75 : vector<8xf32> to vector<8x1xf32>
    %c1_i32_27 = arith.constant 1 : i32
    %77 = arith.cmpi sge, %67, %c1_i32_27 : i32
    %cst_28 = arith.constant -9.99999968E+37 : f32
    %78 = vector.broadcast %cst_28 : f32 to vector<8x1xf32>
    %79 = arith.select %77, %76, %78 : vector<8x1xf32>
    %80 = arith.maximumf %25, %79 : vector<8x1xf32>
    %81 = arith.subf %25, %80 : vector<8x1xf32>
    %82 = math.exp %81 : vector<8x1xf32>
    %83 = arith.subf %79, %80 : vector<8x1xf32>
    %84 = math.exp %83 : vector<8x1xf32>
    %85 = arith.mulf %82, %31 : vector<8x1xf32>
    %86 = arith.addf %85, %84 : vector<8x1xf32>
    %87 = vector.broadcast %82 : vector<8x1xf32> to vector<8x128xf32>
    %88 = arith.mulf %87, %36 : vector<8x128xf32>
    %89 = vector.broadcast %84 : vector<8x1xf32> to vector<8x128xf32>
    %90 = arith.mulf %89, %66 : vector<8x128xf32>
    %91 = arith.addf %88, %90 : vector<8x128xf32>
    %92 = arith.index_cast %c1_i32_24 : i32 to index
    %c0_29 = arith.constant 0 : index
    %c0_30 = arith.constant 0 : index
    %93 = vector.load %arg2[%92, %c0_29, %c0_30] : memref<4x8x512xf32, #tpu.memory_space<vmem>>, vector<1x8x512xf32>
    %94 = vector.shape_cast %93 : vector<1x8x512xf32> to vector<8x512xf32>
    %95 = vector.extract_strided_slice %68 {offsets = [0, 0], sizes = [8, 512], strides = [1, 1]} : vector<8x640xf32> to vector<8x512xf32>
    %96 = arith.addf %94, %95 : vector<8x512xf32>
    %97 = vector.extract_strided_slice %96 {offsets = [0, 0], sizes = [8, 128], strides = [1, 1]} : vector<8x512xf32> to vector<8x128xf32>
    %98 = arith.negf %97 : vector<8x128xf32>
    %99 = math.exp %98 : vector<8x128xf32>
    %cst_31 = arith.constant 1.000000e+00 : f32
    %100 = vector.broadcast %cst_31 : f32 to vector<8x128xf32>
    %101 = arith.addf %100, %99 : vector<8x128xf32>
    %102 = arith.divf %100, %101 : vector<8x128xf32>
    %103 = vector.extract_strided_slice %96 {offsets = [0, 128], sizes = [8, 128], strides = [1, 1]} : vector<8x512xf32> to vector<8x128xf32>
    %104 = arith.negf %103 : vector<8x128xf32>
    %105 = math.exp %104 : vector<8x128xf32>
    %cst_32 = arith.constant 1.000000e+00 : f32
    %106 = vector.broadcast %cst_32 : f32 to vector<8x128xf32>
    %107 = arith.addf %106, %105 : vector<8x128xf32>
    %108 = arith.divf %106, %107 : vector<8x128xf32>
    %109 = vector.extract_strided_slice %96 {offsets = [0, 256], sizes = [8, 128], strides = [1, 1]} : vector<8x512xf32> to vector<8x128xf32>
    %110 = math.tanh %109 : vector<8x128xf32>
    %111 = vector.extract_strided_slice %96 {offsets = [0, 384], sizes = [8, 128], strides = [1, 1]} : vector<8x512xf32> to vector<8x128xf32>
    %112 = arith.negf %111 : vector<8x128xf32>
    %113 = math.exp %112 : vector<8x128xf32>
    %cst_33 = arith.constant 1.000000e+00 : f32
    %114 = vector.broadcast %cst_33 : f32 to vector<8x128xf32>
    %115 = arith.addf %114, %113 : vector<8x128xf32>
    %116 = arith.divf %114, %115 : vector<8x128xf32>
    %117 = arith.mulf %108, %64 : vector<8x128xf32>
    %118 = arith.mulf %102, %110 : vector<8x128xf32>
    %119 = arith.addf %117, %118 : vector<8x128xf32>
    %120 = math.tanh %119 : vector<8x128xf32>
    %121 = arith.mulf %116, %120 : vector<8x128xf32>
    %c2_i32 = arith.constant 2 : i32
    %122 = arith.addi %6, %c2_i32 : i32
    %cst_34 = arith.constant dense<0.000000e+00> : vector<8x640xf32>
    %123 = tpu.matmul %121, %3, %cst_34 {dimension_numbers = #tpu.dot_dimension_numbers<[1], [0], [0], [1], [0, 0, 1, 1], [], []>} : vector<8x128xf32>, vector<128x640xf32>, vector<8x640xf32> -> vector<8x640xf32>
    %124 = vector.extract_strided_slice %123 {offsets = [0, 512], sizes = [8, 128], strides = [1, 1]} : vector<8x640xf32> to vector<8x128xf32>
    %125 = vector.broadcast %4 : vector<1x128xf32> to vector<8x128xf32>
    %126 = arith.addf %124, %125 : vector<8x128xf32>
    %127 = math.tanh %126 : vector<8x128xf32>
    %128 = vector.broadcast %5 : vector<1x128xf32> to vector<8x128xf32>
    %129 = arith.mulf %127, %128 : vector<8x128xf32>
    %cst_35 = arith.constant dense<0.000000e+00> : vector<8xf32>
    %130 = vector.multi_reduction <add>, %129, %cst_35 [1] : vector<8x128xf32> to vector<8xf32>
    %131 = vector.shape_cast %130 : vector<8xf32> to vector<8x1xf32>
    %c1_i32_36 = arith.constant 1 : i32
    %132 = arith.cmpi sge, %122, %c1_i32_36 : i32
    %cst_37 = arith.constant -9.99999968E+37 : f32
    %133 = vector.broadcast %cst_37 : f32 to vector<8x1xf32>
    %134 = arith.select %132, %131, %133 : vector<8x1xf32>
    %135 = arith.maximumf %80, %134 : vector<8x1xf32>
    %136 = arith.subf %80, %135 : vector<8x1xf32>
    %137 = math.exp %136 : vector<8x1xf32>
    %138 = arith.subf %134, %135 : vector<8x1xf32>
    %139 = math.exp %138 : vector<8x1xf32>
    %140 = arith.mulf %137, %86 : vector<8x1xf32>
    %141 = arith.addf %140, %139 : vector<8x1xf32>
    %142 = vector.broadcast %137 : vector<8x1xf32> to vector<8x128xf32>
    %143 = arith.mulf %142, %91 : vector<8x128xf32>
    %144 = vector.broadcast %139 : vector<8x1xf32> to vector<8x128xf32>
    %145 = arith.mulf %144, %121 : vector<8x128xf32>
    %146 = arith.addf %143, %145 : vector<8x128xf32>
    %147 = arith.index_cast %c2_i32 : i32 to index
    %c0_38 = arith.constant 0 : index
    %c0_39 = arith.constant 0 : index
    %148 = vector.load %arg2[%147, %c0_38, %c0_39] : memref<4x8x512xf32, #tpu.memory_space<vmem>>, vector<1x8x512xf32>
    %149 = vector.shape_cast %148 : vector<1x8x512xf32> to vector<8x512xf32>
    %150 = vector.extract_strided_slice %123 {offsets = [0, 0], sizes = [8, 512], strides = [1, 1]} : vector<8x640xf32> to vector<8x512xf32>
    %151 = arith.addf %149, %150 : vector<8x512xf32>
    %152 = vector.extract_strided_slice %151 {offsets = [0, 0], sizes = [8, 128], strides = [1, 1]} : vector<8x512xf32> to vector<8x128xf32>
    %153 = arith.negf %152 : vector<8x128xf32>
    %154 = math.exp %153 : vector<8x128xf32>
    %cst_40 = arith.constant 1.000000e+00 : f32
    %155 = vector.broadcast %cst_40 : f32 to vector<8x128xf32>
    %156 = arith.addf %155, %154 : vector<8x128xf32>
    %157 = arith.divf %155, %156 : vector<8x128xf32>
    %158 = vector.extract_strided_slice %151 {offsets = [0, 128], sizes = [8, 128], strides = [1, 1]} : vector<8x512xf32> to vector<8x128xf32>
    %159 = arith.negf %158 : vector<8x128xf32>
    %160 = math.exp %159 : vector<8x128xf32>
    %cst_41 = arith.constant 1.000000e+00 : f32
    %161 = vector.broadcast %cst_41 : f32 to vector<8x128xf32>
    %162 = arith.addf %161, %160 : vector<8x128xf32>
    %163 = arith.divf %161, %162 : vector<8x128xf32>
    %164 = vector.extract_strided_slice %151 {offsets = [0, 256], sizes = [8, 128], strides = [1, 1]} : vector<8x512xf32> to vector<8x128xf32>
    %165 = math.tanh %164 : vector<8x128xf32>
    %166 = vector.extract_strided_slice %151 {offsets = [0, 384], sizes = [8, 128], strides = [1, 1]} : vector<8x512xf32> to vector<8x128xf32>
    %167 = arith.negf %166 : vector<8x128xf32>
    %168 = math.exp %167 : vector<8x128xf32>
    %cst_42 = arith.constant 1.000000e+00 : f32
    %169 = vector.broadcast %cst_42 : f32 to vector<8x128xf32>
    %170 = arith.addf %169, %168 : vector<8x128xf32>
    %171 = arith.divf %169, %170 : vector<8x128xf32>
    %172 = arith.mulf %163, %119 : vector<8x128xf32>
    %173 = arith.mulf %157, %165 : vector<8x128xf32>
    %174 = arith.addf %172, %173 : vector<8x128xf32>
    %175 = math.tanh %174 : vector<8x128xf32>
    %176 = arith.mulf %171, %175 : vector<8x128xf32>
    %c3_i32 = arith.constant 3 : i32
    %177 = arith.addi %6, %c3_i32 : i32
    %cst_43 = arith.constant dense<0.000000e+00> : vector<8x640xf32>
    %178 = tpu.matmul %176, %3, %cst_43 {dimension_numbers = #tpu.dot_dimension_numbers<[1], [0], [0], [1], [0, 0, 1, 1], [], []>} : vector<8x128xf32>, vector<128x640xf32>, vector<8x640xf32> -> vector<8x640xf32>
    %179 = vector.extract_strided_slice %178 {offsets = [0, 512], sizes = [8, 128], strides = [1, 1]} : vector<8x640xf32> to vector<8x128xf32>
    %180 = vector.broadcast %4 : vector<1x128xf32> to vector<8x128xf32>
    %181 = arith.addf %179, %180 : vector<8x128xf32>
    %182 = math.tanh %181 : vector<8x128xf32>
    %183 = vector.broadcast %5 : vector<1x128xf32> to vector<8x128xf32>
    %184 = arith.mulf %182, %183 : vector<8x128xf32>
    %cst_44 = arith.constant dense<0.000000e+00> : vector<8xf32>
    %185 = vector.multi_reduction <add>, %184, %cst_44 [1] : vector<8x128xf32> to vector<8xf32>
    %186 = vector.shape_cast %185 : vector<8xf32> to vector<8x1xf32>
    %c1_i32_45 = arith.constant 1 : i32
    %187 = arith.cmpi sge, %177, %c1_i32_45 : i32
    %cst_46 = arith.constant -9.99999968E+37 : f32
    %188 = vector.broadcast %cst_46 : f32 to vector<8x1xf32>
    %189 = arith.select %187, %186, %188 : vector<8x1xf32>
    %190 = arith.maximumf %135, %189 : vector<8x1xf32>
    %191 = arith.subf %135, %190 : vector<8x1xf32>
    %192 = math.exp %191 : vector<8x1xf32>
    %193 = arith.subf %189, %190 : vector<8x1xf32>
    %194 = math.exp %193 : vector<8x1xf32>
    %195 = arith.mulf %192, %141 : vector<8x1xf32>
    %196 = arith.addf %195, %194 : vector<8x1xf32>
    %197 = vector.broadcast %192 : vector<8x1xf32> to vector<8x128xf32>
    %198 = arith.mulf %197, %146 : vector<8x128xf32>
    %199 = vector.broadcast %194 : vector<8x1xf32> to vector<8x128xf32>
    %200 = arith.mulf %199, %176 : vector<8x128xf32>
    %201 = arith.addf %198, %200 : vector<8x128xf32>
    %202 = arith.index_cast %c3_i32 : i32 to index
    %c0_47 = arith.constant 0 : index
    %c0_48 = arith.constant 0 : index
    %203 = vector.load %arg2[%202, %c0_47, %c0_48] : memref<4x8x512xf32, #tpu.memory_space<vmem>>, vector<1x8x512xf32>
    %204 = vector.shape_cast %203 : vector<1x8x512xf32> to vector<8x512xf32>
    %205 = vector.extract_strided_slice %178 {offsets = [0, 0], sizes = [8, 512], strides = [1, 1]} : vector<8x640xf32> to vector<8x512xf32>
    %206 = arith.addf %204, %205 : vector<8x512xf32>
    %207 = vector.extract_strided_slice %206 {offsets = [0, 0], sizes = [8, 128], strides = [1, 1]} : vector<8x512xf32> to vector<8x128xf32>
    %208 = arith.negf %207 : vector<8x128xf32>
    %209 = math.exp %208 : vector<8x128xf32>
    %cst_49 = arith.constant 1.000000e+00 : f32
    %210 = vector.broadcast %cst_49 : f32 to vector<8x128xf32>
    %211 = arith.addf %210, %209 : vector<8x128xf32>
    %212 = arith.divf %210, %211 : vector<8x128xf32>
    %213 = vector.extract_strided_slice %206 {offsets = [0, 128], sizes = [8, 128], strides = [1, 1]} : vector<8x512xf32> to vector<8x128xf32>
    %214 = arith.negf %213 : vector<8x128xf32>
    %215 = math.exp %214 : vector<8x128xf32>
    %cst_50 = arith.constant 1.000000e+00 : f32
    %216 = vector.broadcast %cst_50 : f32 to vector<8x128xf32>
    %217 = arith.addf %216, %215 : vector<8x128xf32>
    %218 = arith.divf %216, %217 : vector<8x128xf32>
    %219 = vector.extract_strided_slice %206 {offsets = [0, 256], sizes = [8, 128], strides = [1, 1]} : vector<8x512xf32> to vector<8x128xf32>
    %220 = math.tanh %219 : vector<8x128xf32>
    %221 = vector.extract_strided_slice %206 {offsets = [0, 384], sizes = [8, 128], strides = [1, 1]} : vector<8x512xf32> to vector<8x128xf32>
    %222 = arith.negf %221 : vector<8x128xf32>
    %223 = math.exp %222 : vector<8x128xf32>
    %cst_51 = arith.constant 1.000000e+00 : f32
    %224 = vector.broadcast %cst_51 : f32 to vector<8x128xf32>
    %225 = arith.addf %224, %223 : vector<8x128xf32>
    %226 = arith.divf %224, %225 : vector<8x128xf32>
    %227 = arith.mulf %218, %174 : vector<8x128xf32>
    %228 = arith.mulf %212, %220 : vector<8x128xf32>
    %229 = arith.addf %227, %228 : vector<8x128xf32>
    %230 = math.tanh %229 : vector<8x128xf32>
    %231 = arith.mulf %226, %230 : vector<8x128xf32>
    %c4_i32_52 = arith.constant 4 : i32
    %c0_53 = arith.constant 0 : index
    %c0_54 = arith.constant 0 : index
    %232 = vector.load %arg9[%c0_53, %c0_54] : memref<8x128xf32, #tpu.memory_space<vmem>>, vector<8x128xf32>
    tpu.vector_store %arg9[%c0_53, %c0_54], %231 {strides = array<i32>} : memref<8x128xf32, #tpu.memory_space<vmem>>, vector<8x128xf32>,
    %c0_55 = arith.constant 0 : index
    %c0_56 = arith.constant 0 : index
    %233 = vector.load %arg10[%c0_55, %c0_56] : memref<8x128xf32, #tpu.memory_space<vmem>>, vector<8x128xf32>
    tpu.vector_store %arg10[%c0_55, %c0_56], %229 {strides = array<i32>} : memref<8x128xf32, #tpu.memory_space<vmem>>, vector<8x128xf32>,
    %c0_57 = arith.constant 0 : index
    %c0_58 = arith.constant 0 : index
    %234 = vector.load %arg11[%c0_57, %c0_58] : memref<8x1xf32, #tpu.memory_space<vmem>>, vector<8x1xf32>
    tpu.vector_store %arg11[%c0_57, %c0_58], %190 {strides = array<i32>} : memref<8x1xf32, #tpu.memory_space<vmem>>, vector<8x1xf32>,
    %c0_59 = arith.constant 0 : index
    %c0_60 = arith.constant 0 : index
    %235 = vector.load %arg12[%c0_59, %c0_60] : memref<8x1xf32, #tpu.memory_space<vmem>>, vector<8x1xf32>
    tpu.vector_store %arg12[%c0_59, %c0_60], %196 {strides = array<i32>} : memref<8x1xf32, #tpu.memory_space<vmem>>, vector<8x1xf32>,
    %c0_61 = arith.constant 0 : index
    %c0_62 = arith.constant 0 : index
    %236 = vector.load %arg13[%c0_61, %c0_62] : memref<8x128xf32, #tpu.memory_space<vmem>>, vector<8x128xf32>
    tpu.vector_store %arg13[%c0_61, %c0_62], %201 {strides = array<i32>} : memref<8x128xf32, #tpu.memory_space<vmem>>, vector<8x128xf32>,
    %c1_i32_63 = arith.constant 1 : i32
    %237 = arith.cmpi eq, %arg1, %c1_i32_63 : i32
    %238 = arith.extui %237 : i1 to i32
    %c0_i32_64 = arith.constant 0 : i32
    %239 = arith.cmpi ne, %238, %c0_i32_64 : i32
    scf.if %239 {
      %240 = vector.extract_strided_slice %3 {offsets = [0, 512], sizes = [128, 128], strides = [1, 1]} : vector<128x640xf32> to vector<128x128xf32>
      %cst_65 = arith.constant dense<0.000000e+00> : vector<8x128xf32>
      %241 = tpu.matmul %231, %240, %cst_65 {dimension_numbers = #tpu.dot_dimension_numbers<[1], [0], [0], [1], [0, 0, 1, 1], [], []>} : vector<8x128xf32>, vector<128x128xf32>, vector<8x128xf32> -> vector<8x128xf32>
      %242 = vector.broadcast %4 : vector<1x128xf32> to vector<8x128xf32>
      %243 = arith.addf %241, %242 : vector<8x128xf32>
      %244 = math.tanh %243 : vector<8x128xf32>
      %245 = vector.broadcast %5 : vector<1x128xf32> to vector<8x128xf32>
      %246 = arith.mulf %244, %245 : vector<8x128xf32>
      %cst_66 = arith.constant dense<0.000000e+00> : vector<8xf32>
      %247 = vector.multi_reduction <add>, %246, %cst_66 [1] : vector<8x128xf32> to vector<8xf32>
      %248 = vector.shape_cast %247 : vector<8xf32> to vector<8x1xf32>
      %249 = arith.maximumf %190, %248 : vector<8x1xf32>
      %250 = arith.subf %190, %249 : vector<8x1xf32>
      %251 = math.exp %250 : vector<8x1xf32>
      %252 = arith.subf %248, %249 : vector<8x1xf32>
      %253 = math.exp %252 : vector<8x1xf32>
      %254 = arith.mulf %251, %196 : vector<8x1xf32>
      %255 = arith.addf %254, %253 : vector<8x1xf32>
      %256 = vector.broadcast %251 : vector<8x1xf32> to vector<8x128xf32>
      %257 = arith.mulf %256, %201 : vector<8x128xf32>
      %258 = vector.broadcast %253 : vector<8x1xf32> to vector<8x128xf32>
      %259 = arith.mulf %258, %231 : vector<8x128xf32>
      %260 = arith.addf %257, %259 : vector<8x128xf32>
      %261 = vector.broadcast %255 : vector<8x1xf32> to vector<8x128xf32>
      %262 = arith.divf %260, %261 : vector<8x128xf32>
      %c0_67 = arith.constant 0 : index
      %c0_68 = arith.constant 0 : index
      %263 = vector.load %arg6[%c0_67, %c0_68] : memref<1x128xf32, #tpu.memory_space<vmem>>, vector<1x128xf32>
      %264 = vector.broadcast %263 : vector<1x128xf32> to vector<8x128xf32>
      %265 = arith.mulf %262, %264 : vector<8x128xf32>
      %cst_69 = arith.constant dense<0.000000e+00> : vector<8xf32>
      %266 = vector.multi_reduction <add>, %265, %cst_69 [1] : vector<8x128xf32> to vector<8xf32>
      %267 = vector.shape_cast %266 : vector<8xf32> to vector<8x1xf32>
      %c0_70 = arith.constant 0 : index
      %c0_71 = arith.constant 0 : index
      %268 = vector.load %arg7[%c0_70, %c0_71] : memref<1x1xf32, #tpu.memory_space<vmem>>, vector<1x1xf32>
      %269 = vector.broadcast %268 : vector<1x1xf32> to vector<8x1xf32>
      %270 = arith.addf %267, %269 : vector<8x1xf32>
      %c0_72 = arith.constant 0 : index
      %c0_73 = arith.constant 0 : index
      %271 = vector.load %arg8[%c0_72, %c0_73] : memref<8x1xf32, #tpu.memory_space<vmem>>, vector<8x1xf32>
      tpu.vector_store %arg8[%c0_72, %c0_73], %270 {strides = array<i32>} : memref<8x1xf32, #tpu.memory_space<vmem>>, vector<8x1xf32>,
    } else {
    }
    return
  }
  func.func @transform_0(%arg0: i32, %arg1: i32) -> (i32, i32, i32) {
    %c0_i32 = arith.constant 0 : i32
    %c0_i32_0 = arith.constant 0 : i32
    return %arg1, %arg0, %c0_i32 : i32, i32, i32
  }
  func.func @transform_1(%arg0: i32, %arg1: i32) -> (i32, i32) {
    %c0_i32 = arith.constant 0 : i32
    %c0_i32_0 = arith.constant 0 : i32
    %c0_i32_1 = arith.constant 0 : i32
    return %c0_i32, %c0_i32_0 : i32, i32
  }
  func.func @transform_2(%arg0: i32, %arg1: i32) -> (i32, i32) {
    %c0_i32 = arith.constant 0 : i32
    %c0_i32_0 = arith.constant 0 : i32
    %c0_i32_1 = arith.constant 0 : i32
    return %c0_i32, %c0_i32_0 : i32, i32
  }
  func.func @transform_3(%arg0: i32, %arg1: i32) -> (i32, i32) {
    %c0_i32 = arith.constant 0 : i32
    %c0_i32_0 = arith.constant 0 : i32
    %c0_i32_1 = arith.constant 0 : i32
    return %c0_i32, %c0_i32_0 : i32, i32
  }
  func.func @transform_4(%arg0: i32, %arg1: i32) -> (i32, i32) {
    %c0_i32 = arith.constant 0 : i32
    %c0_i32_0 = arith.constant 0 : i32
    %c0_i32_1 = arith.constant 0 : i32
    return %c0_i32, %c0_i32_0 : i32, i32
  }
  func.func @transform_5(%arg0: i32, %arg1: i32) -> (i32, i32) {
    %c0_i32 = arith.constant 0 : i32
    %c0_i32_0 = arith.constant 0 : i32
    %c0_i32_1 = arith.constant 0 : i32
    return %c0_i32, %c0_i32_0 : i32, i32
  }
  func.func @transform_6(%arg0: i32, %arg1: i32) -> (i32, i32) {
    %c0_i32 = arith.constant 0 : i32
    %c0_i32_0 = arith.constant 0 : i32
    return %arg0, %c0_i32 : i32, i32
  }
}

</mosaic_0001>

<llo_original>
// kernel: tpu_custom_call.1
$region0: #{tpu_custom_call.1}
  #allocation0 [shape = 'u32[]', space=smem, size = 0x4, offset = 0x4, fixed_abs, tag = 'smem constant byte address 0x4 - core index']
  #allocation1 [shape = 'u32[144,128]{1,0:T(1,128)}', space=vmem, size = 0x12000, scoped, tag = 'internal scratch']
  #allocation2 [shape = 'f32[8,128]{1,0:T(8,128)}', space=vmem, size = 0x1000, scoped, tag = 'scratch operand']
  #allocation3 [shape = 'f32[8,128]{1,0:T(8,128)}', space=vmem, size = 0x1000, scoped, tag = 'scratch operand']
  #allocation4 [shape = 'f32[8,1]{1,0:T(8,128)}', space=vmem, size = 0x1000, scoped, tag = 'scratch operand']
  #allocation5 [shape = 'f32[8,1]{1,0:T(8,128)}', space=vmem, size = 0x1000, scoped, tag = 'scratch operand']
  #allocation6 [shape = 'f32[8,128]{1,0:T(8,128)}', space=vmem, size = 0x1000, scoped, tag = 'scratch operand']
  #allocation7 [shape = 'f32[1,1]{1,0:T(1,128)S(1)}', space=vmem, size = 0x200, scoped, tag = 'scoped memory for tpu_custom_call.1']
  %s0 = inlined_call_operand.hbm [shape: f32[8,8,512], index: 0, kind: input, shape index: {}]
  %s1 = inlined_call_operand.hbm [shape: f32[128,640], index: 1, kind: input, shape index: {}]
  %s2 = inlined_call_operand.hbm [shape: f32[1,128], index: 2, kind: input, shape index: {}]
  %s3 = inlined_call_operand.hbm [shape: f32[1,128], index: 3, kind: input, shape index: {}]
  %s4 = inlined_call_operand.hbm [shape: f32[1,128], index: 4, kind: input, shape index: {}]
  %s5 = inlined_call_operand.<no memory space> [shape: f32[1,1], index: 5, kind: input, shape index: {}]
  %s6 = inlined_call_operand.hbm [shape: f32[8,1], index: 6, kind: output, shape index: {}]
  %s7 = sld [smem:[#allocation0]]
  $region85: #{tpu_custom_call.1} parent=0
    _
  %s9 = ssub.s32 1, %s7
  %s10 = scalar_select 0, %s9, %s7
  %v11 = vstv %s5
  %12 = vst [vmem:[#allocation7] sm:$0x1] %v11
  $region1: #{tpu_custom_call.1} parent=0
    #allocation8 [shape = 'u8[131072]{0}', space=vmem, size = 0x20000, scoped, tag = 'input window, operand 0']
    #allocation9 [shape = 's32[2]{0}', space=sflag, size = 0x8, scoped, tag = 'scoped memory for tpu_custom_call.1']
    #allocation10 [shape = 's32[2]{0}', space=sflag, size = 0x8, scoped, tag = 'scoped memory for tpu_custom_call.1']
    #allocation11 [shape = 'u8[327680]{0}', space=vmem, size = 0x50000, scoped, tag = 'input window, operand 1, single buffered']
    #allocation12 [shape = 's32[1]{0}', space=sflag, size = 0x4, scoped, tag = 'scoped memory for tpu_custom_call.1']
    #allocation13 [shape = 'u8[512]{0}', space=vmem, size = 0x400, scoped, tag = 'input window, operand 2, single buffered']
    #allocation14 [shape = 'u8[512]{0}', space=vmem, size = 0x400, scoped, tag = 'input window, operand 3, single buffered']
    #allocation15 [shape = 's32[1]{0}', space=sflag, size = 0x4, scoped, tag = 'scoped memory for tpu_custom_call.1']
    #allocation16 [shape = 'u8[512]{0}', space=vmem, size = 0x400, scoped, tag = 'input window, operand 4, single buffered']
    #allocation17 [shape = 'u8[4096]{0}', space=vmem, size = 0x1000, scoped, tag = 'output window, operand 0, single buffered']
    %13 = vsyncpa [#allocation9], 0
    %s14 = scalar_lea.sflag [#allocation9], 1
    %15 = vsyncpa %s14, 0
    %16 = vsyncpa [#allocation12], 0
    %17 = vsyncpa [#allocation15], 0
    %18 = vsyncpa [#allocation10], 0
    loop: start=0, step=1, limit=4
    $region2: #{tpu_custom_call.1} parent=1 // loop_pre_header
      _
    $region3: #{tpu_custom_call.1} parent=1 // loop_header
      %s20 = sphi 0, %s24
      %p21 = scmp.ge.s32.totalorder %s20, 4
      %s27 = sphi 0, %s39
      %s28 = sphi 0, %s35
      %s29 = sphi 0, %s27
      %s30 = sphi 0, %s28
      %s31 = sphi 0, %s29
      %s32 = sphi 0, %s30
      %s44 = sphi 0, %s46
      %s47 = sphi 0, %s44
      %s48 = sphi 0, %s47
      %s64 = sphi 0, %s48
      %s68 = sphi 0, %s68
      %s70 = sphi 0, %s68
      %s71 = sphi 0, %s70
      %s85 = sphi 0, %s71
      %s89 = sphi 0, %s89
      %s91 = sphi 0, %s89
      %s92 = sphi 0, %s91
      %s106 = sphi 0, %s92
      %s110 = sphi 0, %s110
      %s112 = sphi 0, %s110
      %s113 = sphi 0, %s112
      %s127 = sphi 0, %s113
      %s131 = sphi 0, %s131
      %s133 = sphi 0, %s131
      %s134 = sphi 0, %s133
      %s148 = sphi 0, %s134
      %s152 = sphi 0, %s152
      %s154 = sphi 0, %s152
      %s155 = sphi 0, %s154
      %s169 = sphi 0, %s155
      %s175 = sphi 0, %s177
      %s178 = sphi 0, %s175
      %s179 = sphi 0, %s178
      %s195 = sphi 0, %s179
    $region4: #{tpu_custom_call.1} parent=1 // loop_header_branch
      %23 = sbr.rel (%p21) target = $region8
    $region5: #{tpu_custom_call.1} parent=1 // loop_body
      %s25 = ssub.s32 %s20, 1
      %s26 = ssub.s32 %s20, 2
      %s33 = sadd.s32 1, %s28
      %p34 = scmp.ge.s32.totalorder %s33, 2
      %s35 = scalar_select %p34, 0, %s33
      %s36 = sadd.s32 1, %s27
      %s37 = scalar_select %p34, %s36, %s27
      %p38 = scmp.ge.s32.totalorder %s37, 1
      %s39 = scalar_select %p38, 0, %s37
      %s40 = ssub.s32 %s28, %s35
      %s41 = ssub.s32 %s27, %s39
      %s42 = sor.u32 %s40, %s41
      %p43 = scmp.eq.s32.totalorder %s42, 0
      %s45 = sadd.s32 %s44, 1
      %s46 = scalar_select %p43, %s44, %s45
      %p49 = pneg %p43
      %p50 = scmp.eq.s32.totalorder %s20, 1
      %p51 = por %p49, %p50
      %p52 = scmp.ne.s32.totalorder %s44, %s47
      %p53 = scmp.eq.s32.totalorder %s20, 0
      %p54 = por %p52, %p53
      %p55 = scmp.ne.s32.totalorder %s44, %s47
      %p56 = scmp.eq.s32.totalorder %s25, 1
      %p57 = por %p55, %p56
      %p58 = scmp.ne.s32.totalorder %s47, %s48
      %p59 = scmp.eq.s32.totalorder %s25, 0
      %p60 = por %p58, %p59
      %p61 = scmp.ne.s32.totalorder %s47, %s48
      %p62 = scmp.eq.s32.totalorder %s26, 1
      %p63 = por %p61, %p62
      %p65 = scmp.ne.s32.totalorder %s48, %s64
      %p66 = scmp.eq.s32.totalorder %s26, 0
      %p67 = por %p65, %p66
      %s69 = sadd.s32 %s68, 1
      %p72 = scmp.eq.s32.totalorder %s20, 1
      %p73 = scmp.ne.s32.totalorder %s68, %s70
      %p74 = scmp.eq.s32.totalorder %s20, 0
      %p75 = por %p73, %p74
      %p76 = scmp.ne.s32.totalorder %s68, %s70
      %p77 = scmp.eq.s32.totalorder %s25, 1
      %p78 = por %p76, %p77
      %p79 = scmp.ne.s32.totalorder %s70, %s71
      %p80 = scmp.eq.s32.totalorder %s25, 0
      %p81 = por %p79, %p80
      %p82 = scmp.ne.s32.totalorder %s70, %s71
      %p83 = scmp.eq.s32.totalorder %s26, 1
      %p84 = por %p82, %p83
      %p86 = scmp.ne.s32.totalorder %s71, %s85
      %p87 = scmp.eq.s32.totalorder %s26, 0
      %p88 = por %p86, %p87
      %s90 = sadd.s32 %s89, 1
      %p93 = scmp.eq.s32.totalorder %s20, 1
      %p94 = scmp.ne.s32.totalorder %s89, %s91
      %p95 = scmp.eq.s32.totalorder %s20, 0
      %p96 = por %p94, %p95
      %p97 = scmp.ne.s32.totalorder %s89, %s91
      %p98 = scmp.eq.s32.totalorder %s25, 1
      %p99 = por %p97, %p98
      %p100 = scmp.ne.s32.totalorder %s91, %s92
      %p101 = scmp.eq.s32.totalorder %s25, 0
      %p102 = por %p100, %p101
      %p103 = scmp.ne.s32.totalorder %s91, %s92
      %p104 = scmp.eq.s32.totalorder %s26, 1
      %p105 = por %p103, %p104
      %p107 = scmp.ne.s32.totalorder %s92, %s106
      %p108 = scmp.eq.s32.totalorder %s26, 0
      %p109 = por %p107, %p108
      %s111 = sadd.s32 %s110, 1
      %p114 = scmp.eq.s32.totalorder %s20, 1
      %p115 = scmp.ne.s32.totalorder %s110, %s112
      %p116 = scmp.eq.s32.totalorder %s20, 0
      %p117 = por %p115, %p116
      %p118 = scmp.ne.s32.totalorder %s110, %s112
      %p119 = scmp.eq.s32.totalorder %s25, 1
      %p120 = por %p118, %p119
      %p121 = scmp.ne.s32.totalorder %s112, %s113
      %p122 = scmp.eq.s32.totalorder %s25, 0
      %p123 = por %p121, %p122
      %p124 = scmp.ne.s32.totalorder %s112, %s113
      %p125 = scmp.eq.s32.totalorder %s26, 1
      %p126 = por %p124, %p125
      %p128 = scmp.ne.s32.totalorder %s113, %s127
      %p129 = scmp.eq.s32.totalorder %s26, 0
      %p130 = por %p128, %p129
      %s132 = sadd.s32 %s131, 1
      %p135 = scmp.eq.s32.totalorder %s20, 1
      %p136 = scmp.ne.s32.totalorder %s131, %s133
      %p137 = scmp.eq.s32.totalorder %s20, 0
      %p138 = por %p136, %p137
      %p139 = scmp.ne.s32.totalorder %s131, %s133
      %p140 = scmp.eq.s32.totalorder %s25, 1
      %p141 = por %p139, %p140
      %p142 = scmp.ne.s32.totalorder %s133, %s134
      %p143 = scmp.eq.s32.totalorder %s25, 0
      %p144 = por %p142, %p143
      %p145 = scmp.ne.s32.totalorder %s133, %s134
      %p146 = scmp.eq.s32.totalorder %s26, 1
      %p147 = por %p145, %p146
      %p149 = scmp.ne.s32.totalorder %s134, %s148
      %p150 = scmp.eq.s32.totalorder %s26, 0
      %p151 = por %p149, %p150
      %s153 = sadd.s32 %s152, 1
      %p156 = scmp.eq.s32.totalorder %s20, 1
      %p157 = scmp.ne.s32.totalorder %s152, %s154
      %p158 = scmp.eq.s32.totalorder %s20, 0
      %p159 = por %p157, %p158
      %p160 = scmp.ne.s32.totalorder %s152, %s154
      %p161 = scmp.eq.s32.totalorder %s25, 1
      %p162 = por %p160, %p161
      %p163 = scmp.ne.s32.totalorder %s154, %s155
      %p164 = scmp.eq.s32.totalorder %s25, 0
      %p165 = por %p163, %p164
      %p166 = scmp.ne.s32.totalorder %s154, %s155
      %p167 = scmp.eq.s32.totalorder %s26, 1
      %p168 = por %p166, %p167
      %p170 = scmp.ne.s32.totalorder %s155, %s169
      %p171 = scmp.eq.s32.totalorder %s26, 0
      %p172 = por %p170, %p171
      %s173 = ssub.s32 %s27, %s39
      %p174 = scmp.eq.s32.totalorder %s173, 0
      %s176 = sadd.s32 %s175, 1
      %s177 = scalar_select %p174, %s175, %s176
      %p180 = pneg %p174
      %p181 = scmp.eq.s32.totalorder %s20, 1
      %p182 = por %p180, %p181
      %p183 = scmp.ne.s32.totalorder %s175, %s178
      %p184 = scmp.eq.s32.totalorder %s20, 0
      %p185 = por %p183, %p184
      %p186 = scmp.ne.s32.totalorder %s175, %s178
      %p187 = scmp.eq.s32.totalorder %s25, 1
      %p188 = por %p186, %p187
      %p189 = scmp.ne.s32.totalorder %s178, %s179
      %p190 = scmp.eq.s32.totalorder %s25, 0
      %p191 = por %p189, %p190
      %p192 = scmp.ne.s32.totalorder %s178, %s179
      %p193 = scmp.eq.s32.totalorder %s26, 1
      %p194 = por %p192, %p193
      %p196 = scmp.ne.s32.totalorder %s179, %s195
      %p197 = scmp.eq.s32.totalorder %s26, 0
      %p198 = por %p196, %p197
      %p199 = scmp.le.s32.totalorder 1, %s20
      %p200 = scmp.lt.s32.totalorder %s20, 3
      %p201 = pnand %p199, %p200
      %p202 = pneg %p201
      // Predicated region
      $region9: #{tpu_custom_call.1} parent=5 // pred_check
        _
      $region10: #{tpu_custom_call.1} parent=5 // pred_check_branch
        %204 = sbr.rel (%p201) target = $region12
      $region11: #{tpu_custom_call.1} parent=5 // pred_region
        %s205 = ssub.s32 %s20, 1
        // Predicated region
        $region13: #{tpu_custom_call.1} parent=11 // pred_check
          %p206 = pneg %p81
        $region14: #{tpu_custom_call.1} parent=11 // pred_check_branch
          %208 = sbr.rel (%p206) target = $region16
        $region15: #{tpu_custom_call.1} parent=11 // pred_region
          %s210 = ssub.s32 10240, 10240
          %211 = vsyncadd [#allocation12], %s210
          %s212 = sshll.u32 [#allocation11], 4
          %s213 = int_to_ptr.vmem [resolvable:$true] %s212
          %218 = dma.hbm_to_vmem [thread:$0]  %s1, 10240, %s213, [#allocation12], 640, 640, 40
        $region16: #{tpu_custom_call.1} parent=11 // pred_fallthru
          _
        // Predicated region
        $region17: #{tpu_custom_call.1} parent=11 // pred_check
          %p219 = pneg %p102
        $region18: #{tpu_custom_call.1} parent=11 // pred_check_branch
          %221 = sbr.rel (%p219) target = $region20
        $region19: #{tpu_custom_call.1} parent=11 // pred_region
          %s223 = ssub.s32 16, 16
          %224 = vsyncadd [#allocation12], %s223
          %s226 = sshll.u32 [#allocation13], 4
          %s227 = int_to_ptr.vmem [resolvable:$true] %s226
          %229 = dma.hbm_to_vmem [thread:$0]  %s2, 16, %s227, [#allocation12]
        $region20: #{tpu_custom_call.1} parent=11 // pred_fallthru
          _
        // Predicated region
        $region21: #{tpu_custom_call.1} parent=11 // pred_check
          %p230 = pneg %p123
        $region22: #{tpu_custom_call.1} parent=11 // pred_check_branch
          %232 = sbr.rel (%p230) target = $region24
        $region23: #{tpu_custom_call.1} parent=11 // pred_region
          %s234 = ssub.s32 16, 16
          %235 = vsyncadd [#allocation15], %s234
          %s237 = sshll.u32 [#allocation14], 4
          %s238 = int_to_ptr.vmem [resolvable:$true] %s237
          %240 = dma.hbm_to_vmem [thread:$0]  %s3, 16, %s238, [#allocation15]
        $region24: #{tpu_custom_call.1} parent=11 // pred_fallthru
          _
        // Predicated region
        $region25: #{tpu_custom_call.1} parent=11 // pred_check
          %p241 = pneg %p144
        $region26: #{tpu_custom_call.1} parent=11 // pred_check_branch
          %243 = sbr.rel (%p241) target = $region28
        $region27: #{tpu_custom_call.1} parent=11 // pred_region
          %s245 = ssub.s32 16, 16
          %246 = vsyncadd [#allocation15], %s245
          %s248 = sshll.u32 [#allocation16], 4
          %s249 = int_to_ptr.vmem [resolvable:$true] %s248
          %251 = dma.hbm_to_vmem [thread:$0]  %s4, 16, %s249, [#allocation15]
        $region28: #{tpu_custom_call.1} parent=11 // pred_fallthru
          _
        // Predicated region
        $region29: #{tpu_custom_call.1} parent=11 // pred_check
          %p252 = pneg %p165
        $region30: #{tpu_custom_call.1} parent=11 // pred_check_branch
          %254 = sbr.rel (%p252) target = $region32
        $region31: #{tpu_custom_call.1} parent=11 // pred_region
          _
        $region32: #{tpu_custom_call.1} parent=11 // pred_fallthru
          _
      $region12: #{tpu_custom_call.1} parent=5 // pred_fallthru
        _
      %p255 = scmp.lt.s32.totalorder %s20, 2
      // Predicated region
      $region33: #{tpu_custom_call.1} parent=5 // pred_check
        %p256 = pneg %p255
      $region34: #{tpu_custom_call.1} parent=5 // pred_check_branch
        %258 = sbr.rel (%p256) target = $region36
      $region35: #{tpu_custom_call.1} parent=5 // pred_region
        // Predicated region
        $region37: #{tpu_custom_call.1} parent=35 // pred_check
          %p259 = pneg %p54
        $region38: #{tpu_custom_call.1} parent=35 // pred_check_branch
          %261 = sbr.rel (%p259) target = $region40
        $region39: #{tpu_custom_call.1} parent=35 // pred_region
          %s262 = sand.u32 %s44, 1
          %s263 = scalar_lea.sflag [#allocation9], %s262
          %s264 = sand.u32 %s44, 1
          %s265 = smul.addr %s264, 128
          %s266 = scalar_lea.vmem [#allocation8], %s265
          %s267 = smul.u32 4, %s28
          %s269 = ssub.s32 2048, 2048
          %270 = vsyncadd %s263, %s269
          %s271 = smul.addr %s27, 4
          %s272 = smul.addr %s267, 4
          %s273 = sadd.s32 %s271, %s272
          %s274 = smul.addr %s273, 128
          %s275 = scalar_lea.hbm %s0, %s274
          %s276 = sshll.u32 %s266, 4
          %s277 = int_to_ptr.vmem [resolvable:$true] %s276
          %282 = dma.hbm_to_vmem [thread:$0]  %s275, 2048, %s277, %s263, 512, 512, 32
        $region40: #{tpu_custom_call.1} parent=35 // pred_fallthru
          _
      $region36: #{tpu_custom_call.1} parent=5 // pred_fallthru
        _
      %p283 = scmp.le.s32.totalorder 1, %s20
      %p284 = scmp.lt.s32.totalorder %s20, 3
      %p285 = pnand %p283, %p284
      %p286 = pneg %p285
      // Predicated region
      $region41: #{tpu_custom_call.1} parent=5 // pred_check
        _
      $region42: #{tpu_custom_call.1} parent=5 // pred_check_branch
        %288 = sbr.rel (%p285) target = $region44
      $region43: #{tpu_custom_call.1} parent=5 // pred_region
        %s289 = ssub.s32 %s20, 1
        %s290 = sand.u32 %s47, 1
        %s291 = scalar_lea.sflag [#allocation9], %s290
        %s292 = sand.u32 %s47, 1
        %s293 = smul.addr %s292, 128
        %s294 = scalar_lea.vmem [#allocation8], %s293
        // Predicated region
        $region45: #{tpu_custom_call.1} parent=43 // pred_check
          %p295 = pneg %p60
        $region46: #{tpu_custom_call.1} parent=43 // pred_check_branch
          %297 = sbr.rel (%p295) target = $region48
        $region47: #{tpu_custom_call.1} parent=43 // pred_region
          %298 = dma.done %s291, 2048
        $region48: #{tpu_custom_call.1} parent=43 // pred_fallthru
          _
        // Predicated region
        $region49: #{tpu_custom_call.1} parent=43 // pred_check
          %p299 = pneg %p81
        $region50: #{tpu_custom_call.1} parent=43 // pred_check_branch
          %301 = sbr.rel (%p299) target = $region52
        $region51: #{tpu_custom_call.1} parent=43 // pred_region
          %302 = dma.done [#allocation12], 10240
        $region52: #{tpu_custom_call.1} parent=43 // pred_fallthru
          _
        // Predicated region
        $region53: #{tpu_custom_call.1} parent=43 // pred_check
          %p303 = pneg %p102
        $region54: #{tpu_custom_call.1} parent=43 // pred_check_branch
          %305 = sbr.rel (%p303) target = $region56
        $region55: #{tpu_custom_call.1} parent=43 // pred_region
          %306 = dma.done [#allocation12], 16
        $region56: #{tpu_custom_call.1} parent=43 // pred_fallthru
          _
        // Predicated region
        $region57: #{tpu_custom_call.1} parent=43 // pred_check
          %p307 = pneg %p123
        $region58: #{tpu_custom_call.1} parent=43 // pred_check_branch
          %309 = sbr.rel (%p307) target = $region60
        $region59: #{tpu_custom_call.1} parent=43 // pred_region
          %310 = dma.done [#allocation15], 16
        $region60: #{tpu_custom_call.1} parent=43 // pred_fallthru
          _
        // Predicated region
        $region61: #{tpu_custom_call.1} parent=43 // pred_check
          %p311 = pneg %p144
        $region62: #{tpu_custom_call.1} parent=43 // pred_check_branch
          %313 = sbr.rel (%p311) target = $region64
        $region63: #{tpu_custom_call.1} parent=43 // pred_region
          %314 = dma.done [#allocation15], 16
        $region64: #{tpu_custom_call.1} parent=43 // pred_fallthru
          _
        %s315 = sand.u32 %s47, 1
        %s316 = scalar_lea.sflag [#allocation9], %s315
        %s317 = sand.u32 %s47, 1
        %s318 = smul.addr %s317, 128
        %s319 = scalar_lea.vmem [#allocation8], %s318
        %p320 = pneg %p60
        %p321 = pneg %p57
        %p322 = pneg %p81
        %p323 = pneg %p78
        %p324 = pneg %p102
        %p325 = pneg %p99
        %p326 = pneg %p123
        %p327 = pneg %p120
        %p328 = pneg %p144
        %p329 = pneg %p141
        %p330 = pneg %p165
        %p331 = pneg %p162
        %p332 = pneg %p191
        %p333 = pneg %p188
        %s334 = smul.u32 4, %s30
        %p335 = scmp.eq.s32.totalorder %s30, 0
        // Predicated region
        $region65: #{tpu_custom_call.1} parent=43 // pred_check
          %p336 = pneg %p335
        $region66: #{tpu_custom_call.1} parent=43 // pred_check_branch
          %338 = sbr.rel (%p336) target = $region68
        $region67: #{tpu_custom_call.1} parent=43 // pred_region
          %339 = vst [vmem:[#allocation2] sm:$0xff] 0.0
          %340 = vst [vmem:[#allocation3] sm:$0xff] 0.0
          %vm341 = vcmask 7168
          %342 = vst.msk [vmem:[#allocation4] sm:$0xff] %vm341, -1e+30
          %343 = vst.msk [vmem:[#allocation5] sm:$0xff] %vm341, 0.0
          %344 = vst [vmem:[#allocation6] sm:$0xff] 0.0
        $region68: #{tpu_custom_call.1} parent=43 // pred_fallthru
          _
        %v345 = vld [vmem:[#allocation11] sm:$0xff]
        %v346 = vld [vmem:[#allocation11 + $0x8] sm:$0xff]
        %v347 = vld [vmem:[#allocation11 + $0x10] sm:$0xff]
        %v348 = vld [vmem:[#allocation11 + $0x18] sm:$0xff]
        %v349 = vld [vmem:[#allocation11 + $0x20] sm:$0xff]
        %v350 = vld [vmem:[#allocation11 + $0x28] sm:$0xff]
        %v351 = vld [vmem:[#allocation11 + $0x30] sm:$0xff]
        %v352 = vld [vmem:[#allocation11 + $0x38] sm:$0xff]
        %v353 = vld [vmem:[#allocation11 + $0x40] sm:$0xff]
        %v354 = vld [vmem:[#allocation11 + $0x48] sm:$0xff]
        %v355 = vld [vmem:[#allocation11 + $0x50] sm:$0xff]
        %v356 = vld [vmem:[#allocation11 + $0x58] sm:$0xff]
        %v357 = vld [vmem:[#allocation11 + $0x60] sm:$0xff]
        %v358 = vld [vmem:[#allocation11 + $0x68] sm:$0xff]
        %v359 = vld [vmem:[#allocation11 + $0x70] sm:$0xff]
        %v360 = vld [vmem:[#allocation11 + $0x78] sm:$0xff]
        %v361 = vld [vmem:[#allocation11 + $0x80] sm:$0xff]
        %v362 = vld [vmem:[#allocation11 + $0x88] sm:$0xff]
        %v363 = vld [vmem:[#allocation11 + $0x90] sm:$0xff]
        %v364 = vld [vmem:[#allocation11 + $0x98] sm:$0xff]
        %v365 = vld [vmem:[#allocation11 + $0xa0] sm:$0xff]
        %v366 = vld [vmem:[#allocation11 + $0xa8] sm:$0xff]
        %v367 = vld [vmem:[#allocation11 + $0xb0] sm:$0xff]
        %v368 = vld [vmem:[#allocation11 + $0xb8] sm:$0xff]
        %v369 = vld [vmem:[#allocation11 + $0xc0] sm:$0xff]
        %v370 = vld [vmem:[#allocation11 + $0xc8] sm:$0xff]
        %v371 = vld [vmem:[#allocation11 + $0xd0] sm:$0xff]
        %v372 = vld [vmem:[#allocation11 + $0xd8] sm:$0xff]
        %v373 = vld [vmem:[#allocation11 + $0xe0] sm:$0xff]
        %v374 = vld [vmem:[#allocation11 + $0xe8] sm:$0xff]
        %v375 = vld [vmem:[#allocation11 + $0xf0] sm:$0xff]
        %v376 = vld [vmem:[#allocation11 + $0xf8] sm:$0xff]
        %v377 = vld [vmem:[#allocation11 + $0x100] sm:$0xff]
        %v378 = vld [vmem:[#allocation11 + $0x108] sm:$0xff]
        %v379 = vld [vmem:[#allocation11 + $0x110] sm:$0xff]
        %v380 = vld [vmem:[#allocation11 + $0x118] sm:$0xff]
        %v381 = vld [vmem:[#allocation11 + $0x120] sm:$0xff]
        %v382 = vld [vmem:[#allocation11 + $0x128] sm:$0xff]
        %v383 = vld [vmem:[#allocation11 + $0x130] sm:$0xff]
        %v384 = vld [vmem:[#allocation11 + $0x138] sm:$0xff]
        %v385 = vld [vmem:[#allocation11 + $0x140] sm:$0xff]
        %v386 = vld [vmem:[#allocation11 + $0x148] sm:$0xff]
        %v387 = vld [vmem:[#allocation11 + $0x150] sm:$0xff]
        %v388 = vld [vmem:[#allocation11 + $0x158] sm:$0xff]
        %v389 = vld [vmem:[#allocation11 + $0x160] sm:$0xff]
        %v390 = vld [vmem:[#allocation11 + $0x168] sm:$0xff]
        %v391 = vld [vmem:[#allocation11 + $0x170] sm:$0xff]
        %v392 = vld [vmem:[#allocation11 + $0x178] sm:$0xff]
        %v393 = vld [vmem:[#allocation11 + $0x180] sm:$0xff]
        %v394 = vld [vmem:[#allocation11 + $0x188] sm:$0xff]
        %v395 = vld [vmem:[#allocation11 + $0x190] sm:$0xff]
        %v396 = vld [vmem:[#allocation11 + $0x198] sm:$0xff]
        %v397 = vld [vmem:[#allocation11 + $0x1a0] sm:$0xff]
        %v398 = vld [vmem:[#allocation11 + $0x1a8] sm:$0xff]
        %v399 = vld [vmem:[#allocation11 + $0x1b0] sm:$0xff]
        %v400 = vld [vmem:[#allocation11 + $0x1b8] sm:$0xff]
        %v401 = vld [vmem:[#allocation11 + $0x1c0] sm:$0xff]
        %v402 = vld [vmem:[#allocation11 + $0x1c8] sm:$0xff]
        %v403 = vld [vmem:[#allocation11 + $0x1d0] sm:$0xff]
        %v404 = vld [vmem:[#allocation11 + $0x1d8] sm:$0xff]
        %v405 = vld [vmem:[#allocation11 + $0x1e0] sm:$0xff]
        %v406 = vld [vmem:[#allocation11 + $0x1e8] sm:$0xff]
        %v407 = vld [vmem:[#allocation11 + $0x1f0] sm:$0xff]
        %v408 = vld [vmem:[#allocation11 + $0x1f8] sm:$0xff]
        %v409 = vld [vmem:[#allocation11 + $0x200] sm:$0xff]
        %v410 = vld [vmem:[#allocation11 + $0x208] sm:$0xff]
        %v411 = vld [vmem:[#allocation11 + $0x210] sm:$0xff]
        %v412 = vld [vmem:[#allocation11 + $0x218] sm:$0xff]
        %v413 = vld [vmem:[#allocation11 + $0x220] sm:$0xff]
        %v414 = vld [vmem:[#allocation11 + $0x228] sm:$0xff]
        %v415 = vld [vmem:[#allocation11 + $0x230] sm:$0xff]
        %v416 = vld [vmem:[#allocation11 + $0x238] sm:$0xff]
        %v417 = vld [vmem:[#allocation11 + $0x240] sm:$0xff]
        %v418 = vld [vmem:[#allocation11 + $0x248] sm:$0xff]
        %v419 = vld [vmem:[#allocation11 + $0x250] sm:$0xff]
        %v420 = vld [vmem:[#allocation11 + $0x258] sm:$0xff]
        %v421 = vld [vmem:[#allocation11 + $0x260] sm:$0xff]
        %v422 = vld [vmem:[#allocation11 + $0x268] sm:$0xff]
        %v423 = vld [vmem:[#allocation11 + $0x270] sm:$0xff]
        %v424 = vld [vmem:[#allocation11 + $0x278] sm:$0xff]
        %v425 = vld [vmem:[#allocation13] sm:$0x1]
        %v426 = vld [vmem:[#allocation14] sm:$0x1]
        %s427 = smul.u32 %s30, 4
        %v428 = vld [vmem:[#allocation2] sm:$0xff]
        %v429 = vld [vmem:[#allocation3] sm:$0xff]
        %v430 = vld [vmem:[#allocation4] sm:$0xff]
        %v431 = vld [vmem:[#allocation5] sm:$0xff]
        %v432 = vld [vmem:[#allocation6] sm:$0xff]
        %433 = vmatprep.subr.mxu0 %v346
        %434 = vmatpush1.msra.mxu0 %v345
        %435 = vmatprep.subr.mxu0 %v351
        %436 = vmatpush1.msra.mxu0 %v350
        %437 = vmatprep.subr.mxu0 %v356
        %438 = vmatpush1.msra.mxu0 %v355
        %439 = vmatprep.subr.mxu0 %v361
        %440 = vmatpush1.msra.mxu0 %v360
        %441 = vmatprep.subr.mxu0 %v366
        %442 = vmatpush1.msra.mxu0 %v365
        %443 = vmatprep.subr.mxu0 %v371
        %444 = vmatpush1.msra.mxu0 %v370
        %445 = vmatprep.subr.mxu0 %v376
        %446 = vmatpush1.msra.mxu0 %v375
        %447 = vmatprep.subr.mxu0 %v381
        %448 = vmatpush1.msra.mxu0 %v380
        %449 = vmatprep.subr.mxu0 %v386
        %450 = vmatpush1.msra.mxu0 %v385
        %451 = vmatprep.subr.mxu0 %v391
        %452 = vmatpush1.msra.mxu0 %v390
        %453 = vmatprep.subr.mxu0 %v396
        %454 = vmatpush1.msra.mxu0 %v395
        %455 = vmatprep.subr.mxu0 %v401
        %456 = vmatpush1.msra.mxu0 %v400
        %457 = vmatprep.subr.mxu0 %v406
        %458 = vmatpush1.msra.mxu0 %v405
        %459 = vmatprep.subr.mxu0 %v411
        %460 = vmatpush1.msra.mxu0 %v410
        %461 = vmatprep.subr.mxu0 %v416
        %462 = vmatpush1.msra.mxu0 %v415
        %463 = vmatprep.subr.mxu0 %v421
        %464 = vmatpush1.msra.mxu0 %v420
        %465 = vmatprep.subr.mxu0 0.0
        %466 = vmatpush1.msra.mxu0 0.0
        %467 = vmatprep.subr.mxu0 0.0
        %468 = vmatpush1.msra.mxu0 0.0
        %469 = vmatprep.subr.mxu0 0.0
        %470 = vmatpush1.msra.mxu0 0.0
        %471 = vmatprep.subr.mxu0 0.0
        %472 = vmatpush1.msra.mxu0 0.0
        %473 = vmatprep.subr.mxu0 0.0
        %474 = vmatpush1.msra.mxu0 0.0
        %475 = vmatprep.subr.mxu0 0.0
        %476 = vmatpush1.msra.mxu0 0.0
        %477 = vmatprep.subr.mxu0 0.0
        %478 = vmatpush1.msra.mxu0 0.0
        %479 = vmatprep.subr.mxu0 0.0
        %480 = vmatpush1.msra.mxu0 0.0
        %481 = vmatprep.subr.mxu0 0.0
        %482 = vmatpush1.msra.mxu0 0.0
        %483 = vmatprep.subr.mxu0 0.0
        %484 = vmatpush1.msra.mxu0 0.0
        %485 = vmatprep.subr.mxu0 0.0
        %486 = vmatpush1.msra.mxu0 0.0
        %487 = vmatprep.subr.mxu0 0.0
        %488 = vmatpush1.msra.mxu0 0.0
        %489 = vmatprep.subr.mxu0 0.0
        %490 = vmatpush1.msra.mxu0 0.0
        %491 = vmatprep.subr.mxu0 0.0
        %492 = vmatpush1.msra.mxu0 0.0
        %493 = vmatprep.subr.mxu0 0.0
        %494 = vmatpush1.msra.mxu0 0.0
        %495 = vmatprep.subr.mxu0 0.0
        %496 = vmatpush1.msra.mxu0 0.0
        %497 = vmatprep.mubr.f32.mxu0 0.0
        %498 = vmatmul.mubr.f32.gmra.mrb[0].mxu0 %v428
        %v499 = vpop.f32.mrb[0].mxu0
        %v500 = vadd.f32 0.0, %v499
        %v501 = vpop.f32.mrb[0].mxu0
        %v502 = vadd.f32 0.0, %v501
        %503 = vdwg.mxu0
        %504 = vmatprep.subr.mxu0 %v348
        %505 = vmatpush1.msra.mxu0 %v347
        %506 = vmatprep.subr.mxu0 %v353
        %507 = vmatpush1.msra.mxu0 %v352
        %508 = vmatprep.subr.mxu0 %v358
        %509 = vmatpush1.msra.mxu0 %v357
        %510 = vmatprep.subr.mxu0 %v363
        %511 = vmatpush1.msra.mxu0 %v362
        %512 = vmatprep.subr.mxu0 %v368
        %513 = vmatpush1.msra.mxu0 %v367
        %514 = vmatprep.subr.mxu0 %v373
        %515 = vmatpush1.msra.mxu0 %v372
        %516 = vmatprep.subr.mxu0 %v378
        %517 = vmatpush1.msra.mxu0 %v377
        %518 = vmatprep.subr.mxu0 %v383
        %519 = vmatpush1.msra.mxu0 %v382
        %520 = vmatprep.subr.mxu0 %v388
        %521 = vmatpush1.msra.mxu0 %v387
        %522 = vmatprep.subr.mxu0 %v393
        %523 = vmatpush1.msra.mxu0 %v392
        %524 = vmatprep.subr.mxu0 %v398
        %525 = vmatpush1.msra.mxu0 %v397
        %526 = vmatprep.subr.mxu0 %v403
        %527 = vmatpush1.msra.mxu0 %v402
        %528 = vmatprep.subr.mxu0 %v408
        %529 = vmatpush1.msra.mxu0 %v407
        %530 = vmatprep.subr.mxu0 %v413
        %531 = vmatpush1.msra.mxu0 %v412
        %532 = vmatprep.subr.mxu0 %v418
        %533 = vmatpush1.msra.mxu0 %v417
        %534 = vmatprep.subr.mxu0 %v423
        %535 = vmatpush1.msra.mxu0 %v422
        %536 = vmatprep.subr.mxu0 0.0
        %537 = vmatpush1.msra.mxu0 0.0
        %538 = vmatprep.subr.mxu0 0.0
        %539 = vmatpush1.msra.mxu0 0.0
        %540 = vmatprep.subr.mxu0 0.0
        %541 = vmatpush1.msra.mxu0 0.0
        %542 = vmatprep.subr.mxu0 0.0
        %543 = vmatpush1.msra.mxu0 0.0
        %544 = vmatprep.subr.mxu0 0.0
        %545 = vmatpush1.msra.mxu0 0.0
        %546 = vmatprep.subr.mxu0 0.0
        %547 = vmatpush1.msra.mxu0 0.0
        %548 = vmatprep.subr.mxu0 0.0
        %549 = vmatpush1.msra.mxu0 0.0
        %550 = vmatprep.subr.mxu0 0.0
        %551 = vmatpush1.msra.mxu0 0.0
        %552 = vmatprep.subr.mxu0 0.0
        %553 = vmatpush1.msra.mxu0 0.0
        %554 = vmatprep.subr.mxu0 0.0
        %555 = vmatpush1.msra.mxu0 0.0
        %556 = vmatprep.subr.mxu0 0.0
        %557 = vmatpush1.msra.mxu0 0.0
        %558 = vmatprep.subr.mxu0 0.0
        %559 = vmatpush1.msra.mxu0 0.0
        %560 = vmatprep.subr.mxu0 0.0
        %561 = vmatpush1.msra.mxu0 0.0
        %562 = vmatprep.subr.mxu0 0.0
        %563 = vmatpush1.msra.mxu0 0.0
        %564 = vmatprep.subr.mxu0 0.0
        %565 = vmatpush1.msra.mxu0 0.0
        %566 = vmatprep.subr.mxu0 0.0
        %567 = vmatpush1.msra.mxu0 0.0
        %568 = vmatprep.mubr.f32.mxu0 0.0
        %569 = vmatmul.mubr.f32.gmra.mrb[0].mxu0 %v428
        %v570 = vpop.f32.mrb[0].mxu0
        %v571 = vadd.f32 0.0, %v570
        %v572 = vpop.f32.mrb[0].mxu0
        %v573 = vadd.f32 0.0, %v572
        %574 = vdwg.mxu0
        %575 = vmatprep.subr.mxu0 0.0
        %576 = vmatpush1.msra.mxu0 %v349
        %577 = vmatprep.subr.mxu0 0.0
        %578 = vmatpush1.msra.mxu0 %v354
        %579 = vmatprep.subr.mxu0 0.0
        %580 = vmatpush1.msra.mxu0 %v359
        %581 = vmatprep.subr.mxu0 0.0
        %582 = vmatpush1.msra.mxu0 %v364
        %583 = vmatprep.subr.mxu0 0.0
        %584 = vmatpush1.msra.mxu0 %v369
        %585 = vmatprep.subr.mxu0 0.0
        %586 = vmatpush1.msra.mxu0 %v374
        %587 = vmatprep.subr.mxu0 0.0
        %588 = vmatpush1.msra.mxu0 %v379
        %589 = vmatprep.subr.mxu0 0.0
        %590 = vmatpush1.msra.mxu0 %v384
        %591 = vmatprep.subr.mxu0 0.0
        %592 = vmatpush1.msra.mxu0 %v389
        %593 = vmatprep.subr.mxu0 0.0
        %594 = vmatpush1.msra.mxu0 %v394
        %595 = vmatprep.subr.mxu0 0.0
        %596 = vmatpush1.msra.mxu0 %v399
        %597 = vmatprep.subr.mxu0 0.0
        %598 = vmatpush1.msra.mxu0 %v404
        %599 = vmatprep.subr.mxu0 0.0
        %600 = vmatpush1.msra.mxu0 %v409
        %601 = vmatprep.subr.mxu0 0.0
        %602 = vmatpush1.msra.mxu0 %v414
        %603 = vmatprep.subr.mxu0 0.0
        %604 = vmatpush1.msra.mxu0 %v419
        %605 = vmatprep.subr.mxu0 0.0
        %606 = vmatpush1.msra.mxu0 %v424
        %607 = vmatprep.subr.mxu0 0.0
        %608 = vmatpush1.msra.mxu0 0.0
        %609 = vmatprep.subr.mxu0 0.0
        %610 = vmatpush1.msra.mxu0 0.0
        %611 = vmatprep.subr.mxu0 0.0
        %612 = vmatpush1.msra.mxu0 0.0
        %613 = vmatprep.subr.mxu0 0.0
        %614 = vmatpush1.msra.mxu0 0.0
        %615 = vmatprep.subr.mxu0 0.0
        %616 = vmatpush1.msra.mxu0 0.0
        %617 = vmatprep.subr.mxu0 0.0
        %618 = vmatpush1.msra.mxu0 0.0
        %619 = vmatprep.subr.mxu0 0.0
        %620 = vmatpush1.msra.mxu0 0.0
        %621 = vmatprep.subr.mxu0 0.0
        %622 = vmatpush1.msra.mxu0 0.0
        %623 = vmatprep.subr.mxu0 0.0
        %624 = vmatpush1.msra.mxu0 0.0
        %625 = vmatprep.subr.mxu0 0.0
        %626 = vmatpush1.msra.mxu0 0.0
        %627 = vmatprep.subr.mxu0 0.0
        %628 = vmatpush1.msra.mxu0 0.0
        %629 = vmatprep.subr.mxu0 0.0
        %630 = vmatpush1.msra.mxu0 0.0
        %631 = vmatprep.subr.mxu0 0.0
        %632 = vmatpush1.msra.mxu0 0.0
        %633 = vmatprep.subr.mxu0 0.0
        %634 = vmatpush1.msra.mxu0 0.0
        %635 = vmatprep.subr.mxu0 0.0
        %636 = vmatpush1.msra.mxu0 0.0
        %637 = vmatprep.subr.mxu0 0.0
        %638 = vmatpush1.msra.mxu0 0.0
        %639 = vmatprep.mubr.f32.mxu0 0.0
        %640 = vmatmul.mubr.f32.gmra.mrb[0].mxu0 %v428
        %v641 = vpop.f32.mrb[0].mxu0
        %v642 = vadd.f32 0.0, %v641
        %v643 = vpop.f32.mrb[0].mxu0
        %644 = vdwg.mxu0
        %v646 = vlaneseq
        %v647 = vshrl.u32 %v646, 7
        %v648 = vsub.s32 0, %v647
        %v649 = vrot.slane %v425, %v648
        %v651 = vadd.f32 %v642, %v649
        %v652 = vtanh.pop %v651
        %v654 = vlaneseq
        %v655 = vshrl.u32 %v654, 7
        %v656 = vsub.s32 0, %v655
        %v657 = vrot.slane %v426, %v656
        %v659 = vmul.f32 %v652, %v657
        %660 = vadd.xlane.f32.xlu0 %v659
        %v661 = vpop.xlane.xlu0 %660
        %p662 = scmp.ge.s32.totalorder %s427, 1
        %s663 = scalar_select %p662, 1, 0
        %v664 = vstv %s663
        %vm665 = vcmp.eq.s32.totalorder %v664, 1
        %v666 = vsel %vm665, %v661, -1e+38
        %v667 = vmax.f32 %v430, %v666
        %v668 = vsub.f32 %v430, %v667
        %v669 = vmul.f32 %v668, 1.442695
        %v670 = vpow.pop %v669
        %v671 = vsub.f32 %v666, %v667
        %v672 = vmul.f32 %v671, 1.442695
        %v673 = vpow.pop %v672
        %v674 = vmul.f32 %v670, %v431
        %v675 = vadd.f32 %v674, %v673
        %677 = vset.pattern.permute.xlu0 0
        %678 = vperm.xlu0 %677, %v670
        %v679 = vpop.permute.xlu0 %678
        %v681 = vmul.f32 %v679, %v432
        %683 = vset.pattern.permute.xlu0 0
        %684 = vperm.xlu0 %683, %v673
        %v685 = vpop.permute.xlu0 %684
        %v687 = vmul.f32 %v685, %v428
        %v688 = vadd.f32 %v681, %v687
        %v689 = vld [vmem:[%s294] sm:$0xff]
        %v690 = vld [vmem:[%s294 + $0x8] sm:$0xff]
        %v691 = vld [vmem:[%s294 + $0x10] sm:$0xff]
        %v692 = vld [vmem:[%s294 + $0x18] sm:$0xff]
        %v693 = vadd.f32 %v689, %v500
        %v694 = vadd.f32 %v690, %v502
        %v695 = vadd.f32 %v691, %v571
        %v696 = vadd.f32 %v692, %v573
        %v697 = vxor.u32 %v693, 2147483648
        %v698 = vmul.f32 %v697, 1.442695
        %v699 = vpow.pop %v698
        %v700 = vadd.f32 %v699, 1.0
        %v701 = vrcp.pop %v700
        %v702 = vmul.f32 1.0, %v701
        %v703 = vxor.u32 %v694, 2147483648
        %v704 = vmul.f32 %v703, 1.442695
        %v705 = vpow.pop %v704
        %v706 = vadd.f32 %v705, 1.0
        %v707 = vrcp.pop %v706
        %v708 = vmul.f32 1.0, %v707
        %v709 = vtanh.pop %v695
        %v710 = vxor.u32 %v696, 2147483648
        %v711 = vmul.f32 %v710, 1.442695
        %v712 = vpow.pop %v711
        %v713 = vadd.f32 %v712, 1.0
        %v714 = vrcp.pop %v713
        %v715 = vmul.f32 1.0, %v714
        %v716 = vmul.f32 %v708, %v429
        %v717 = vmul.f32 %v702, %v709
        %v718 = vadd.f32 %v716, %v717
        %v719 = vtanh.pop %v718
        %v720 = vmul.f32 %v715, %v719
        %s721 = sadd.s32 %s427, 1
        %722 = vmatprep.subr.mxu0 %v346
        %723 = vmatpush1.msra.mxu0 %v345
        %724 = vmatprep.subr.mxu0 %v351
        %725 = vmatpush1.msra.mxu0 %v350
        %726 = vmatprep.subr.mxu0 %v356
        %727 = vmatpush1.msra.mxu0 %v355
        %728 = vmatprep.subr.mxu0 %v361
        %729 = vmatpush1.msra.mxu0 %v360
        %730 = vmatprep.subr.mxu0 %v366
        %731 = vmatpush1.msra.mxu0 %v365
        %732 = vmatprep.subr.mxu0 %v371
        %733 = vmatpush1.msra.mxu0 %v370
        %734 = vmatprep.subr.mxu0 %v376
        %735 = vmatpush1.msra.mxu0 %v375
        %736 = vmatprep.subr.mxu0 %v381
        %737 = vmatpush1.msra.mxu0 %v380
        %738 = vmatprep.subr.mxu0 %v386
        %739 = vmatpush1.msra.mxu0 %v385
        %740 = vmatprep.subr.mxu0 %v391
        %741 = vmatpush1.msra.mxu0 %v390
        %742 = vmatprep.subr.mxu0 %v396
        %743 = vmatpush1.msra.mxu0 %v395
        %744 = vmatprep.subr.mxu0 %v401
        %745 = vmatpush1.msra.mxu0 %v400
        %746 = vmatprep.subr.mxu0 %v406
        %747 = vmatpush1.msra.mxu0 %v405
        %748 = vmatprep.subr.mxu0 %v411
        %749 = vmatpush1.msra.mxu0 %v410
        %750 = vmatprep.subr.mxu0 %v416
        %751 = vmatpush1.msra.mxu0 %v415
        %752 = vmatprep.subr.mxu0 %v421
        %753 = vmatpush1.msra.mxu0 %v420
        %754 = vmatprep.subr.mxu0 0.0
        %755 = vmatpush1.msra.mxu0 0.0
        %756 = vmatprep.subr.mxu0 0.0
        %757 = vmatpush1.msra.mxu0 0.0
        %758 = vmatprep.subr.mxu0 0.0
        %759 = vmatpush1.msra.mxu0 0.0
        %760 = vmatprep.subr.mxu0 0.0
        %761 = vmatpush1.msra.mxu0 0.0
        %762 = vmatprep.subr.mxu0 0.0
        %763 = vmatpush1.msra.mxu0 0.0
        %764 = vmatprep.subr.mxu0 0.0
        %765 = vmatpush1.msra.mxu0 0.0
        %766 = vmatprep.subr.mxu0 0.0
        %767 = vmatpush1.msra.mxu0 0.0
        %768 = vmatprep.subr.mxu0 0.0
        %769 = vmatpush1.msra.mxu0 0.0
        %770 = vmatprep.subr.mxu0 0.0
        %771 = vmatpush1.msra.mxu0 0.0
        %772 = vmatprep.subr.mxu0 0.0
        %773 = vmatpush1.msra.mxu0 0.0
        %774 = vmatprep.subr.mxu0 0.0
        %775 = vmatpush1.msra.mxu0 0.0
        %776 = vmatprep.subr.mxu0 0.0
        %777 = vmatpush1.msra.mxu0 0.0
        %778 = vmatprep.subr.mxu0 0.0
        %779 = vmatpush1.msra.mxu0 0.0
        %780 = vmatprep.subr.mxu0 0.0
        %781 = vmatpush1.msra.mxu0 0.0
        %782 = vmatprep.subr.mxu0 0.0
        %783 = vmatpush1.msra.mxu0 0.0
        %784 = vmatprep.subr.mxu0 0.0
        %785 = vmatpush1.msra.mxu0 0.0
        %786 = vmatprep.mubr.f32.mxu0 0.0
        %787 = vmatmul.mubr.f32.gmra.mrb[0].mxu0 %v720
        %v788 = vpop.f32.mrb[0].mxu0
        %v789 = vadd.f32 0.0, %v788
        %v790 = vpop.f32.mrb[0].mxu0
        %v791 = vadd.f32 0.0, %v790
        %792 = vdwg.mxu0
        %793 = vmatprep.subr.mxu0 %v348
        %794 = vmatpush1.msra.mxu0 %v347
        %795 = vmatprep.subr.mxu0 %v353
        %796 = vmatpush1.msra.mxu0 %v352
        %797 = vmatprep.subr.mxu0 %v358
        %798 = vmatpush1.msra.mxu0 %v357
        %799 = vmatprep.subr.mxu0 %v363
        %800 = vmatpush1.msra.mxu0 %v362
        %801 = vmatprep.subr.mxu0 %v368
        %802 = vmatpush1.msra.mxu0 %v367
        %803 = vmatprep.subr.mxu0 %v373
        %804 = vmatpush1.msra.mxu0 %v372
        %805 = vmatprep.subr.mxu0 %v378
        %806 = vmatpush1.msra.mxu0 %v377
        %807 = vmatprep.subr.mxu0 %v383
        %808 = vmatpush1.msra.mxu0 %v382
        %809 = vmatprep.subr.mxu0 %v388
        %810 = vmatpush1.msra.mxu0 %v387
        %811 = vmatprep.subr.mxu0 %v393
        %812 = vmatpush1.msra.mxu0 %v392
        %813 = vmatprep.subr.mxu0 %v398
        %814 = vmatpush1.msra.mxu0 %v397
        %815 = vmatprep.subr.mxu0 %v403
        %816 = vmatpush1.msra.mxu0 %v402
        %817 = vmatprep.subr.mxu0 %v408
        %818 = vmatpush1.msra.mxu0 %v407
        %819 = vmatprep.subr.mxu0 %v413
        %820 = vmatpush1.msra.mxu0 %v412
        %821 = vmatprep.subr.mxu0 %v418
        %822 = vmatpush1.msra.mxu0 %v417
        %823 = vmatprep.subr.mxu0 %v423
        %824 = vmatpush1.msra.mxu0 %v422
        %825 = vmatprep.subr.mxu0 0.0
        %826 = vmatpush1.msra.mxu0 0.0
        %827 = vmatprep.subr.mxu0 0.0
        %828 = vmatpush1.msra.mxu0 0.0
        %829 = vmatprep.subr.mxu0 0.0
        %830 = vmatpush1.msra.mxu0 0.0
        %831 = vmatprep.subr.mxu0 0.0
        %832 = vmatpush1.msra.mxu0 0.0
        %833 = vmatprep.subr.mxu0 0.0
        %834 = vmatpush1.msra.mxu0 0.0
        %835 = vmatprep.subr.mxu0 0.0
        %836 = vmatpush1.msra.mxu0 0.0
        %837 = vmatprep.subr.mxu0 0.0
        %838 = vmatpush1.msra.mxu0 0.0
        %839 = vmatprep.subr.mxu0 0.0
        %840 = vmatpush1.msra.mxu0 0.0
        %841 = vmatprep.subr.mxu0 0.0
        %842 = vmatpush1.msra.mxu0 0.0
        %843 = vmatprep.subr.mxu0 0.0
        %844 = vmatpush1.msra.mxu0 0.0
        %845 = vmatprep.subr.mxu0 0.0
        %846 = vmatpush1.msra.mxu0 0.0
        %847 = vmatprep.subr.mxu0 0.0
        %848 = vmatpush1.msra.mxu0 0.0
        %849 = vmatprep.subr.mxu0 0.0
        %850 = vmatpush1.msra.mxu0 0.0
        %851 = vmatprep.subr.mxu0 0.0
        %852 = vmatpush1.msra.mxu0 0.0
        %853 = vmatprep.subr.mxu0 0.0
        %854 = vmatpush1.msra.mxu0 0.0
        %855 = vmatprep.subr.mxu0 0.0
        %856 = vmatpush1.msra.mxu0 0.0
        %857 = vmatprep.mubr.f32.mxu0 0.0
        %858 = vmatmul.mubr.f32.gmra.mrb[0].mxu0 %v720
        %v859 = vpop.f32.mrb[0].mxu0
        %v860 = vadd.f32 0.0, %v859
        %v861 = vpop.f32.mrb[0].mxu0
        %v862 = vadd.f32 0.0, %v861
        %863 = vdwg.mxu0
        %864 = vmatprep.subr.mxu0 0.0
        %865 = vmatpush1.msra.mxu0 %v349
        %866 = vmatprep.subr.mxu0 0.0
        %867 = vmatpush1.msra.mxu0 %v354
        %868 = vmatprep.subr.mxu0 0.0
        %869 = vmatpush1.msra.mxu0 %v359
        %870 = vmatprep.subr.mxu0 0.0
        %871 = vmatpush1.msra.mxu0 %v364
        %872 = vmatprep.subr.mxu0 0.0
        %873 = vmatpush1.msra.mxu0 %v369
        %874 = vmatprep.subr.mxu0 0.0
        %875 = vmatpush1.msra.mxu0 %v374
        %876 = vmatprep.subr.mxu0 0.0
        %877 = vmatpush1.msra.mxu0 %v379
        %878 = vmatprep.subr.mxu0 0.0
        %879 = vmatpush1.msra.mxu0 %v384
        %880 = vmatprep.subr.mxu0 0.0
        %881 = vmatpush1.msra.mxu0 %v389
        %882 = vmatprep.subr.mxu0 0.0
        %883 = vmatpush1.msra.mxu0 %v394
        %884 = vmatprep.subr.mxu0 0.0
        %885 = vmatpush1.msra.mxu0 %v399
        %886 = vmatprep.subr.mxu0 0.0
        %887 = vmatpush1.msra.mxu0 %v404
        %888 = vmatprep.subr.mxu0 0.0
        %889 = vmatpush1.msra.mxu0 %v409
        %890 = vmatprep.subr.mxu0 0.0
        %891 = vmatpush1.msra.mxu0 %v414
        %892 = vmatprep.subr.mxu0 0.0
        %893 = vmatpush1.msra.mxu0 %v419
        %894 = vmatprep.subr.mxu0 0.0
        %895 = vmatpush1.msra.mxu0 %v424
        %896 = vmatprep.subr.mxu0 0.0
        %897 = vmatpush1.msra.mxu0 0.0
        %898 = vmatprep.subr.mxu0 0.0
        %899 = vmatpush1.msra.mxu0 0.0
        %900 = vmatprep.subr.mxu0 0.0
        %901 = vmatpush1.msra.mxu0 0.0
        %902 = vmatprep.subr.mxu0 0.0
        %903 = vmatpush1.msra.mxu0 0.0
        %904 = vmatprep.subr.mxu0 0.0
        %905 = vmatpush1.msra.mxu0 0.0
        %906 = vmatprep.subr.mxu0 0.0
        %907 = vmatpush1.msra.mxu0 0.0
        %908 = vmatprep.subr.mxu0 0.0
        %909 = vmatpush1.msra.mxu0 0.0
        %910 = vmatprep.subr.mxu0 0.0
        %911 = vmatpush1.msra.mxu0 0.0
        %912 = vmatprep.subr.mxu0 0.0
        %913 = vmatpush1.msra.mxu0 0.0
        %914 = vmatprep.subr.mxu0 0.0
        %915 = vmatpush1.msra.mxu0 0.0
        %916 = vmatprep.subr.mxu0 0.0
        %917 = vmatpush1.msra.mxu0 0.0
        %918 = vmatprep.subr.mxu0 0.0
        %919 = vmatpush1.msra.mxu0 0.0
        %920 = vmatprep.subr.mxu0 0.0
        %921 = vmatpush1.msra.mxu0 0.0
        %922 = vmatprep.subr.mxu0 0.0
        %923 = vmatpush1.msra.mxu0 0.0
        %924 = vmatprep.subr.mxu0 0.0
        %925 = vmatpush1.msra.mxu0 0.0
        %926 = vmatprep.subr.mxu0 0.0
        %927 = vmatpush1.msra.mxu0 0.0
        %928 = vmatprep.mubr.f32.mxu0 0.0
        %929 = vmatmul.mubr.f32.gmra.mrb[0].mxu0 %v720
        %v930 = vpop.f32.mrb[0].mxu0
        %v931 = vadd.f32 0.0, %v930
        %v932 = vpop.f32.mrb[0].mxu0
        %933 = vdwg.mxu0
        %v934 = vadd.f32 %v931, %v649
        %v935 = vtanh.pop %v934
        %v936 = vmul.f32 %v935, %v657
        %937 = vadd.xlane.f32.xlu0 %v936
        %v938 = vpop.xlane.xlu0 %937
        %p939 = scmp.ge.s32.totalorder %s721, 1
        %s940 = scalar_select %p939, 1, 0
        %v941 = vstv %s940
        %vm942 = vcmp.eq.s32.totalorder %v941, 1
        %v943 = vsel %vm942, %v938, -1e+38
        %v944 = vmax.f32 %v667, %v943
        %v945 = vsub.f32 %v667, %v944
        %v946 = vmul.f32 %v945, 1.442695
        %v947 = vpow.pop %v946
        %v948 = vsub.f32 %v943, %v944
        %v949 = vmul.f32 %v948, 1.442695
        %v950 = vpow.pop %v949
        %v951 = vmul.f32 %v947, %v675
        %v952 = vadd.f32 %v951, %v950
        %954 = vset.pattern.permute.xlu0 0
        %955 = vperm.xlu0 %954, %v947
        %v956 = vpop.permute.xlu0 %955
        %v958 = vmul.f32 %v956, %v688
        %960 = vset.pattern.permute.xlu0 0
        %961 = vperm.xlu0 %960, %v950
        %v962 = vpop.permute.xlu0 %961
        %v964 = vmul.f32 %v962, %v720
        %v965 = vadd.f32 %v958, %v964
        %s966 = scalar_lea.vmem %s294, 32 [#allocation8]
        %v967 = vld [vmem:[%s966] sm:$0xff]
        %v968 = vld [vmem:[%s966 + $0x8] sm:$0xff]
        %v969 = vld [vmem:[%s966 + $0x10] sm:$0xff]
        %v970 = vld [vmem:[%s966 + $0x18] sm:$0xff]
        %v971 = vadd.f32 %v967, %v789
        %v972 = vadd.f32 %v968, %v791
        %v973 = vadd.f32 %v969, %v860
        %v974 = vadd.f32 %v970, %v862
        %v975 = vxor.u32 %v971, 2147483648
        %v976 = vmul.f32 %v975, 1.442695
        %v977 = vpow.pop %v976
        %v978 = vadd.f32 %v977, 1.0
        %v979 = vrcp.pop %v978
        %v980 = vmul.f32 1.0, %v979
        %v981 = vxor.u32 %v972, 2147483648
        %v982 = vmul.f32 %v981, 1.442695
        %v983 = vpow.pop %v982
        %v984 = vadd.f32 %v983, 1.0
        %v985 = vrcp.pop %v984
        %v986 = vmul.f32 1.0, %v985
        %v987 = vtanh.pop %v973
        %v988 = vxor.u32 %v974, 2147483648
        %v989 = vmul.f32 %v988, 1.442695
        %v990 = vpow.pop %v989
        %v991 = vadd.f32 %v990, 1.0
        %v992 = vrcp.pop %v991
        %v993 = vmul.f32 1.0, %v992
        %v994 = vmul.f32 %v986, %v718
        %v995 = vmul.f32 %v980, %v987
        %v996 = vadd.f32 %v994, %v995
        %v997 = vtanh.pop %v996
        %v998 = vmul.f32 %v993, %v997
        %s999 = sadd.s32 %s427, 2
        %1000 = vmatprep.subr.mxu0 %v346
        %1001 = vmatpush1.msra.mxu0 %v345
        %1002 = vmatprep.subr.mxu0 %v351
        %1003 = vmatpush1.msra.mxu0 %v350
        %1004 = vmatprep.subr.mxu0 %v356
        %1005 = vmatpush1.msra.mxu0 %v355
        %1006 = vmatprep.subr.mxu0 %v361
        %1007 = vmatpush1.msra.mxu0 %v360
        %1008 = vmatprep.subr.mxu0 %v366
        %1009 = vmatpush1.msra.mxu0 %v365
        %1010 = vmatprep.subr.mxu0 %v371
        %1011 = vmatpush1.msra.mxu0 %v370
        %1012 = vmatprep.subr.mxu0 %v376
        %1013 = vmatpush1.msra.mxu0 %v375
        %1014 = vmatprep.subr.mxu0 %v381
        %1015 = vmatpush1.msra.mxu0 %v380
        %1016 = vmatprep.subr.mxu0 %v386
        %1017 = vmatpush1.msra.mxu0 %v385
        %1018 = vmatprep.subr.mxu0 %v391
        %1019 = vmatpush1.msra.mxu0 %v390
        %1020 = vmatprep.subr.mxu0 %v396
        %1021 = vmatpush1.msra.mxu0 %v395
        %1022 = vmatprep.subr.mxu0 %v401
        %1023 = vmatpush1.msra.mxu0 %v400
        %1024 = vmatprep.subr.mxu0 %v406
        %1025 = vmatpush1.msra.mxu0 %v405
        %1026 = vmatprep.subr.mxu0 %v411
        %1027 = vmatpush1.msra.mxu0 %v410
        %1028 = vmatprep.subr.mxu0 %v416
        %1029 = vmatpush1.msra.mxu0 %v415
        %1030 = vmatprep.subr.mxu0 %v421
        %1031 = vmatpush1.msra.mxu0 %v420
        %1032 = vmatprep.subr.mxu0 0.0
        %1033 = vmatpush1.msra.mxu0 0.0
        %1034 = vmatprep.subr.mxu0 0.0
        %1035 = vmatpush1.msra.mxu0 0.0
        %1036 = vmatprep.subr.mxu0 0.0
        %1037 = vmatpush1.msra.mxu0 0.0
        %1038 = vmatprep.subr.mxu0 0.0
        %1039 = vmatpush1.msra.mxu0 0.0
        %1040 = vmatprep.subr.mxu0 0.0
        %1041 = vmatpush1.msra.mxu0 0.0
        %1042 = vmatprep.subr.mxu0 0.0
        %1043 = vmatpush1.msra.mxu0 0.0
        %1044 = vmatprep.subr.mxu0 0.0
        %1045 = vmatpush1.msra.mxu0 0.0
        %1046 = vmatprep.subr.mxu0 0.0
        %1047 = vmatpush1.msra.mxu0 0.0
        %1048 = vmatprep.subr.mxu0 0.0
        %1049 = vmatpush1.msra.mxu0 0.0
        %1050 = vmatprep.subr.mxu0 0.0
        %1051 = vmatpush1.msra.mxu0 0.0
        %1052 = vmatprep.subr.mxu0 0.0
        %1053 = vmatpush1.msra.mxu0 0.0
        %1054 = vmatprep.subr.mxu0 0.0
        %1055 = vmatpush1.msra.mxu0 0.0
        %1056 = vmatprep.subr.mxu0 0.0
        %1057 = vmatpush1.msra.mxu0 0.0
        %1058 = vmatprep.subr.mxu0 0.0
        %1059 = vmatpush1.msra.mxu0 0.0
        %1060 = vmatprep.subr.mxu0 0.0
        %1061 = vmatpush1.msra.mxu0 0.0
        %1062 = vmatprep.subr.mxu0 0.0
        %1063 = vmatpush1.msra.mxu0 0.0
        %1064 = vmatprep.mubr.f32.mxu0 0.0
        %1065 = vmatmul.mubr.f32.gmra.mrb[0].mxu0 %v998
        %v1066 = vpop.f32.mrb[0].mxu0
        %v1067 = vadd.f32 0.0, %v1066
        %v1068 = vpop.f32.mrb[0].mxu0
        %v1069 = vadd.f32 0.0, %v1068
        %1070 = vdwg.mxu0
        %1071 = vmatprep.subr.mxu0 %v348
        %1072 = vmatpush1.msra.mxu0 %v347
        %1073 = vmatprep.subr.mxu0 %v353
        %1074 = vmatpush1.msra.mxu0 %v352
        %1075 = vmatprep.subr.mxu0 %v358
        %1076 = vmatpush1.msra.mxu0 %v357
        %1077 = vmatprep.subr.mxu0 %v363
        %1078 = vmatpush1.msra.mxu0 %v362
        %1079 = vmatprep.subr.mxu0 %v368
        %1080 = vmatpush1.msra.mxu0 %v367
        %1081 = vmatprep.subr.mxu0 %v373
        %1082 = vmatpush1.msra.mxu0 %v372
        %1083 = vmatprep.subr.mxu0 %v378
        %1084 = vmatpush1.msra.mxu0 %v377
        %1085 = vmatprep.subr.mxu0 %v383
        %1086 = vmatpush1.msra.mxu0 %v382
        %1087 = vmatprep.subr.mxu0 %v388
        %1088 = vmatpush1.msra.mxu0 %v387
        %1089 = vmatprep.subr.mxu0 %v393
        %1090 = vmatpush1.msra.mxu0 %v392
        %1091 = vmatprep.subr.mxu0 %v398
        %1092 = vmatpush1.msra.mxu0 %v397
        %1093 = vmatprep.subr.mxu0 %v403
        %1094 = vmatpush1.msra.mxu0 %v402
        %1095 = vmatprep.subr.mxu0 %v408
        %1096 = vmatpush1.msra.mxu0 %v407
        %1097 = vmatprep.subr.mxu0 %v413
        %1098 = vmatpush1.msra.mxu0 %v412
        %1099 = vmatprep.subr.mxu0 %v418
        %1100 = vmatpush1.msra.mxu0 %v417
        %1101 = vmatprep.subr.mxu0 %v423
        %1102 = vmatpush1.msra.mxu0 %v422
        %1103 = vmatprep.subr.mxu0 0.0
        %1104 = vmatpush1.msra.mxu0 0.0
        %1105 = vmatprep.subr.mxu0 0.0
        %1106 = vmatpush1.msra.mxu0 0.0
        %1107 = vmatprep.subr.mxu0 0.0
        %1108 = vmatpush1.msra.mxu0 0.0
        %1109 = vmatprep.subr.mxu0 0.0
        %1110 = vmatpush1.msra.mxu0 0.0
        %1111 = vmatprep.subr.mxu0 0.0
        %1112 = vmatpush1.msra.mxu0 0.0
        %1113 = vmatprep.subr.mxu0 0.0
        %1114 = vmatpush1.msra.mxu0 0.0
        %1115 = vmatprep.subr.mxu0 0.0
        %1116 = vmatpush1.msra.mxu0 0.0
        %1117 = vmatprep.subr.mxu0 0.0
        %1118 = vmatpush1.msra.mxu0 0.0
        %1119 = vmatprep.subr.mxu0 0.0
        %1120 = vmatpush1.msra.mxu0 0.0
        %1121 = vmatprep.subr.mxu0 0.0
        %1122 = vmatpush1.msra.mxu0 0.0
        %1123 = vmatprep.subr.mxu0 0.0
        %1124 = vmatpush1.msra.mxu0 0.0
        %1125 = vmatprep.subr.mxu0 0.0
        %1126 = vmatpush1.msra.mxu0 0.0
        %1127 = vmatprep.subr.mxu0 0.0
        %1128 = vmatpush1.msra.mxu0 0.0
        %1129 = vmatprep.subr.mxu0 0.0
        %1130 = vmatpush1.msra.mxu0 0.0
        %1131 = vmatprep.subr.mxu0 0.0
        %1132 = vmatpush1.msra.mxu0 0.0
        %1133 = vmatprep.subr.mxu0 0.0
        %1134 = vmatpush1.msra.mxu0 0.0
        %1135 = vmatprep.mubr.f32.mxu0 0.0
        %1136 = vmatmul.mubr.f32.gmra.mrb[0].mxu0 %v998
        %v1137 = vpop.f32.mrb[0].mxu0
        %v1138 = vadd.f32 0.0, %v1137
        %v1139 = vpop.f32.mrb[0].mxu0
        %v1140 = vadd.f32 0.0, %v1139
        %1141 = vdwg.mxu0
        %1142 = vmatprep.subr.mxu0 0.0
        %1143 = vmatpush1.msra.mxu0 %v349
        %1144 = vmatprep.subr.mxu0 0.0
        %1145 = vmatpush1.msra.mxu0 %v354
        %1146 = vmatprep.subr.mxu0 0.0
        %1147 = vmatpush1.msra.mxu0 %v359
        %1148 = vmatprep.subr.mxu0 0.0
        %1149 = vmatpush1.msra.mxu0 %v364
        %1150 = vmatprep.subr.mxu0 0.0
        %1151 = vmatpush1.msra.mxu0 %v369
        %1152 = vmatprep.subr.mxu0 0.0
        %1153 = vmatpush1.msra.mxu0 %v374
        %1154 = vmatprep.subr.mxu0 0.0
        %1155 = vmatpush1.msra.mxu0 %v379
        %1156 = vmatprep.subr.mxu0 0.0
        %1157 = vmatpush1.msra.mxu0 %v384
        %1158 = vmatprep.subr.mxu0 0.0
        %1159 = vmatpush1.msra.mxu0 %v389
        %1160 = vmatprep.subr.mxu0 0.0
        %1161 = vmatpush1.msra.mxu0 %v394
        %1162 = vmatprep.subr.mxu0 0.0
        %1163 = vmatpush1.msra.mxu0 %v399
        %1164 = vmatprep.subr.mxu0 0.0
        %1165 = vmatpush1.msra.mxu0 %v404
        %1166 = vmatprep.subr.mxu0 0.0
        %1167 = vmatpush1.msra.mxu0 %v409
        %1168 = vmatprep.subr.mxu0 0.0
        %1169 = vmatpush1.msra.mxu0 %v414
        %1170 = vmatprep.subr.mxu0 0.0
        %1171 = vmatpush1.msra.mxu0 %v419
        %1172 = vmatprep.subr.mxu0 0.0
        %1173 = vmatpush1.msra.mxu0 %v424
        %1174 = vmatprep.subr.mxu0 0.0
        %1175 = vmatpush1.msra.mxu0 0.0
        %1176 = vmatprep.subr.mxu0 0.0
        %1177 = vmatpush1.msra.mxu0 0.0
        %1178 = vmatprep.subr.mxu0 0.0
        %1179 = vmatpush1.msra.mxu0 0.0
        %1180 = vmatprep.subr.mxu0 0.0
        %1181 = vmatpush1.msra.mxu0 0.0
        %1182 = vmatprep.subr.mxu0 0.0
        %1183 = vmatpush1.msra.mxu0 0.0
        %1184 = vmatprep.subr.mxu0 0.0
        %1185 = vmatpush1.msra.mxu0 0.0
        %1186 = vmatprep.subr.mxu0 0.0
        %1187 = vmatpush1.msra.mxu0 0.0
        %1188 = vmatprep.subr.mxu0 0.0
        %1189 = vmatpush1.msra.mxu0 0.0
        %1190 = vmatprep.subr.mxu0 0.0
        %1191 = vmatpush1.msra.mxu0 0.0
        %1192 = vmatprep.subr.mxu0 0.0
        %1193 = vmatpush1.msra.mxu0 0.0
        %1194 = vmatprep.subr.mxu0 0.0
        %1195 = vmatpush1.msra.mxu0 0.0
        %1196 = vmatprep.subr.mxu0 0.0
        %1197 = vmatpush1.msra.mxu0 0.0
        %1198 = vmatprep.subr.mxu0 0.0
        %1199 = vmatpush1.msra.mxu0 0.0
        %1200 = vmatprep.subr.mxu0 0.0
        %1201 = vmatpush1.msra.mxu0 0.0
        %1202 = vmatprep.subr.mxu0 0.0
        %1203 = vmatpush1.msra.mxu0 0.0
        %1204 = vmatprep.subr.mxu0 0.0
        %1205 = vmatpush1.msra.mxu0 0.0
        %1206 = vmatprep.mubr.f32.mxu0 0.0
        %1207 = vmatmul.mubr.f32.gmra.mrb[0].mxu0 %v998
        %v1208 = vpop.f32.mrb[0].mxu0
        %v1209 = vadd.f32 0.0, %v1208
        %v1210 = vpop.f32.mrb[0].mxu0
        %1211 = vdwg.mxu0
        %v1212 = vadd.f32 %v1209, %v649
        %v1213 = vtanh.pop %v1212
        %v1214 = vmul.f32 %v1213, %v657
        %1215 = vadd.xlane.f32.xlu0 %v1214
        %v1216 = vpop.xlane.xlu0 %1215
        %p1217 = scmp.ge.s32.totalorder %s999, 1
        %s1218 = scalar_select %p1217, 1, 0
        %v1219 = vstv %s1218
        %vm1220 = vcmp.eq.s32.totalorder %v1219, 1
        %v1221 = vsel %vm1220, %v1216, -1e+38
        %v1222 = vmax.f32 %v944, %v1221
        %v1223 = vsub.f32 %v944, %v1222
        %v1224 = vmul.f32 %v1223, 1.442695
        %v1225 = vpow.pop %v1224
        %v1226 = vsub.f32 %v1221, %v1222
        %v1227 = vmul.f32 %v1226, 1.442695
        %v1228 = vpow.pop %v1227
        %v1229 = vmul.f32 %v1225, %v952
        %v1230 = vadd.f32 %v1229, %v1228
        %1232 = vset.pattern.permute.xlu0 0
        %1233 = vperm.xlu0 %1232, %v1225
        %v1234 = vpop.permute.xlu0 %1233
        %v1236 = vmul.f32 %v1234, %v965
        %1238 = vset.pattern.permute.xlu0 0
        %1239 = vperm.xlu0 %1238, %v1228
        %v1240 = vpop.permute.xlu0 %1239
        %v1242 = vmul.f32 %v1240, %v998
        %v1243 = vadd.f32 %v1236, %v1242
        %s1244 = scalar_lea.vmem %s294, 64 [#allocation8]
        %v1245 = vld [vmem:[%s1244] sm:$0xff]
        %v1246 = vld [vmem:[%s1244 + $0x8] sm:$0xff]
        %v1247 = vld [vmem:[%s1244 + $0x10] sm:$0xff]
        %v1248 = vld [vmem:[%s1244 + $0x18] sm:$0xff]
        %v1249 = vadd.f32 %v1245, %v1067
        %v1250 = vadd.f32 %v1246, %v1069
        %v1251 = vadd.f32 %v1247, %v1138
        %v1252 = vadd.f32 %v1248, %v1140
        %v1253 = vxor.u32 %v1249, 2147483648
        %v1254 = vmul.f32 %v1253, 1.442695
        %v1255 = vpow.pop %v1254
        %v1256 = vadd.f32 %v1255, 1.0
        %v1257 = vrcp.pop %v1256
        %v1258 = vmul.f32 1.0, %v1257
        %v1259 = vxor.u32 %v1250, 2147483648
        %v1260 = vmul.f32 %v1259, 1.442695
        %v1261 = vpow.pop %v1260
        %v1262 = vadd.f32 %v1261, 1.0
        %v1263 = vrcp.pop %v1262
        %v1264 = vmul.f32 1.0, %v1263
        %v1265 = vtanh.pop %v1251
        %v1266 = vxor.u32 %v1252, 2147483648
        %v1267 = vmul.f32 %v1266, 1.442695
        %v1268 = vpow.pop %v1267
        %v1269 = vadd.f32 %v1268, 1.0
        %v1270 = vrcp.pop %v1269
        %v1271 = vmul.f32 1.0, %v1270
        %v1272 = vmul.f32 %v1264, %v996
        %v1273 = vmul.f32 %v1258, %v1265
        %v1274 = vadd.f32 %v1272, %v1273
        %v1275 = vtanh.pop %v1274
        %v1276 = vmul.f32 %v1271, %v1275
        %s1277 = sadd.s32 %s427, 3
        %1278 = vmatprep.subr.mxu0 %v346
        %1279 = vmatpush1.msra.mxu0 %v345
        %1280 = vmatprep.subr.mxu0 %v351
        %1281 = vmatpush1.msra.mxu0 %v350
        %1282 = vmatprep.subr.mxu0 %v356
        %1283 = vmatpush1.msra.mxu0 %v355
        %1284 = vmatprep.subr.mxu0 %v361
        %1285 = vmatpush1.msra.mxu0 %v360
        %1286 = vmatprep.subr.mxu0 %v366
        %1287 = vmatpush1.msra.mxu0 %v365
        %1288 = vmatprep.subr.mxu0 %v371
        %1289 = vmatpush1.msra.mxu0 %v370
        %1290 = vmatprep.subr.mxu0 %v376
        %1291 = vmatpush1.msra.mxu0 %v375
        %1292 = vmatprep.subr.mxu0 %v381
        %1293 = vmatpush1.msra.mxu0 %v380
        %1294 = vmatprep.subr.mxu0 %v386
        %1295 = vmatpush1.msra.mxu0 %v385
        %1296 = vmatprep.subr.mxu0 %v391
        %1297 = vmatpush1.msra.mxu0 %v390
        %1298 = vmatprep.subr.mxu0 %v396
        %1299 = vmatpush1.msra.mxu0 %v395
        %1300 = vmatprep.subr.mxu0 %v401
        %1301 = vmatpush1.msra.mxu0 %v400
        %1302 = vmatprep.subr.mxu0 %v406
        %1303 = vmatpush1.msra.mxu0 %v405
        %1304 = vmatprep.subr.mxu0 %v411
        %1305 = vmatpush1.msra.mxu0 %v410
        %1306 = vmatprep.subr.mxu0 %v416
        %1307 = vmatpush1.msra.mxu0 %v415
        %1308 = vmatprep.subr.mxu0 %v421
        %1309 = vmatpush1.msra.mxu0 %v420
        %1310 = vmatprep.subr.mxu0 0.0
        %1311 = vmatpush1.msra.mxu0 0.0
        %1312 = vmatprep.subr.mxu0 0.0
        %1313 = vmatpush1.msra.mxu0 0.0
        %1314 = vmatprep.subr.mxu0 0.0
        %1315 = vmatpush1.msra.mxu0 0.0
        %1316 = vmatprep.subr.mxu0 0.0
        %1317 = vmatpush1.msra.mxu0 0.0
        %1318 = vmatprep.subr.mxu0 0.0
        %1319 = vmatpush1.msra.mxu0 0.0
        %1320 = vmatprep.subr.mxu0 0.0
        %1321 = vmatpush1.msra.mxu0 0.0
        %1322 = vmatprep.subr.mxu0 0.0
        %1323 = vmatpush1.msra.mxu0 0.0
        %1324 = vmatprep.subr.mxu0 0.0
        %1325 = vmatpush1.msra.mxu0 0.0
        %1326 = vmatprep.subr.mxu0 0.0
        %1327 = vmatpush1.msra.mxu0 0.0
        %1328 = vmatprep.subr.mxu0 0.0
        %1329 = vmatpush1.msra.mxu0 0.0
        %1330 = vmatprep.subr.mxu0 0.0
        %1331 = vmatpush1.msra.mxu0 0.0
        %1332 = vmatprep.subr.mxu0 0.0
        %1333 = vmatpush1.msra.mxu0 0.0
        %1334 = vmatprep.subr.mxu0 0.0
        %1335 = vmatpush1.msra.mxu0 0.0
        %1336 = vmatprep.subr.mxu0 0.0
        %1337 = vmatpush1.msra.mxu0 0.0
        %1338 = vmatprep.subr.mxu0 0.0
        %1339 = vmatpush1.msra.mxu0 0.0
        %1340 = vmatprep.subr.mxu0 0.0
        %1341 = vmatpush1.msra.mxu0 0.0
        %1342 = vmatprep.mubr.f32.mxu0 0.0
        %1343 = vmatmul.mubr.f32.gmra.mrb[0].mxu0 %v1276
        %v1344 = vpop.f32.mrb[0].mxu0
        %v1345 = vadd.f32 0.0, %v1344
        %v1346 = vpop.f32.mrb[0].mxu0
        %v1347 = vadd.f32 0.0, %v1346
        %1348 = vdwg.mxu0
        %1349 = vmatprep.subr.mxu0 %v348
        %1350 = vmatpush1.msra.mxu0 %v347
        %1351 = vmatprep.subr.mxu0 %v353
        %1352 = vmatpush1.msra.mxu0 %v352
        %1353 = vmatprep.subr.mxu0 %v358
        %1354 = vmatpush1.msra.mxu0 %v357
        %1355 = vmatprep.subr.mxu0 %v363
        %1356 = vmatpush1.msra.mxu0 %v362
        %1357 = vmatprep.subr.mxu0 %v368
        %1358 = vmatpush1.msra.mxu0 %v367
        %1359 = vmatprep.subr.mxu0 %v373
        %1360 = vmatpush1.msra.mxu0 %v372
        %1361 = vmatprep.subr.mxu0 %v378
        %1362 = vmatpush1.msra.mxu0 %v377
        %1363 = vmatprep.subr.mxu0 %v383
        %1364 = vmatpush1.msra.mxu0 %v382
        %1365 = vmatprep.subr.mxu0 %v388
        %1366 = vmatpush1.msra.mxu0 %v387
        %1367 = vmatprep.subr.mxu0 %v393
        %1368 = vmatpush1.msra.mxu0 %v392
        %1369 = vmatprep.subr.mxu0 %v398
        %1370 = vmatpush1.msra.mxu0 %v397
        %1371 = vmatprep.subr.mxu0 %v403
        %1372 = vmatpush1.msra.mxu0 %v402
        %1373 = vmatprep.subr.mxu0 %v408
        %1374 = vmatpush1.msra.mxu0 %v407
        %1375 = vmatprep.subr.mxu0 %v413
        %1376 = vmatpush1.msra.mxu0 %v412
        %1377 = vmatprep.subr.mxu0 %v418
        %1378 = vmatpush1.msra.mxu0 %v417
        %1379 = vmatprep.subr.mxu0 %v423
        %1380 = vmatpush1.msra.mxu0 %v422
        %1381 = vmatprep.subr.mxu0 0.0
        %1382 = vmatpush1.msra.mxu0 0.0
        %1383 = vmatprep.subr.mxu0 0.0
        %1384 = vmatpush1.msra.mxu0 0.0
        %1385 = vmatprep.subr.mxu0 0.0
        %1386 = vmatpush1.msra.mxu0 0.0
        %1387 = vmatprep.subr.mxu0 0.0
        %1388 = vmatpush1.msra.mxu0 0.0
        %1389 = vmatprep.subr.mxu0 0.0
        %1390 = vmatpush1.msra.mxu0 0.0
        %1391 = vmatprep.subr.mxu0 0.0
        %1392 = vmatpush1.msra.mxu0 0.0
        %1393 = vmatprep.subr.mxu0 0.0
        %1394 = vmatpush1.msra.mxu0 0.0
        %1395 = vmatprep.subr.mxu0 0.0
        %1396 = vmatpush1.msra.mxu0 0.0
        %1397 = vmatprep.subr.mxu0 0.0
        %1398 = vmatpush1.msra.mxu0 0.0
        %1399 = vmatprep.subr.mxu0 0.0
        %1400 = vmatpush1.msra.mxu0 0.0
        %1401 = vmatprep.subr.mxu0 0.0
        %1402 = vmatpush1.msra.mxu0 0.0
        %1403 = vmatprep.subr.mxu0 0.0
        %1404 = vmatpush1.msra.mxu0 0.0
        %1405 = vmatprep.subr.mxu0 0.0
        %1406 = vmatpush1.msra.mxu0 0.0
        %1407 = vmatprep.subr.mxu0 0.0
        %1408 = vmatpush1.msra.mxu0 0.0
        %1409 = vmatprep.subr.mxu0 0.0
        %1410 = vmatpush1.msra.mxu0 0.0
        %1411 = vmatprep.subr.mxu0 0.0
        %1412 = vmatpush1.msra.mxu0 0.0
        %1413 = vmatprep.mubr.f32.mxu0 0.0
        %1414 = vmatmul.mubr.f32.gmra.mrb[0].mxu0 %v1276
        %v1415 = vpop.f32.mrb[0].mxu0
        %v1416 = vadd.f32 0.0, %v1415
        %v1417 = vpop.f32.mrb[0].mxu0
        %v1418 = vadd.f32 0.0, %v1417
        %1419 = vdwg.mxu0
        %1420 = vmatprep.subr.mxu0 0.0
        %1421 = vmatpush1.msra.mxu0 %v349
        %1422 = vmatprep.subr.mxu0 0.0
        %1423 = vmatpush1.msra.mxu0 %v354
        %1424 = vmatprep.subr.mxu0 0.0
        %1425 = vmatpush1.msra.mxu0 %v359
        %1426 = vmatprep.subr.mxu0 0.0
        %1427 = vmatpush1.msra.mxu0 %v364
        %1428 = vmatprep.subr.mxu0 0.0
        %1429 = vmatpush1.msra.mxu0 %v369
        %1430 = vmatprep.subr.mxu0 0.0
        %1431 = vmatpush1.msra.mxu0 %v374
        %1432 = vmatprep.subr.mxu0 0.0
        %1433 = vmatpush1.msra.mxu0 %v379
        %1434 = vmatprep.subr.mxu0 0.0
        %1435 = vmatpush1.msra.mxu0 %v384
        %1436 = vmatprep.subr.mxu0 0.0
        %1437 = vmatpush1.msra.mxu0 %v389
        %1438 = vmatprep.subr.mxu0 0.0
        %1439 = vmatpush1.msra.mxu0 %v394
        %1440 = vmatprep.subr.mxu0 0.0
        %1441 = vmatpush1.msra.mxu0 %v399
        %1442 = vmatprep.subr.mxu0 0.0
        %1443 = vmatpush1.msra.mxu0 %v404
        %1444 = vmatprep.subr.mxu0 0.0
        %1445 = vmatpush1.msra.mxu0 %v409
        %1446 = vmatprep.subr.mxu0 0.0
        %1447 = vmatpush1.msra.mxu0 %v414
        %1448 = vmatprep.subr.mxu0 0.0
        %1449 = vmatpush1.msra.mxu0 %v419
        %1450 = vmatprep.subr.mxu0 0.0
        %1451 = vmatpush1.msra.mxu0 %v424
        %1452 = vmatprep.subr.mxu0 0.0
        %1453 = vmatpush1.msra.mxu0 0.0
        %1454 = vmatprep.subr.mxu0 0.0
        %1455 = vmatpush1.msra.mxu0 0.0
        %1456 = vmatprep.subr.mxu0 0.0
        %1457 = vmatpush1.msra.mxu0 0.0
        %1458 = vmatprep.subr.mxu0 0.0
        %1459 = vmatpush1.msra.mxu0 0.0
        %1460 = vmatprep.subr.mxu0 0.0
        %1461 = vmatpush1.msra.mxu0 0.0
        %1462 = vmatprep.subr.mxu0 0.0
        %1463 = vmatpush1.msra.mxu0 0.0
        %1464 = vmatprep.subr.mxu0 0.0
        %1465 = vmatpush1.msra.mxu0 0.0
        %1466 = vmatprep.subr.mxu0 0.0
        %1467 = vmatpush1.msra.mxu0 0.0
        %1468 = vmatprep.subr.mxu0 0.0
        %1469 = vmatpush1.msra.mxu0 0.0
        %1470 = vmatprep.subr.mxu0 0.0
        %1471 = vmatpush1.msra.mxu0 0.0
        %1472 = vmatprep.subr.mxu0 0.0
        %1473 = vmatpush1.msra.mxu0 0.0
        %1474 = vmatprep.subr.mxu0 0.0
        %1475 = vmatpush1.msra.mxu0 0.0
        %1476 = vmatprep.subr.mxu0 0.0
        %1477 = vmatpush1.msra.mxu0 0.0
        %1478 = vmatprep.subr.mxu0 0.0
        %1479 = vmatpush1.msra.mxu0 0.0
        %1480 = vmatprep.subr.mxu0 0.0
        %1481 = vmatpush1.msra.mxu0 0.0
        %1482 = vmatprep.subr.mxu0 0.0
        %1483 = vmatpush1.msra.mxu0 0.0
        %1484 = vmatprep.mubr.f32.mxu0 0.0
        %1485 = vmatmul.mubr.f32.gmra.mrb[0].mxu0 %v1276
        %v1486 = vpop.f32.mrb[0].mxu0
        %v1487 = vadd.f32 0.0, %v1486
        %v1488 = vpop.f32.mrb[0].mxu0
        %1489 = vdwg.mxu0
        %v1490 = vadd.f32 %v1487, %v649
        %v1491 = vtanh.pop %v1490
        %v1492 = vmul.f32 %v1491, %v657
        %1493 = vadd.xlane.f32.xlu0 %v1492
        %v1494 = vpop.xlane.xlu0 %1493
        %p1495 = scmp.ge.s32.totalorder %s1277, 1
        %s1496 = scalar_select %p1495, 1, 0
        %v1497 = vstv %s1496
        %vm1498 = vcmp.eq.s32.totalorder %v1497, 1
        %v1499 = vsel %vm1498, %v1494, -1e+38
        %v1500 = vmax.f32 %v1222, %v1499
        %v1501 = vsub.f32 %v1222, %v1500
        %v1502 = vmul.f32 %v1501, 1.442695
        %v1503 = vpow.pop %v1502
        %v1504 = vsub.f32 %v1499, %v1500
        %v1505 = vmul.f32 %v1504, 1.442695
        %v1506 = vpow.pop %v1505
        %v1507 = vmul.f32 %v1503, %v1230
        %v1508 = vadd.f32 %v1507, %v1506
        %1510 = vset.pattern.permute.xlu0 0
        %1511 = vperm.xlu0 %1510, %v1503
        %v1512 = vpop.permute.xlu0 %1511
        %v1514 = vmul.f32 %v1512, %v1243
        %1516 = vset.pattern.permute.xlu0 0
        %1517 = vperm.xlu0 %1516, %v1506
        %v1518 = vpop.permute.xlu0 %1517
        %v1520 = vmul.f32 %v1518, %v1276
        %v1521 = vadd.f32 %v1514, %v1520
        %s1522 = scalar_lea.vmem %s294, 96 [#allocation8]
        %v1523 = vld [vmem:[%s1522] sm:$0xff]
        %v1524 = vld [vmem:[%s1522 + $0x8] sm:$0xff]
        %v1525 = vld [vmem:[%s1522 + $0x10] sm:$0xff]
        %v1526 = vld [vmem:[%s1522 + $0x18] sm:$0xff]
        %v1527 = vadd.f32 %v1523, %v1345
        %v1528 = vadd.f32 %v1524, %v1347
        %v1529 = vadd.f32 %v1525, %v1416
        %v1530 = vadd.f32 %v1526, %v1418
        %v1531 = vxor.u32 %v1527, 2147483648
        %v1532 = vmul.f32 %v1531, 1.442695
        %v1533 = vpow.pop %v1532
        %v1534 = vadd.f32 %v1533, 1.0
        %v1535 = vrcp.pop %v1534
        %v1536 = vmul.f32 1.0, %v1535
        %v1537 = vxor.u32 %v1528, 2147483648
        %v1538 = vmul.f32 %v1537, 1.442695
        %v1539 = vpow.pop %v1538
        %v1540 = vadd.f32 %v1539, 1.0
        %v1541 = vrcp.pop %v1540
        %v1542 = vmul.f32 1.0, %v1541
        %v1543 = vtanh.pop %v1529
        %v1544 = vxor.u32 %v1530, 2147483648
        %v1545 = vmul.f32 %v1544, 1.442695
        %v1546 = vpow.pop %v1545
        %v1547 = vadd.f32 %v1546, 1.0
        %v1548 = vrcp.pop %v1547
        %v1549 = vmul.f32 1.0, %v1548
        %v1550 = vmul.f32 %v1542, %v1274
        %v1551 = vmul.f32 %v1536, %v1543
        %v1552 = vadd.f32 %v1550, %v1551
        %v1553 = vtanh.pop %v1552
        %v1554 = vmul.f32 %v1549, %v1553
        %1555 = vst [vmem:[#allocation2] sm:$0xff] %v1554
        %1556 = vst [vmem:[#allocation3] sm:$0xff] %v1552
        %vm1557 = vcmask 7168
        %1558 = vst.msk [vmem:[#allocation4] sm:$0xff] %vm1557, %v1500
        %1559 = vst.msk [vmem:[#allocation5] sm:$0xff] %vm1557, %v1508
        %1560 = vst [vmem:[#allocation6] sm:$0xff] %v1521
        %p1561 = scmp.eq.s32.totalorder %s30, 1
        // Predicated region
        $region69: #{tpu_custom_call.1} parent=43 // pred_check
          %p1562 = pneg %p1561
        $region70: #{tpu_custom_call.1} parent=43 // pred_check_branch
          %1564 = sbr.rel (%p1562) target = $region72
        $region71: #{tpu_custom_call.1} parent=43 // pred_region
          %1565 = vmatprep.subr.mxu0 0.0
          %1566 = vmatpush1.msra.mxu0 %v349
          %1567 = vmatprep.subr.mxu0 0.0
          %1568 = vmatpush1.msra.mxu0 %v354
          %1569 = vmatprep.subr.mxu0 0.0
          %1570 = vmatpush1.msra.mxu0 %v359
          %1571 = vmatprep.subr.mxu0 0.0
          %1572 = vmatpush1.msra.mxu0 %v364
          %1573 = vmatprep.subr.mxu0 0.0
          %1574 = vmatpush1.msra.mxu0 %v369
          %1575 = vmatprep.subr.mxu0 0.0
          %1576 = vmatpush1.msra.mxu0 %v374
          %1577 = vmatprep.subr.mxu0 0.0
          %1578 = vmatpush1.msra.mxu0 %v379
          %1579 = vmatprep.subr.mxu0 0.0
          %1580 = vmatpush1.msra.mxu0 %v384
          %1581 = vmatprep.subr.mxu0 0.0
          %1582 = vmatpush1.msra.mxu0 %v389
          %1583 = vmatprep.subr.mxu0 0.0
          %1584 = vmatpush1.msra.mxu0 %v394
          %1585 = vmatprep.subr.mxu0 0.0
          %1586 = vmatpush1.msra.mxu0 %v399
          %1587 = vmatprep.subr.mxu0 0.0
          %1588 = vmatpush1.msra.mxu0 %v404
          %1589 = vmatprep.subr.mxu0 0.0
          %1590 = vmatpush1.msra.mxu0 %v409
          %1591 = vmatprep.subr.mxu0 0.0
          %1592 = vmatpush1.msra.mxu0 %v414
          %1593 = vmatprep.subr.mxu0 0.0
          %1594 = vmatpush1.msra.mxu0 %v419
          %1595 = vmatprep.subr.mxu0 0.0
          %1596 = vmatpush1.msra.mxu0 %v424
          %1597 = vmatprep.subr.mxu0 0.0
          %1598 = vmatpush1.msra.mxu0 0.0
          %1599 = vmatprep.subr.mxu0 0.0
          %1600 = vmatpush1.msra.mxu0 0.0
          %1601 = vmatprep.subr.mxu0 0.0
          %1602 = vmatpush1.msra.mxu0 0.0
          %1603 = vmatprep.subr.mxu0 0.0
          %1604 = vmatpush1.msra.mxu0 0.0
          %1605 = vmatprep.subr.mxu0 0.0
          %1606 = vmatpush1.msra.mxu0 0.0
          %1607 = vmatprep.subr.mxu0 0.0
          %1608 = vmatpush1.msra.mxu0 0.0
          %1609 = vmatprep.subr.mxu0 0.0
          %1610 = vmatpush1.msra.mxu0 0.0
          %1611 = vmatprep.subr.mxu0 0.0
          %1612 = vmatpush1.msra.mxu0 0.0
          %1613 = vmatprep.subr.mxu0 0.0
          %1614 = vmatpush1.msra.mxu0 0.0
          %1615 = vmatprep.subr.mxu0 0.0
          %1616 = vmatpush1.msra.mxu0 0.0
          %1617 = vmatprep.subr.mxu0 0.0
          %1618 = vmatpush1.msra.mxu0 0.0
          %1619 = vmatprep.subr.mxu0 0.0
          %1620 = vmatpush1.msra.mxu0 0.0
          %1621 = vmatprep.subr.mxu0 0.0
          %1622 = vmatpush1.msra.mxu0 0.0
          %1623 = vmatprep.subr.mxu0 0.0
          %1624 = vmatpush1.msra.mxu0 0.0
          %1625 = vmatprep.subr.mxu0 0.0
          %1626 = vmatpush1.msra.mxu0 0.0
          %1627 = vmatprep.subr.mxu0 0.0
          %1628 = vmatpush1.msra.mxu0 0.0
          %1629 = vmatprep.mubr.f32.mxu0 0.0
          %1630 = vmatmul.mubr.f32.gmra.mrb[0].mxu0 %v1554
          %v1631 = vpop.f32.mrb[0].mxu0
          %v1632 = vadd.f32 %v649, %v1631
          %v1633 = vpop.f32.mrb[0].mxu0
          %1634 = vdwg.mxu0
          %v1635 = vtanh.pop %v1632
          %v1636 = vmul.f32 %v1635, %v657
          %1637 = vadd.xlane.f32.xlu0 %v1636
          %v1638 = vpop.xlane.xlu0 %1637
          %v1639 = vmax.f32 %v1500, %v1638
          %v1640 = vsub.f32 %v1500, %v1639
          %v1641 = vmul.f32 %v1640, 1.442695
          %v1642 = vpow.pop %v1641
          %v1643 = vsub.f32 %v1638, %v1639
          %v1644 = vmul.f32 %v1643, 1.442695
          %v1645 = vpow.pop %v1644
          %v1646 = vmul.f32 %v1642, %v1508
          %v1647 = vadd.f32 %v1646, %v1645
          %1649 = vset.pattern.permute.xlu0 0
          %1650 = vperm.xlu0 %1649, %v1642
          %v1651 = vpop.permute.xlu0 %1650
          %v1653 = vmul.f32 %v1651, %v1521
          %1655 = vset.pattern.permute.xlu0 0
          %1656 = vperm.xlu0 %1655, %v1645
          %v1657 = vpop.permute.xlu0 %1656
          %v1659 = vmul.f32 %v1657, %v1554
          %v1660 = vadd.f32 %v1653, %v1659
          %1662 = vset.pattern.permute.xlu0 0
          %1663 = vperm.xlu0 %1662, %v1647
          %v1664 = vpop.permute.xlu0 %1663
          %v1666 = vrcp.pop %v1664
          %v1667 = vmul.f32 %v1660, %v1666
          %v1668 = vld [vmem:[#allocation16] sm:$0x1]
          %v1670 = vlaneseq
          %v1671 = vshrl.u32 %v1670, 7
          %v1672 = vsub.s32 0, %v1671
          %v1673 = vrot.slane %v1668, %v1672
          %v1675 = vmul.f32 %v1667, %v1673
          %1676 = vadd.xlane.f32.xlu0 %v1675
          %v1677 = vpop.xlane.xlu0 %1676
          %v1678 = vld [vmem:[#allocation7] sm:$0x1]
          %v1680 = vlaneseq
          %v1681 = vshrl.u32 %v1680, 7
          %v1682 = vsub.s32 0, %v1681
          %v1683 = vrot.slane %v1678, %v1682
          %v1685 = vadd.f32 %v1677, %v1683
          %1686 = vst.msk [vmem:[#allocation17] sm:$0xff] %vm1557, %v1685
        $region72: #{tpu_custom_call.1} parent=43 // pred_fallthru
          _
        // Predicated region
        $region73: #{tpu_custom_call.1} parent=43 // pred_check
          %p1687 = pneg %p188
        $region74: #{tpu_custom_call.1} parent=43 // pred_check_branch
          %1689 = sbr.rel (%p1687) target = $region76
        $region75: #{tpu_custom_call.1} parent=43 // pred_region
          %s1691 = ssub.s32 128, 128
          %1692 = vsyncadd [#allocation10], %s1691
          %s1693 = smul.addr %s29, 128
          %s1694 = scalar_lea.hbm %s6, %s1693
          %s1696 = sshll.u32 [#allocation17], 4
          %s1697 = int_to_ptr.vmem [resolvable:$true] %s1696
          %1699 = dma.vmem_to_hbm [thread:$0]  %s1697, 128, %s1694, [#allocation10]
        $region76: #{tpu_custom_call.1} parent=43 // pred_fallthru
          _
        // Predicated region
        $region77: #{tpu_custom_call.1} parent=43 // pred_check
          %p1700 = pneg %p188
        $region78: #{tpu_custom_call.1} parent=43 // pred_check_branch
          %1702 = sbr.rel (%p1700) target = $region80
        $region79: #{tpu_custom_call.1} parent=43 // pred_region
          %1703 = dma.done [#allocation10], 128
        $region80: #{tpu_custom_call.1} parent=43 // pred_fallthru
          _
      $region44: #{tpu_custom_call.1} parent=5 // pred_fallthru
        _
      %p1704 = scmp.le.s32.totalorder 2, %s20
      // Predicated region
      $region81: #{tpu_custom_call.1} parent=5 // pred_check
        %p1705 = pneg %p1704
      $region82: #{tpu_custom_call.1} parent=5 // pred_check_branch
        %1707 = sbr.rel (%p1705) target = $region84
      $region83: #{tpu_custom_call.1} parent=5 // pred_region
        %s1708 = ssub.s32 %s20, 2
      $region84: #{tpu_custom_call.1} parent=5 // pred_fallthru
        _
    $region6: #{tpu_custom_call.1} parent=1 // loop_footer
      %s24 = sadd.s32 1, %s20
    $region7: #{tpu_custom_call.1} parent=1 // loop_footer_branch
      %19 = sbr.rel target = $region3
    $region8: #{tpu_custom_call.1} parent=1 // loop_exit
      _
    %1709 = vsyncpa [#allocation9], 1
    %s1710 = scalar_lea.sflag [#allocation9], 1
    %1711 = vsyncpa %s1710, 1
    %1712 = vsyncpa [#allocation12], 1
    %1713 = vsyncpa [#allocation15], 1
    %1714 = vsyncpa [#allocation10], 1
    %s1715 = scalar_lea.sflag [#allocation10], 1
    %1716 = vsyncpa %s1715, 1

// kernel: tpu_custom_call.1
$region0: #{tpu_custom_call.1}
  #allocation0 [shape = 'u32[]', space=smem, size = 0x4, offset = 0x4, fixed_abs, tag = 'smem constant byte address 0x4 - core index']
  #allocation1 [shape = 'u32[144,128]{1,0:T(1,128)}', space=vmem, size = 0x12000, scoped, tag = 'internal scratch']
  #allocation2 [shape = 'f32[8,128]{1,0:T(8,128)}', space=vmem, size = 0x1000, scoped, tag = 'scratch operand']
  #allocation3 [shape = 'f32[8,128]{1,0:T(8,128)}', space=vmem, size = 0x1000, scoped, tag = 'scratch operand']
  #allocation4 [shape = 'f32[8,1]{1,0:T(8,128)}', space=vmem, size = 0x1000, scoped, tag = 'scratch operand']
  #allocation5 [shape = 'f32[8,1]{1,0:T(8,128)}', space=vmem, size = 0x1000, scoped, tag = 'scratch operand']
  #allocation6 [shape = 'f32[8,128]{1,0:T(8,128)}', space=vmem, size = 0x1000, scoped, tag = 'scratch operand']
  #allocation7 [shape = 'f32[1,1]{1,0:T(1,128)S(1)}', space=vmem, size = 0x200, scoped, tag = 'scoped memory for tpu_custom_call.1']
  %s0 = inlined_call_operand.hbm [shape: f32[8,8,512], index: 0, kind: input, shape index: {}]
  %s1 = inlined_call_operand.hbm [shape: f32[128,640], index: 1, kind: input, shape index: {}]
  %s2 = inlined_call_operand.hbm [shape: f32[1,128], index: 2, kind: input, shape index: {}]
  %s3 = inlined_call_operand.hbm [shape: f32[1,128], index: 3, kind: input, shape index: {}]
  %s4 = inlined_call_operand.hbm [shape: f32[1,128], index: 4, kind: input, shape index: {}]
  %s5 = inlined_call_operand.<no memory space> [shape: f32[1,1], index: 5, kind: input, shape index: {}]
  %s6 = inlined_call_operand.hbm [shape: f32[8,1], index: 6, kind: output, shape index: {}]
  %s7 = sld [smem:[#allocation0]]
  $region85: #{tpu_custom_call.1} parent=0
    _
  %s9 = ssub.s32 1, %s7
  %s10 = scalar_select 0, %s9, %s7
  %v11 = vstv %s5
  %12 = vst [vmem:[#allocation7] sm:$0x1] %v11
  $region1: #{tpu_custom_call.1} parent=0
    #allocation8 [shape = 'u8[131072]{0}', space=vmem, size = 0x20000, scoped, tag = 'input window, operand 0']
    #allocation9 [shape = 's32[2]{0}', space=sflag, size = 0x8, scoped, tag = 'scoped memory for tpu_custom_call.1']
    #allocation10 [shape = 's32[2]{0}', space=sflag, size = 0x8, scoped, tag = 'scoped memory for tpu_custom_call.1']
    #allocation11 [shape = 'u8[327680]{0}', space=vmem, size = 0x50000, scoped, tag = 'input window, operand 1, single buffered']
    #allocation12 [shape = 's32[1]{0}', space=sflag, size = 0x4, scoped, tag = 'scoped memory for tpu_custom_call.1']
    #allocation13 [shape = 'u8[512]{0}', space=vmem, size = 0x400, scoped, tag = 'input window, operand 2, single buffered']
    #allocation14 [shape = 'u8[512]{0}', space=vmem, size = 0x400, scoped, tag = 'input window, operand 3, single buffered']
    #allocation15 [shape = 's32[1]{0}', space=sflag, size = 0x4, scoped, tag = 'scoped memory for tpu_custom_call.1']
    #allocation16 [shape = 'u8[512]{0}', space=vmem, size = 0x400, scoped, tag = 'input window, operand 4, single buffered']
    #allocation17 [shape = 'u8[4096]{0}', space=vmem, size = 0x1000, scoped, tag = 'output window, operand 0, single buffered']
    %13 = vsyncpa [#allocation9], 0
    %s14 = scalar_lea.sflag [#allocation9], 1
    %15 = vsyncpa %s14, 0
    %16 = vsyncpa [#allocation12], 0
    %17 = vsyncpa [#allocation15], 0
    %18 = vsyncpa [#allocation10], 0
    loop: start=0, step=1, limit=4
    $region2: #{tpu_custom_call.1} parent=1 // loop_pre_header
      _
    $region3: #{tpu_custom_call.1} parent=1 // loop_header
      %s20 = sphi 0, %s24
      %p21 = scmp.ge.s32.totalorder %s20, 4
      %s27 = sphi 0, %s39
      %s28 = sphi 0, %s35
      %s29 = sphi 0, %s27
      %s30 = sphi 0, %s28
      %s31 = sphi 0, %s29
      %s32 = sphi 0, %s30
      %s44 = sphi 0, %s46
      %s47 = sphi 0, %s44
      %s48 = sphi 0, %s47
      %s64 = sphi 0, %s48
      %s68 = sphi 0, %s68
      %s70 = sphi 0, %s68
      %s71 = sphi 0, %s70
      %s85 = sphi 0, %s71
      %s89 = sphi 0, %s89
      %s91 = sphi 0, %s89
      %s92 = sphi 0, %s91
      %s106 = sphi 0, %s92
      %s110 = sphi 0, %s110
      %s112 = sphi 0, %s110
      %s113 = sphi 0, %s112
      %s127 = sphi 0, %s113
      %s131 = sphi 0, %s131
      %s133 = sphi 0, %s131
      %s134 = sphi 0, %s133
      %s148 = sphi 0, %s134
      %s152 = sphi 0, %s152
      %s154 = sphi 0, %s152
      %s155 = sphi 0, %s154
      %s169 = sphi 0, %s155
      %s175 = sphi 0, %s177
      %s178 = sphi 0, %s175
      %s179 = sphi 0, %s178
      %s195 = sphi 0, %s179
    $region4: #{tpu_custom_call.1} parent=1 // loop_header_branch
      %23 = sbr.rel (%p21) target = $region8
    $region5: #{tpu_custom_call.1} parent=1 // loop_body
      %s25 = ssub.s32 %s20, 1
      %s26 = ssub.s32 %s20, 2
      %s33 = sadd.s32 1, %s28
      %p34 = scmp.ge.s32.totalorder %s33, 2
      %s35 = scalar_select %p34, 0, %s33
      %s36 = sadd.s32 1, %s27
      %s37 = scalar_select %p34, %s36, %s27
      %p38 = scmp.ge.s32.totalorder %s37, 1
      %s39 = scalar_select %p38, 0, %s37
      %s40 = ssub.s32 %s28, %s35
      %s41 = ssub.s32 %s27, %s39
      %s42 = sor.u32 %s40, %s41
      %p43 = scmp.eq.s32.totalorder %s42, 0
      %s45 = sadd.s32 %s44, 1
      %s46 = scalar_select %p43, %s44, %s45
      %p49 = pneg %p43
      %p50 = scmp.eq.s32.totalorder %s20, 1
      %p51 = por %p49, %p50
      %p52 = scmp.ne.s32.totalorder %s44, %s47
      %p53 = scmp.eq.s32.totalorder %s20, 0
      %p54 = por %p52, %p53
      %p55 = scmp.ne.s32.totalorder %s44, %s47
      %p56 = scmp.eq.s32.totalorder %s25, 1
      %p57 = por %p55, %p56
      %p58 = scmp.ne.s32.totalorder %s47, %s48
      %p59 = scmp.eq.s32.totalorder %s25, 0
      %p60 = por %p58, %p59
      %p61 = scmp.ne.s32.totalorder %s47, %s48
      %p62 = scmp.eq.s32.totalorder %s26, 1
      %p63 = por %p61, %p62
      %p65 = scmp.ne.s32.totalorder %s48, %s64
      %p66 = scmp.eq.s32.totalorder %s26, 0
      %p67 = por %p65, %p66
      %s69 = sadd.s32 %s68, 1
      %p72 = scmp.eq.s32.totalorder %s20, 1
      %p73 = scmp.ne.s32.totalorder %s68, %s70
      %p74 = scmp.eq.s32.totalorder %s20, 0
      %p75 = por %p73, %p74
      %p76 = scmp.ne.s32.totalorder %s68, %s70
      %p77 = scmp.eq.s32.totalorder %s25, 1
      %p78 = por %p76, %p77
      %p79 = scmp.ne.s32.totalorder %s70, %s71
      %p80 = scmp.eq.s32.totalorder %s25, 0
      %p81 = por %p79, %p80
      %p82 = scmp.ne.s32.totalorder %s70, %s71
      %p83 = scmp.eq.s32.totalorder %s26, 1
      %p84 = por %p82, %p83
      %p86 = scmp.ne.s32.totalorder %s71, %s85
      %p87 = scmp.eq.s32.totalorder %s26, 0
      %p88 = por %p86, %p87
      %s90 = sadd.s32 %s89, 1
      %p93 = scmp.eq.s32.totalorder %s20, 1
      %p94 = scmp.ne.s32.totalorder %s89, %s91
      %p95 = scmp.eq.s32.totalorder %s20, 0
      %p96 = por %p94, %p95
      %p97 = scmp.ne.s32.totalorder %s89, %s91
      %p98 = scmp.eq.s32.totalorder %s25, 1
      %p99 = por %p97, %p98
      %p100 = scmp.ne.s32.totalorder %s91, %s92
      %p101 = scmp.eq.s32.totalorder %s25, 0
      %p102 = por %p100, %p101
      %p103 = scmp.ne.s32.totalorder %s91, %s92
      %p104 = scmp.eq.s32.totalorder %s26, 1
      %p105 = por %p103, %p104
      %p107 = scmp.ne.s32.totalorder %s92, %s106
      %p108 = scmp.eq.s32.totalorder %s26, 0
      %p109 = por %p107, %p108
      %s111 = sadd.s32 %s110, 1
      %p114 = scmp.eq.s32.totalorder %s20, 1
      %p115 = scmp.ne.s32.totalorder %s110, %s112
      %p116 = scmp.eq.s32.totalorder %s20, 0
      %p117 = por %p115, %p116
      %p118 = scmp.ne.s32.totalorder %s110, %s112
      %p119 = scmp.eq.s32.totalorder %s25, 1
      %p120 = por %p118, %p119
      %p121 = scmp.ne.s32.totalorder %s112, %s113
      %p122 = scmp.eq.s32.totalorder %s25, 0
      %p123 = por %p121, %p122
      %p124 = scmp.ne.s32.totalorder %s112, %s113
      %p125 = scmp.eq.s32.totalorder %s26, 1
      %p126 = por %p124, %p125
      %p128 = scmp.ne.s32.totalorder %s113, %s127
      %p129 = scmp.eq.s32.totalorder %s26, 0
      %p130 = por %p128, %p129
      %s132 = sadd.s32 %s131, 1
      %p135 = scmp.eq.s32.totalorder %s20, 1
      %p136 = scmp.ne.s32.totalorder %s131, %s133
      %p137 = scmp.eq.s32.totalorder %s20, 0
      %p138 = por %p136, %p137
      %p139 = scmp.ne.s32.totalorder %s131, %s133
      %p140 = scmp.eq.s32.totalorder %s25, 1
      %p141 = por %p139, %p140
      %p142 = scmp.ne.s32.totalorder %s133, %s134
      %p143 = scmp.eq.s32.totalorder %s25, 0
      %p144 = por %p142, %p143
      %p145 = scmp.ne.s32.totalorder %s133, %s134
      %p146 = scmp.eq.s32.totalorder %s26, 1
      %p147 = por %p145, %p146
      %p149 = scmp.ne.s32.totalorder %s134, %s148
      %p150 = scmp.eq.s32.totalorder %s26, 0
      %p151 = por %p149, %p150
      %s153 = sadd.s32 %s152, 1
      %p156 = scmp.eq.s32.totalorder %s20, 1
      %p157 = scmp.ne.s32.totalorder %s152, %s154
      %p158 = scmp.eq.s32.totalorder %s20, 0
      %p159 = por %p157, %p158
      %p160 = scmp.ne.s32.totalorder %s152, %s154
      %p161 = scmp.eq.s32.totalorder %s25, 1
      %p162 = por %p160, %p161
      %p163 = scmp.ne.s32.totalorder %s154, %s155
      %p164 = scmp.eq.s32.totalorder %s25, 0
      %p165 = por %p163, %p164
      %p166 = scmp.ne.s32.totalorder %s154, %s155
      %p167 = scmp.eq.s32.totalorder %s26, 1
      %p168 = por %p166, %p167
      %p170 = scmp.ne.s32.totalorder %s155, %s169
      %p171 = scmp.eq.s32.totalorder %s26, 0
      %p172 = por %p170, %p171
      %s173 = ssub.s32 %s27, %s39
      %p174 = scmp.eq.s32.totalorder %s173, 0
      %s176 = sadd.s32 %s175, 1
      %s177 = scalar_select %p174, %s175, %s176
      %p180 = pneg %p174
      %p181 = scmp.eq.s32.totalorder %s20, 1
      %p182 = por %p180, %p181
      %p183 = scmp.ne.s32.totalorder %s175, %s178
      %p184 = scmp.eq.s32.totalorder %s20, 0
      %p185 = por %p183, %p184
      %p186 = scmp.ne.s32.totalorder %s175, %s178
      %p187 = scmp.eq.s32.totalorder %s25, 1
      %p188 = por %p186, %p187
      %p189 = scmp.ne.s32.totalorder %s178, %s179
      %p190 = scmp.eq.s32.totalorder %s25, 0
      %p191 = por %p189, %p190
      %p192 = scmp.ne.s32.totalorder %s178, %s179
      %p193 = scmp.eq.s32.totalorder %s26, 1
      %p194 = por %p192, %p193
      %p196 = scmp.ne.s32.totalorder %s179, %s195
      %p197 = scmp.eq.s32.totalorder %s26, 0
      %p198 = por %p196, %p197
      %p199 = scmp.le.s32.totalorder 1, %s20
      %p200 = scmp.lt.s32.totalorder %s20, 3
      %p201 = pnand %p199, %p200
      %p202 = pneg %p201
      // Predicated region
      $region9: #{tpu_custom_call.1} parent=5 // pred_check
        _
      $region10: #{tpu_custom_call.1} parent=5 // pred_check_branch
        %204 = sbr.rel (%p201) target = $region12
      $region11: #{tpu_custom_call.1} parent=5 // pred_region
        %s205 = ssub.s32 %s20, 1
        // Predicated region
        $region13: #{tpu_custom_call.1} parent=11 // pred_check
          %p206 = pneg %p81
        $region14: #{tpu_custom_call.1} parent=11 // pred_check_branch
          %208 = sbr.rel (%p206) target = $region16
        $region15: #{tpu_custom_call.1} parent=11 // pred_region
          %s210 = ssub.s32 10240, 10240
          %211 = vsyncadd [#allocation12], %s210
          %s212 = sshll.u32 [#allocation11], 4
          %s213 = int_to_ptr.vmem [resolvable:$true] %s212
          %218 = dma.hbm_to_vmem [thread:$0]  %s1, 10240, %s213, [#allocation12], 640, 640, 40
        $region16: #{tpu_custom_call.1} parent=11 // pred_fallthru
          _
        // Predicated region
        $region17: #{tpu_custom_call.1} parent=11 // pred_check
          %p219 = pneg %p102
        $region18: #{tpu_custom_call.1} parent=11 // pred_check_branch
          %221 = sbr.rel (%p219) target = $region20
        $region19: #{tpu_custom_call.1} parent=11 // pred_region
          %s223 = ssub.s32 16, 16
          %224 = vsyncadd [#allocation12], %s223
          %s226 = sshll.u32 [#allocation13], 4
          %s227 = int_to_ptr.vmem [resolvable:$true] %s226
          %229 = dma.hbm_to_vmem [thread:$0]  %s2, 16, %s227, [#allocation12]
        $region20: #{tpu_custom_call.1} parent=11 // pred_fallthru
          _
        // Predicated region
        $region21: #{tpu_custom_call.1} parent=11 // pred_check
          %p230 = pneg %p123
        $region22: #{tpu_custom_call.1} parent=11 // pred_check_branch
          %232 = sbr.rel (%p230) target = $region24
        $region23: #{tpu_custom_call.1} parent=11 // pred_region
          %s234 = ssub.s32 16, 16
          %235 = vsyncadd [#allocation15], %s234
          %s237 = sshll.u32 [#allocation14], 4
          %s238 = int_to_ptr.vmem [resolvable:$true] %s237
          %240 = dma.hbm_to_vmem [thread:$0]  %s3, 16, %s238, [#allocation15]
        $region24: #{tpu_custom_call.1} parent=11 // pred_fallthru
          _
        // Predicated region
        $region25: #{tpu_custom_call.1} parent=11 // pred_check
          %p241 = pneg %p144
        $region26: #{tpu_custom_call.1} parent=11 // pred_check_branch
          %243 = sbr.rel (%p241) target = $region28
        $region27: #{tpu_custom_call.1} parent=11 // pred_region
          %s245 = ssub.s32 16, 16
          %246 = vsyncadd [#allocation15], %s245
          %s248 = sshll.u32 [#allocation16], 4
          %s249 = int_to_ptr.vmem [resolvable:$true] %s248
          %251 = dma.hbm_to_vmem [thread:$0]  %s4, 16, %s249, [#allocation15]
        $region28: #{tpu_custom_call.1} parent=11 // pred_fallthru
          _
        // Predicated region
        $region29: #{tpu_custom_call.1} parent=11 // pred_check
          %p252 = pneg %p165
        $region30: #{tpu_custom_call.1} parent=11 // pred_check_branch
          %254 = sbr.rel (%p252) target = $region32
        $region31: #{tpu_custom_call.1} parent=11 // pred_region
          _
        $region32: #{tpu_custom_call.1} parent=11 // pred_fallthru
          _
      $region12: #{tpu_custom_call.1} parent=5 // pred_fallthru
        _
      %p255 = scmp.lt.s32.totalorder %s20, 2
      // Predicated region
      $region33: #{tpu_custom_call.1} parent=5 // pred_check
        %p256 = pneg %p255
      $region34: #{tpu_custom_call.1} parent=5 // pred_check_branch
        %258 = sbr.rel (%p256) target = $region36
      $region35: #{tpu_custom_call.1} parent=5 // pred_region
        // Predicated region
        $region37: #{tpu_custom_call.1} parent=35 // pred_check
          %p259 = pneg %p54
        $region38: #{tpu_custom_call.1} parent=35 // pred_check_branch
          %261 = sbr.rel (%p259) target = $region40
        $region39: #{tpu_custom_call.1} parent=35 // pred_region
          %s262 = sand.u32 %s44, 1
          %s263 = scalar_lea.sflag [#allocation9], %s262
          %s264 = sand.u32 %s44, 1
          %s265 = smul.addr %s264, 128
          %s266 = scalar_lea.vmem [#allocation8], %s265
          %s267 = smul.u32 4, %s28
          %s269 = ssub.s32 2048, 2048
          %270 = vsyncadd %s263, %s269
          %s271 = smul.addr %s27, 4
          %s272 = smul.addr %s267, 4
          %s273 = sadd.s32 %s271, %s272
          %s274 = smul.addr %s273, 128
          %s275 = scalar_lea.hbm %s0, %s274
          %s276 = sshll.u32 %s266, 4
          %s277 = int_to_ptr.vmem [resolvable:$true] %s276
          %282 = dma.hbm_to_vmem [thread:$0]  %s275, 2048, %s277, %s263, 512, 512, 32
        $region40: #{tpu_custom_call.1} parent=35 // pred_fallthru
          _
      $region36: #{tpu_custom_call.1} parent=5 // pred_fallthru
        _
      %p283 = scmp.le.s32.totalorder 1, %s20
      %p284 = scmp.lt.s32.totalorder %s20, 3
      %p285 = pnand %p283, %p284
      %p286 = pneg %p285
      // Predicated region
      $region41: #{tpu_custom_call.1} parent=5 // pred_check
        _
      $region42: #{tpu_custom_call.1} parent=5 // pred_check_branch
        %288 = sbr.rel (%p285) target = $region44
      $region43: #{tpu_custom_call.1} parent=5 // pred_region
        %s289 = ssub.s32 %s20, 1
        %s290 = sand.u32 %s47, 1
        %s291 = scalar_lea.sflag [#allocation9], %s290
        %s292 = sand.u32 %s47, 1
        %s293 = smul.addr %s292, 128
        %s294 = scalar_lea.vmem [#allocation8], %s293
        // Predicated region
        $region45: #{tpu_custom_call.1} parent=43 // pred_check
          %p295 = pneg %p60
        $region46: #{tpu_custom_call.1} parent=43 // pred_check_branch
          %297 = sbr.rel (%p295) target = $region48
        $region47: #{tpu_custom_call.1} parent=43 // pred_region
          %298 = dma.done %s291, 2048
        $region48: #{tpu_custom_call.1} parent=43 // pred_fallthru
          _
        // Predicated region
        $region49: #{tpu_custom_call.1} parent=43 // pred_check
          %p299 = pneg %p81
        $region50: #{tpu_custom_call.1} parent=43 // pred_check_branch
          %301 = sbr.rel (%p299) target = $region52
        $region51: #{tpu_custom_call.1} parent=43 // pred_region
          %302 = dma.done [#allocation12], 10240
        $region52: #{tpu_custom_call.1} parent=43 // pred_fallthru
          _
        // Predicated region
        $region53: #{tpu_custom_call.1} parent=43 // pred_check
          %p303 = pneg %p102
        $region54: #{tpu_custom_call.1} parent=43 // pred_check_branch
          %305 = sbr.rel (%p303) target = $region56
        $region55: #{tpu_custom_call.1} parent=43 // pred_region
          %306 = dma.done [#allocation12], 16
        $region56: #{tpu_custom_call.1} parent=43 // pred_fallthru
          _
        // Predicated region
        $region57: #{tpu_custom_call.1} parent=43 // pred_check
          %p307 = pneg %p123
        $region58: #{tpu_custom_call.1} parent=43 // pred_check_branch
          %309 = sbr.rel (%p307) target = $region60
        $region59: #{tpu_custom_call.1} parent=43 // pred_region
          %310 = dma.done [#allocation15], 16
        $region60: #{tpu_custom_call.1} parent=43 // pred_fallthru
          _
        // Predicated region
        $region61: #{tpu_custom_call.1} parent=43 // pred_check
          %p311 = pneg %p144
        $region62: #{tpu_custom_call.1} parent=43 // pred_check_branch
          %313 = sbr.rel (%p311) target = $region64
        $region63: #{tpu_custom_call.1} parent=43 // pred_region
          %314 = dma.done [#allocation15], 16
        $region64: #{tpu_custom_call.1} parent=43 // pred_fallthru
          _
        %s315 = sand.u32 %s47, 1
        %s316 = scalar_lea.sflag [#allocation9], %s315
        %s317 = sand.u32 %s47, 1
        %s318 = smul.addr %s317, 128
        %s319 = scalar_lea.vmem [#allocation8], %s318
        %p320 = pneg %p60
        %p321 = pneg %p57
        %p322 = pneg %p81
        %p323 = pneg %p78
        %p324 = pneg %p102
        %p325 = pneg %p99
        %p326 = pneg %p123
        %p327 = pneg %p120
        %p328 = pneg %p144
        %p329 = pneg %p141
        %p330 = pneg %p165
        %p331 = pneg %p162
        %p332 = pneg %p191
        %p333 = pneg %p188
        %s334 = smul.u32 4, %s30
        %p335 = scmp.eq.s32.totalorder %s30, 0
        // Predicated region
        $region65: #{tpu_custom_call.1} parent=43 // pred_check
          %p336 = pneg %p335
        $region66: #{tpu_custom_call.1} parent=43 // pred_check_branch
          %338 = sbr.rel (%p336) target = $region68
        $region67: #{tpu_custom_call.1} parent=43 // pred_region
          %339 = vst [vmem:[#allocation2] sm:$0xff] 0.0
          %340 = vst [vmem:[#allocation3] sm:$0xff] 0.0
          %vm341 = vcmask 7168
          %342 = vst.msk [vmem:[#allocation4] sm:$0xff] %vm341, -1e+30
          %343 = vst.msk [vmem:[#allocation5] sm:$0xff] %vm341, 0.0
          %344 = vst [vmem:[#allocation6] sm:$0xff] 0.0
        $region68: #{tpu_custom_call.1} parent=43 // pred_fallthru
          _
        %v345 = vld [vmem:[#allocation11] sm:$0xff]
        %v346 = vld [vmem:[#allocation11 + $0x8] sm:$0xff]
        %v347 = vld [vmem:[#allocation11 + $0x10] sm:$0xff]
        %v348 = vld [vmem:[#allocation11 + $0x18] sm:$0xff]
        %v349 = vld [vmem:[#allocation11 + $0x20] sm:$0xff]
        %v350 = vld [vmem:[#allocation11 + $0x28] sm:$0xff]
        %v351 = vld [vmem:[#allocation11 + $0x30] sm:$0xff]
        %v352 = vld [vmem:[#allocation11 + $0x38] sm:$0xff]
        %v353 = vld [vmem:[#allocation11 + $0x40] sm:$0xff]
        %v354 = vld [vmem:[#allocation11 + $0x48] sm:$0xff]
        %v355 = vld [vmem:[#allocation11 + $0x50] sm:$0xff]
        %v356 = vld [vmem:[#allocation11 + $0x58] sm:$0xff]
        %v357 = vld [vmem:[#allocation11 + $0x60] sm:$0xff]
        %v358 = vld [vmem:[#allocation11 + $0x68] sm:$0xff]
        %v359 = vld [vmem:[#allocation11 + $0x70] sm:$0xff]
        %v360 = vld [vmem:[#allocation11 + $0x78] sm:$0xff]
        %v361 = vld [vmem:[#allocation11 + $0x80] sm:$0xff]
        %v362 = vld [vmem:[#allocation11 + $0x88] sm:$0xff]
        %v363 = vld [vmem:[#allocation11 + $0x90] sm:$0xff]
        %v364 = vld [vmem:[#allocation11 + $0x98] sm:$0xff]
        %v365 = vld [vmem:[#allocation11 + $0xa0] sm:$0xff]
        %v366 = vld [vmem:[#allocation11 + $0xa8] sm:$0xff]
        %v367 = vld [vmem:[#allocation11 + $0xb0] sm:$0xff]
        %v368 = vld [vmem:[#allocation11 + $0xb8] sm:$0xff]
        %v369 = vld [vmem:[#allocation11 + $0xc0] sm:$0xff]
        %v370 = vld [vmem:[#allocation11 + $0xc8] sm:$0xff]
        %v371 = vld [vmem:[#allocation11 + $0xd0] sm:$0xff]
        %v372 = vld [vmem:[#allocation11 + $0xd8] sm:$0xff]
        %v373 = vld [vmem:[#allocation11 + $0xe0] sm:$0xff]
        %v374 = vld [vmem:[#allocation11 + $0xe8] sm:$0xff]
        %v375 = vld [vmem:[#allocation11 + $0xf0] sm:$0xff]
        %v376 = vld [vmem:[#allocation11 + $0xf8] sm:$0xff]
        %v377 = vld [vmem:[#allocation11 + $0x100] sm:$0xff]
        %v378 = vld [vmem:[#allocation11 + $0x108] sm:$0xff]
        %v379 = vld [vmem:[#allocation11 + $0x110] sm:$0xff]
        %v380 = vld [vmem:[#allocation11 + $0x118] sm:$0xff]
        %v381 = vld [vmem:[#allocation11 + $0x120] sm:$0xff]
        %v382 = vld [vmem:[#allocation11 + $0x128] sm:$0xff]
        %v383 = vld [vmem:[#allocation11 + $0x130] sm:$0xff]
        %v384 = vld [vmem:[#allocation11 + $0x138] sm:$0xff]
        %v385 = vld [vmem:[#allocation11 + $0x140] sm:$0xff]
        %v386 = vld [vmem:[#allocation11 + $0x148] sm:$0xff]
        %v387 = vld [vmem:[#allocation11 + $0x150] sm:$0xff]
        %v388 = vld [vmem:[#allocation11 + $0x158] sm:$0xff]
        %v389 = vld [vmem:[#allocation11 + $0x160] sm:$0xff]
        %v390 = vld [vmem:[#allocation11 + $0x168] sm:$0xff]
        %v391 = vld [vmem:[#allocation11 + $0x170] sm:$0xff]
        %v392 = vld [vmem:[#allocation11 + $0x178] sm:$0xff]
        %v393 = vld [vmem:[#allocation11 + $0x180] sm:$0xff]
        %v394 = vld [vmem:[#allocation11 + $0x188] sm:$0xff]
        %v395 = vld [vmem:[#allocation11 + $0x190] sm:$0xff]
        %v396 = vld [vmem:[#allocation11 + $0x198] sm:$0xff]
        %v397 = vld [vmem:[#allocation11 + $0x1a0] sm:$0xff]
        %v398 = vld [vmem:[#allocation11 + $0x1a8] sm:$0xff]
        %v399 = vld [vmem:[#allocation11 + $0x1b0] sm:$0xff]
        %v400 = vld [vmem:[#allocation11 + $0x1b8] sm:$0xff]
        %v401 = vld [vmem:[#allocation11 + $0x1c0] sm:$0xff]
        %v402 = vld [vmem:[#allocation11 + $0x1c8] sm:$0xff]
        %v403 = vld [vmem:[#allocation11 + $0x1d0] sm:$0xff]
        %v404 = vld [vmem:[#allocation11 + $0x1d8] sm:$0xff]
        %v405 = vld [vmem:[#allocation11 + $0x1e0] sm:$0xff]
        %v406 = vld [vmem:[#allocation11 + $0x1e8] sm:$0xff]
        %v407 = vld [vmem:[#allocation11 + $0x1f0] sm:$0xff]
        %v408 = vld [vmem:[#allocation11 + $0x1f8] sm:$0xff]
        %v409 = vld [vmem:[#allocation11 + $0x200] sm:$0xff]
        %v410 = vld [vmem:[#allocation11 + $0x208] sm:$0xff]
        %v411 = vld [vmem:[#allocation11 + $0x210] sm:$0xff]
        %v412 = vld [vmem:[#allocation11 + $0x218] sm:$0xff]
        %v413 = vld [vmem:[#allocation11 + $0x220] sm:$0xff]
        %v414 = vld [vmem:[#allocation11 + $0x228] sm:$0xff]
        %v415 = vld [vmem:[#allocation11 + $0x230] sm:$0xff]
        %v416 = vld [vmem:[#allocation11 + $0x238] sm:$0xff]
        %v417 = vld [vmem:[#allocation11 + $0x240] sm:$0xff]
        %v418 = vld [vmem:[#allocation11 + $0x248] sm:$0xff]
        %v419 = vld [vmem:[#allocation11 + $0x250] sm:$0xff]
        %v420 = vld [vmem:[#allocation11 + $0x258] sm:$0xff]
        %v421 = vld [vmem:[#allocation11 + $0x260] sm:$0xff]
        %v422 = vld [vmem:[#allocation11 + $0x268] sm:$0xff]
        %v423 = vld [vmem:[#allocation11 + $0x270] sm:$0xff]
        %v424 = vld [vmem:[#allocation11 + $0x278] sm:$0xff]
        %v425 = vld [vmem:[#allocation13] sm:$0x1]
        %v426 = vld [vmem:[#allocation14] sm:$0x1]
        %s427 = smul.u32 %s30, 4
        %v428 = vld [vmem:[#allocation2] sm:$0xff]
        %v429 = vld [vmem:[#allocation3] sm:$0xff]
        %v430 = vld [vmem:[#allocation4] sm:$0xff]
        %v431 = vld [vmem:[#allocation5] sm:$0xff]
        %v432 = vld [vmem:[#allocation6] sm:$0xff]
        %433 = vmatprep.subr.mxu0 %v346
        %434 = vmatpush1.msra.mxu0 %v345
        %435 = vmatprep.subr.mxu0 %v351
        %436 = vmatpush1.msra.mxu0 %v350
        %437 = vmatprep.subr.mxu0 %v356
        %438 = vmatpush1.msra.mxu0 %v355
        %439 = vmatprep.subr.mxu0 %v361
        %440 = vmatpush1.msra.mxu0 %v360
        %441 = vmatprep.subr.mxu0 %v366
        %442 = vmatpush1.msra.mxu0 %v365
        %443 = vmatprep.subr.mxu0 %v371
        %444 = vmatpush1.msra.mxu0 %v370
        %445 = vmatprep.subr.mxu0 %v376
        %446 = vmatpush1.msra.mxu0 %v375
        %447 = vmatprep.subr.mxu0 %v381
        %448 = vmatpush1.msra.mxu0 %v380
        %449 = vmatprep.subr.mxu0 %v386
        %450 = vmatpush1.msra.mxu0 %v385
        %451 = vmatprep.subr.mxu0 %v391
        %452 = vmatpush1.msra.mxu0 %v390
        %453 = vmatprep.subr.mxu0 %v396
        %454 = vmatpush1.msra.mxu0 %v395
        %455 = vmatprep.subr.mxu0 %v401
        %456 = vmatpush1.msra.mxu0 %v400
        %457 = vmatprep.subr.mxu0 %v406
        %458 = vmatpush1.msra.mxu0 %v405
        %459 = vmatprep.subr.mxu0 %v411
        %460 = vmatpush1.msra.mxu0 %v410
        %461 = vmatprep.subr.mxu0 %v416
        %462 = vmatpush1.msra.mxu0 %v415
        %463 = vmatprep.subr.mxu0 %v421
        %464 = vmatpush1.msra.mxu0 %v420
        %465 = vmatprep.subr.mxu0 0.0
        %466 = vmatpush1.msra.mxu0 0.0
        %467 = vmatprep.subr.mxu0 0.0
        %468 = vmatpush1.msra.mxu0 0.0
        %469 = vmatprep.subr.mxu0 0.0
        %470 = vmatpush1.msra.mxu0 0.0
        %471 = vmatprep.subr.mxu0 0.0
        %472 = vmatpush1.msra.mxu0 0.0
        %473 = vmatprep.subr.mxu0 0.0
        %474 = vmatpush1.msra.mxu0 0.0
        %475 = vmatprep.subr.mxu0 0.0
        %476 = vmatpush1.msra.mxu0 0.0
        %477 = vmatprep.subr.mxu0 0.0
        %478 = vmatpush1.msra.mxu0 0.0
        %479 = vmatprep.subr.mxu0 0.0
        %480 = vmatpush1.msra.mxu0 0.0
        %481 = vmatprep.subr.mxu0 0.0
        %482 = vmatpush1.msra.mxu0 0.0
        %483 = vmatprep.subr.mxu0 0.0
        %484 = vmatpush1.msra.mxu0 0.0
        %485 = vmatprep.subr.mxu0 0.0
        %486 = vmatpush1.msra.mxu0 0.0
        %487 = vmatprep.subr.mxu0 0.0
        %488 = vmatpush1.msra.mxu0 0.0
        %489 = vmatprep.subr.mxu0 0.0
        %490 = vmatpush1.msra.mxu0 0.0
        %491 = vmatprep.subr.mxu0 0.0
        %492 = vmatpush1.msra.mxu0 0.0
        %493 = vmatprep.subr.mxu0 0.0
        %494 = vmatpush1.msra.mxu0 0.0
        %495 = vmatprep.subr.mxu0 0.0
        %496 = vmatpush1.msra.mxu0 0.0
        %497 = vmatprep.mubr.f32.mxu0 0.0
        %498 = vmatmul.mubr.f32.gmra.mrb[0].mxu0 %v428
        %v499 = vpop.f32.mrb[0].mxu0
        %v500 = vadd.f32 0.0, %v499
        %v501 = vpop.f32.mrb[0].mxu0
        %v502 = vadd.f32 0.0, %v501
        %503 = vdwg.mxu0
        %504 = vmatprep.subr.mxu0 %v348
        %505 = vmatpush1.msra.mxu0 %v347
        %506 = vmatprep.subr.mxu0 %v353
        %507 = vmatpush1.msra.mxu0 %v352
        %508 = vmatprep.subr.mxu0 %v358
        %509 = vmatpush1.msra.mxu0 %v357
        %510 = vmatprep.subr.mxu0 %v363
        %511 = vmatpush1.msra.mxu0 %v362
        %512 = vmatprep.subr.mxu0 %v368
        %513 = vmatpush1.msra.mxu0 %v367
        %514 = vmatprep.subr.mxu0 %v373
        %515 = vmatpush1.msra.mxu0 %v372
        %516 = vmatprep.subr.mxu0 %v378
        %517 = vmatpush1.msra.mxu0 %v377
        %518 = vmatprep.subr.mxu0 %v383
        %519 = vmatpush1.msra.mxu0 %v382
        %520 = vmatprep.subr.mxu0 %v388
        %521 = vmatpush1.msra.mxu0 %v387
        %522 = vmatprep.subr.mxu0 %v393
        %523 = vmatpush1.msra.mxu0 %v392
        %524 = vmatprep.subr.mxu0 %v398
        %525 = vmatpush1.msra.mxu0 %v397
        %526 = vmatprep.subr.mxu0 %v403
        %527 = vmatpush1.msra.mxu0 %v402
        %528 = vmatprep.subr.mxu0 %v408
        %529 = vmatpush1.msra.mxu0 %v407
        %530 = vmatprep.subr.mxu0 %v413
        %531 = vmatpush1.msra.mxu0 %v412
        %532 = vmatprep.subr.mxu0 %v418
        %533 = vmatpush1.msra.mxu0 %v417
        %534 = vmatprep.subr.mxu0 %v423
        %535 = vmatpush1.msra.mxu0 %v422
        %536 = vmatprep.subr.mxu0 0.0
        %537 = vmatpush1.msra.mxu0 0.0
        %538 = vmatprep.subr.mxu0 0.0
        %539 = vmatpush1.msra.mxu0 0.0
        %540 = vmatprep.subr.mxu0 0.0
        %541 = vmatpush1.msra.mxu0 0.0
        %542 = vmatprep.subr.mxu0 0.0
        %543 = vmatpush1.msra.mxu0 0.0
        %544 = vmatprep.subr.mxu0 0.0
        %545 = vmatpush1.msra.mxu0 0.0
        %546 = vmatprep.subr.mxu0 0.0
        %547 = vmatpush1.msra.mxu0 0.0
        %548 = vmatprep.subr.mxu0 0.0
        %549 = vmatpush1.msra.mxu0 0.0
        %550 = vmatprep.subr.mxu0 0.0
        %551 = vmatpush1.msra.mxu0 0.0
        %552 = vmatprep.subr.mxu0 0.0
        %553 = vmatpush1.msra.mxu0 0.0
        %554 = vmatprep.subr.mxu0 0.0
        %555 = vmatpush1.msra.mxu0 0.0
        %556 = vmatprep.subr.mxu0 0.0
        %557 = vmatpush1.msra.mxu0 0.0
        %558 = vmatprep.subr.mxu0 0.0
        %559 = vmatpush1.msra.mxu0 0.0
        %560 = vmatprep.subr.mxu0 0.0
        %561 = vmatpush1.msra.mxu0 0.0
        %562 = vmatprep.subr.mxu0 0.0
        %563 = vmatpush1.msra.mxu0 0.0
        %564 = vmatprep.subr.mxu0 0.0
        %565 = vmatpush1.msra.mxu0 0.0
        %566 = vmatprep.subr.mxu0 0.0
        %567 = vmatpush1.msra.mxu0 0.0
        %568 = vmatprep.mubr.f32.mxu0 0.0
        %569 = vmatmul.mubr.f32.gmra.mrb[0].mxu0 %v428
        %v570 = vpop.f32.mrb[0].mxu0
        %v571 = vadd.f32 0.0, %v570
        %v572 = vpop.f32.mrb[0].mxu0
        %v573 = vadd.f32 0.0, %v572
        %574 = vdwg.mxu0
        %575 = vmatprep.subr.mxu0 0.0
        %576 = vmatpush1.msra.mxu0 %v349
        %577 = vmatprep.subr.mxu0 0.0
        %578 = vmatpush1.msra.mxu0 %v354
        %579 = vmatprep.subr.mxu0 0.0
        %580 = vmatpush1.msra.mxu0 %v359
        %581 = vmatprep.subr.mxu0 0.0
        %582 = vmatpush1.msra.mxu0 %v364
        %583 = vmatprep.subr.mxu0 0.0
        %584 = vmatpush1.msra.mxu0 %v369
        %585 = vmatprep.subr.mxu0 0.0
        %586 = vmatpush1.msra.mxu0 %v374
        %587 = vmatprep.subr.mxu0 0.0
        %588 = vmatpush1.msra.mxu0 %v379
        %589 = vmatprep.subr.mxu0 0.0
        %590 = vmatpush1.msra.mxu0 %v384
        %591 = vmatprep.subr.mxu0 0.0
        %592 = vmatpush1.msra.mxu0 %v389
        %593 = vmatprep.subr.mxu0 0.0
        %594 = vmatpush1.msra.mxu0 %v394
        %595 = vmatprep.subr.mxu0 0.0
        %596 = vmatpush1.msra.mxu0 %v399
        %597 = vmatprep.subr.mxu0 0.0
        %598 = vmatpush1.msra.mxu0 %v404
        %599 = vmatprep.subr.mxu0 0.0
        %600 = vmatpush1.msra.mxu0 %v409
        %601 = vmatprep.subr.mxu0 0.0
        %602 = vmatpush1.msra.mxu0 %v414
        %603 = vmatprep.subr.mxu0 0.0
        %604 = vmatpush1.msra.mxu0 %v419
        %605 = vmatprep.subr.mxu0 0.0
        %606 = vmatpush1.msra.mxu0 %v424
        %607 = vmatprep.subr.mxu0 0.0
        %608 = vmatpush1.msra.mxu0 0.0
        %609 = vmatprep.subr.mxu0 0.0
        %610 = vmatpush1.msra.mxu0 0.0
        %611 = vmatprep.subr.mxu0 0.0
        %612 = vmatpush1.msra.mxu0 0.0
        %613 = vmatprep.subr.mxu0 0.0
        %614 = vmatpush1.msra.mxu0 0.0
        %615 = vmatprep.subr.mxu0 0.0
        %616 = vmatpush1.msra.mxu0 0.0
        %617 = vmatprep.subr.mxu0 0.0
        %618 = vmatpush1.msra.mxu0 0.0
        %619 = vmatprep.subr.mxu0 0.0
        %620 = vmatpush1.msra.mxu0 0.0
        %621 = vmatprep.subr.mxu0 0.0
        %622 = vmatpush1.msra.mxu0 0.0
        %623 = vmatprep.subr.mxu0 0.0
        %624 = vmatpush1.msra.mxu0 0.0
        %625 = vmatprep.subr.mxu0 0.0
        %626 = vmatpush1.msra.mxu0 0.0
        %627 = vmatprep.subr.mxu0 0.0
        %628 = vmatpush1.msra.mxu0 0.0
        %629 = vmatprep.subr.mxu0 0.0
        %630 = vmatpush1.msra.mxu0 0.0
        %631 = vmatprep.subr.mxu0 0.0
        %632 = vmatpush1.msra.mxu0 0.0
        %633 = vmatprep.subr.mxu0 0.0
        %634 = vmatpush1.msra.mxu0 0.0
        %635 = vmatprep.subr.mxu0 0.0
        %636 = vmatpush1.msra.mxu0 0.0
        %637 = vmatprep.subr.mxu0 0.0
        %638 = vmatpush1.msra.mxu0 0.0
        %639 = vmatprep.mubr.f32.mxu0 0.0
        %640 = vmatmul.mubr.f32.gmra.mrb[0].mxu0 %v428
        %v641 = vpop.f32.mrb[0].mxu0
        %v642 = vadd.f32 0.0, %v641
        %v643 = vpop.f32.mrb[0].mxu0
        %644 = vdwg.mxu0
        %v646 = vlaneseq
        %v647 = vshrl.u32 %v646, 7
        %v648 = vsub.s32 0, %v647
        %v649 = vrot.slane %v425, %v648
        %v651 = vadd.f32 %v642, %v649
        %v652 = vtanh.pop %v651
        %v654 = vlaneseq
        %v655 = vshrl.u32 %v654, 7
        %v656 = vsub.s32 0, %v655
        %v657 = vrot.slane %v426, %v656
        %v659 = vmul.f32 %v652, %v657
        %660 = vadd.xlane.f32.xlu0 %v659
        %v661 = vpop.xlane.xlu0 %660
        %p662 = scmp.ge.s32.totalorder %s427, 1
        %s663 = scalar_select %p662, 1, 0
        %v664 = vstv %s663
        %vm665 = vcmp.eq.s32.totalorder %v664, 1
        %v666 = vsel %vm665, %v661, -1e+38
        %v667 = vmax.f32 %v430, %v666
        %v668 = vsub.f32 %v430, %v667
        %v669 = vmul.f32 %v668, 1.442695
        %v670 = vpow.pop %v669
        %v671 = vsub.f32 %v666, %v667
        %v672 = vmul.f32 %v671, 1.442695
        %v673 = vpow.pop %v672
        %v674 = vmul.f32 %v670, %v431
        %v675 = vadd.f32 %v674, %v673
        %677 = vset.pattern.permute.xlu0 0
        %678 = vperm.xlu0 %677, %v670
        %v679 = vpop.permute.xlu0 %678
        %v681 = vmul.f32 %v679, %v432
        %683 = vset.pattern.permute.xlu0 0
        %684 = vperm.xlu0 %683, %v673
        %v685 = vpop.permute.xlu0 %684
        %v687 = vmul.f32 %v685, %v428
        %v688 = vadd.f32 %v681, %v687
        %v689 = vld [vmem:[%s294] sm:$0xff]
        %v690 = vld [vmem:[%s294 + $0x8] sm:$0xff]
        %v691 = vld [vmem:[%s294 + $0x10] sm:$0xff]
        %v692 = vld [vmem:[%s294 + $0x18] sm:$0xff]
        %v693 = vadd.f32 %v689, %v500
        %v694 = vadd.f32 %v690, %v502
        %v695 = vadd.f32 %v691, %v571
        %v696 = vadd.f32 %v692, %v573
        %v697 = vxor.u32 %v693, 2147483648
        %v698 = vmul.f32 %v697, 1.442695
        %v699 = vpow.pop %v698
        %v700 = vadd.f32 %v699, 1.0
        %v701 = vrcp.pop %v700
        %v702 = vmul.f32 1.0, %v701
        %v703 = vxor.u32 %v694, 2147483648
        %v704 = vmul.f32 %v703, 1.442695
        %v705 = vpow.pop %v704
        %v706 = vadd.f32 %v705, 1.0
        %v707 = vrcp.pop %v706
        %v708 = vmul.f32 1.0, %v707
        %v709 = vtanh.pop %v695
        %v710 = vxor.u32 %v696, 2147483648
        %v711 = vmul.f32 %v710, 1.442695
        %v712 = vpow.pop %v711
        %v713 = vadd.f32 %v712, 1.0
        %v714 = vrcp.pop %v713
        %v715 = vmul.f32 1.0, %v714
        %v716 = vmul.f32 %v708, %v429
        %v717 = vmul.f32 %v702, %v709
        %v718 = vadd.f32 %v716, %v717
        %v719 = vtanh.pop %v718
        %v720 = vmul.f32 %v715, %v719
        %s721 = sadd.s32 %s427, 1
        %722 = vmatprep.subr.mxu0 %v346
        %723 = vmatpush1.msra.mxu0 %v345
        %724 = vmatprep.subr.mxu0 %v351
        %725 = vmatpush1.msra.mxu0 %v350
        %726 = vmatprep.subr.mxu0 %v356
        %727 = vmatpush1.msra.mxu0 %v355
        %728 = vmatprep.subr.mxu0 %v361
        %729 = vmatpush1.msra.mxu0 %v360
        %730 = vmatprep.subr.mxu0 %v366
        %731 = vmatpush1.msra.mxu0 %v365
        %732 = vmatprep.subr.mxu0 %v371
        %733 = vmatpush1.msra.mxu0 %v370
        %734 = vmatprep.subr.mxu0 %v376
        %735 = vmatpush1.msra.mxu0 %v375
        %736 = vmatprep.subr.mxu0 %v381
        %737 = vmatpush1.msra.mxu0 %v380
        %738 = vmatprep.subr.mxu0 %v386
        %739 = vmatpush1.msra.mxu0 %v385
        %740 = vmatprep.subr.mxu0 %v391
        %741 = vmatpush1.msra.mxu0 %v390
        %742 = vmatprep.subr.mxu0 %v396
        %743 = vmatpush1.msra.mxu0 %v395
        %744 = vmatprep.subr.mxu0 %v401
        %745 = vmatpush1.msra.mxu0 %v400
        %746 = vmatprep.subr.mxu0 %v406
        %747 = vmatpush1.msra.mxu0 %v405
        %748 = vmatprep.subr.mxu0 %v411
        %749 = vmatpush1.msra.mxu0 %v410
        %750 = vmatprep.subr.mxu0 %v416
        %751 = vmatpush1.msra.mxu0 %v415
        %752 = vmatprep.subr.mxu0 %v421
        %753 = vmatpush1.msra.mxu0 %v420
        %754 = vmatprep.subr.mxu0 0.0
        %755 = vmatpush1.msra.mxu0 0.0
        %756 = vmatprep.subr.mxu0 0.0
        %757 = vmatpush1.msra.mxu0 0.0
        %758 = vmatprep.subr.mxu0 0.0
        %759 = vmatpush1.msra.mxu0 0.0
        %760 = vmatprep.subr.mxu0 0.0
        %761 = vmatpush1.msra.mxu0 0.0
        %762 = vmatprep.subr.mxu0 0.0
        %763 = vmatpush1.msra.mxu0 0.0
        %764 = vmatprep.subr.mxu0 0.0
        %765 = vmatpush1.msra.mxu0 0.0
        %766 = vmatprep.subr.mxu0 0.0
        %767 = vmatpush1.msra.mxu0 0.0
        %768 = vmatprep.subr.mxu0 0.0
        %769 = vmatpush1.msra.mxu0 0.0
        %770 = vmatprep.subr.mxu0 0.0
        %771 = vmatpush1.msra.mxu0 0.0
        %772 = vmatprep.subr.mxu0 0.0
        %773 = vmatpush1.msra.mxu0 0.0
        %774 = vmatprep.subr.mxu0 0.0
        %775 = vmatpush1.msra.mxu0 0.0
        %776 = vmatprep.subr.mxu0 0.0
        %777 = vmatpush1.msra.mxu0 0.0
        %778 = vmatprep.subr.mxu0 0.0
        %779 = vmatpush1.msra.mxu0 0.0
        %780 = vmatprep.subr.mxu0 0.0
        %781 = vmatpush1.msra.mxu0 0.0
        %782 = vmatprep.subr.mxu0 0.0
        %783 = vmatpush1.msra.mxu0 0.0
        %784 = vmatprep.subr.mxu0 0.0
        %785 = vmatpush1.msra.mxu0 0.0
        %786 = vmatprep.mubr.f32.mxu0 0.0
        %787 = vmatmul.mubr.f32.gmra.mrb[0].mxu0 %v720
        %v788 = vpop.f32.mrb[0].mxu0
        %v789 = vadd.f32 0.0, %v788
        %v790 = vpop.f32.mrb[0].mxu0
        %v791 = vadd.f32 0.0, %v790
        %792 = vdwg.mxu0
        %793 = vmatprep.subr.mxu0 %v348
        %794 = vmatpush1.msra.mxu0 %v347
        %795 = vmatprep.subr.mxu0 %v353
        %796 = vmatpush1.msra.mxu0 %v352
        %797 = vmatprep.subr.mxu0 %v358
        %798 = vmatpush1.msra.mxu0 %v357
        %799 = vmatprep.subr.mxu0 %v363
        %800 = vmatpush1.msra.mxu0 %v362
        %801 = vmatprep.subr.mxu0 %v368
        %802 = vmatpush1.msra.mxu0 %v367
        %803 = vmatprep.subr.mxu0 %v373
        %804 = vmatpush1.msra.mxu0 %v372
        %805 = vmatprep.subr.mxu0 %v378
        %806 = vmatpush1.msra.mxu0 %v377
        %807 = vmatprep.subr.mxu0 %v383
        %808 = vmatpush1.msra.mxu0 %v382
        %809 = vmatprep.subr.mxu0 %v388
        %810 = vmatpush1.msra.mxu0 %v387
        %811 = vmatprep.subr.mxu0 %v393
        %812 = vmatpush1.msra.mxu0 %v392
        %813 = vmatprep.subr.mxu0 %v398
        %814 = vmatpush1.msra.mxu0 %v397
        %815 = vmatprep.subr.mxu0 %v403
        %816 = vmatpush1.msra.mxu0 %v402
        %817 = vmatprep.subr.mxu0 %v408
        %818 = vmatpush1.msra.mxu0 %v407
        %819 = vmatprep.subr.mxu0 %v413
        %820 = vmatpush1.msra.mxu0 %v412
        %821 = vmatprep.subr.mxu0 %v418
        %822 = vmatpush1.msra.mxu0 %v417
        %823 = vmatprep.subr.mxu0 %v423
        %824 = vmatpush1.msra.mxu0 %v422
        %825 = vmatprep.subr.mxu0 0.0
        %826 = vmatpush1.msra.mxu0 0.0
        %827 = vmatprep.subr.mxu0 0.0
        %828 = vmatpush1.msra.mxu0 0.0
        %829 = vmatprep.subr.mxu0 0.0
        %830 = vmatpush1.msra.mxu0 0.0
        %831 = vmatprep.subr.mxu0 0.0
        %832 = vmatpush1.msra.mxu0 0.0
        %833 = vmatprep.subr.mxu0 0.0
        %834 = vmatpush1.msra.mxu0 0.0
        %835 = vmatprep.subr.mxu0 0.0
        %836 = vmatpush1.msra.mxu0 0.0
        %837 = vmatprep.subr.mxu0 0.0
        %838 = vmatpush1.msra.mxu0 0.0
        %839 = vmatprep.subr.mxu0 0.0
        %840 = vmatpush1.msra.mxu0 0.0
        %841 = vmatprep.subr.mxu0 0.0
        %842 = vmatpush1.msra.mxu0 0.0
        %843 = vmatprep.subr.mxu0 0.0
        %844 = vmatpush1.msra.mxu0 0.0
        %845 = vmatprep.subr.mxu0 0.0
        %846 = vmatpush1.msra.mxu0 0.0
        %847 = vmatprep.subr.mxu0 0.0
        %848 = vmatpush1.msra.mxu0 0.0
        %849 = vmatprep.subr.mxu0 0.0
        %850 = vmatpush1.msra.mxu0 0.0
        %851 = vmatprep.subr.mxu0 0.0
        %852 = vmatpush1.msra.mxu0 0.0
        %853 = vmatprep.subr.mxu0 0.0
        %854 = vmatpush1.msra.mxu0 0.0
        %855 = vmatprep.subr.mxu0 0.0
        %856 = vmatpush1.msra.mxu0 0.0
        %857 = vmatprep.mubr.f32.mxu0 0.0
        %858 = vmatmul.mubr.f32.gmra.mrb[0].mxu0 %v720
        %v859 = vpop.f32.mrb[0].mxu0
        %v860 = vadd.f32 0.0, %v859
        %v861 = vpop.f32.mrb[0].mxu0
        %v862 = vadd.f32 0.0, %v861
        %863 = vdwg.mxu0
        %864 = vmatprep.subr.mxu0 0.0
        %865 = vmatpush1.msra.mxu0 %v349
        %866 = vmatprep.subr.mxu0 0.0
        %867 = vmatpush1.msra.mxu0 %v354
        %868 = vmatprep.subr.mxu0 0.0
        %869 = vmatpush1.msra.mxu0 %v359
        %870 = vmatprep.subr.mxu0 0.0
        %871 = vmatpush1.msra.mxu0 %v364
        %872 = vmatprep.subr.mxu0 0.0
        %873 = vmatpush1.msra.mxu0 %v369
        %874 = vmatprep.subr.mxu0 0.0
        %875 = vmatpush1.msra.mxu0 %v374
        %876 = vmatprep.subr.mxu0 0.0
        %877 = vmatpush1.msra.mxu0 %v379
        %878 = vmatprep.subr.mxu0 0.0
        %879 = vmatpush1.msra.mxu0 %v384
        %880 = vmatprep.subr.mxu0 0.0
        %881 = vmatpush1.msra.mxu0 %v389
        %882 = vmatprep.subr.mxu0 0.0
        %883 = vmatpush1.msra.mxu0 %v394
        %884 = vmatprep.subr.mxu0 0.0
        %885 = vmatpush1.msra.mxu0 %v399
        %886 = vmatprep.subr.mxu0 0.0
        %887 = vmatpush1.msra.mxu0 %v404
        %888 = vmatprep.subr.mxu0 0.0
        %889 = vmatpush1.msra.mxu0 %v409
        %890 = vmatprep.subr.mxu0 0.0
        %891 = vmatpush1.msra.mxu0 %v414
        %892 = vmatprep.subr.mxu0 0.0
        %893 = vmatpush1.msra.mxu0 %v419
        %894 = vmatprep.subr.mxu0 0.0
        %895 = vmatpush1.msra.mxu0 %v424
        %896 = vmatprep.subr.mxu0 0.0
        %897 = vmatpush1.msra.mxu0 0.0
        %898 = vmatprep.subr.mxu0 0.0
        %899 = vmatpush1.msra.mxu0 0.0
        %900 = vmatprep.subr.mxu0 0.0
        %901 = vmatpush1.msra.mxu0 0.0
        %902 = vmatprep.subr.mxu0 0.0
        %903 = vmatpush1.msra.mxu0 0.0
        %904 = vmatprep.subr.mxu0 0.0
        %905 = vmatpush1.msra.mxu0 0.0
        %906 = vmatprep.subr.mxu0 0.0
        %907 = vmatpush1.msra.mxu0 0.0
        %908 = vmatprep.subr.mxu0 0.0
        %909 = vmatpush1.msra.mxu0 0.0
        %910 = vmatprep.subr.mxu0 0.0
        %911 = vmatpush1.msra.mxu0 0.0
        %912 = vmatprep.subr.mxu0 0.0
        %913 = vmatpush1.msra.mxu0 0.0
        %914 = vmatprep.subr.mxu0 0.0
        %915 = vmatpush1.msra.mxu0 0.0
        %916 = vmatprep.subr.mxu0 0.0
        %917 = vmatpush1.msra.mxu0 0.0
        %918 = vmatprep.subr.mxu0 0.0
        %919 = vmatpush1.msra.mxu0 0.0
        %920 = vmatprep.subr.mxu0 0.0
        %921 = vmatpush1.msra.mxu0 0.0
        %922 = vmatprep.subr.mxu0 0.0
        %923 = vmatpush1.msra.mxu0 0.0
        %924 = vmatprep.subr.mxu0 0.0
        %925 = vmatpush1.msra.mxu0 0.0
        %926 = vmatprep.subr.mxu0 0.0
        %927 = vmatpush1.msra.mxu0 0.0
        %928 = vmatprep.mubr.f32.mxu0 0.0
        %929 = vmatmul.mubr.f32.gmra.mrb[0].mxu0 %v720
        %v930 = vpop.f32.mrb[0].mxu0
        %v931 = vadd.f32 0.0, %v930
        %v932 = vpop.f32.mrb[0].mxu0
        %933 = vdwg.mxu0
        %v934 = vadd.f32 %v931, %v649
        %v935 = vtanh.pop %v934
        %v936 = vmul.f32 %v935, %v657
        %937 = vadd.xlane.f32.xlu0 %v936
        %v938 = vpop.xlane.xlu0 %937
        %p939 = scmp.ge.s32.totalorder %s721, 1
        %s940 = scalar_select %p939, 1, 0
        %v941 = vstv %s940
        %vm942 = vcmp.eq.s32.totalorder %v941, 1
        %v943 = vsel %vm942, %v938, -1e+38
        %v944 = vmax.f32 %v667, %v943
        %v945 = vsub.f32 %v667, %v944
        %v946 = vmul.f32 %v945, 1.442695
        %v947 = vpow.pop %v946
        %v948 = vsub.f32 %v943, %v944
        %v949 = vmul.f32 %v948, 1.442695
        %v950 = vpow.pop %v949
        %v951 = vmul.f32 %v947, %v675
        %v952 = vadd.f32 %v951, %v950
        %954 = vset.pattern.permute.xlu0 0
        %955 = vperm.xlu0 %954, %v947
        %v956 = vpop.permute.xlu0 %955
        %v958 = vmul.f32 %v956, %v688
        %960 = vset.pattern.permute.xlu0 0
        %961 = vperm.xlu0 %960, %v950
        %v962 = vpop.permute.xlu0 %961
        %v964 = vmul.f32 %v962, %v720
        %v965 = vadd.f32 %v958, %v964
        %s966 = scalar_lea.vmem %s294, 32 [#allocation8]
        %v967 = vld [vmem:[%s966] sm:$0xff]
        %v968 = vld [vmem:[%s966 + $0x8] sm:$0xff]
        %v969 = vld [vmem:[%s966 + $0x10] sm:$0xff]
        %v970 = vld [vmem:[%s966 + $0x18] sm:$0xff]
        %v971 = vadd.f32 %v967, %v789
        %v972 = vadd.f32 %v968, %v791
        %v973 = vadd.f32 %v969, %v860
        %v974 = vadd.f32 %v970, %v862
        %v975 = vxor.u32 %v971, 2147483648
        %v976 = vmul.f32 %v975, 1.442695
        %v977 = vpow.pop %v976
        %v978 = vadd.f32 %v977, 1.0
        %v979 = vrcp.pop %v978
        %v980 = vmul.f32 1.0, %v979
        %v981 = vxor.u32 %v972, 2147483648
        %v982 = vmul.f32 %v981, 1.442695
        %v983 = vpow.pop %v982
        %v984 = vadd.f32 %v983, 1.0
        %v985 = vrcp.pop %v984
        %v986 = vmul.f32 1.0, %v985
        %v987 = vtanh.pop %v973
        %v988 = vxor.u32 %v974, 2147483648
        %v989 = vmul.f32 %v988, 1.442695
        %v990 = vpow.pop %v989
        %v991 = vadd.f32 %v990, 1.0
        %v992 = vrcp.pop %v991
        %v993 = vmul.f32 1.0, %v992
        %v994 = vmul.f32 %v986, %v718
        %v995 = vmul.f32 %v980, %v987
        %v996 = vadd.f32 %v994, %v995
        %v997 = vtanh.pop %v996
        %v998 = vmul.f32 %v993, %v997
        %s999 = sadd.s32 %s427, 2
        %1000 = vmatprep.subr.mxu0 %v346
        %1001 = vmatpush1.msra.mxu0 %v345
        %1002 = vmatprep.subr.mxu0 %v351
        %1003 = vmatpush1.msra.mxu0 %v350
        %1004 = vmatprep.subr.mxu0 %v356
        %1005 = vmatpush1.msra.mxu0 %v355
        %1006 = vmatprep.subr.mxu0 %v361
        %1007 = vmatpush1.msra.mxu0 %v360
        %1008 = vmatprep.subr.mxu0 %v366
        %1009 = vmatpush1.msra.mxu0 %v365
        %1010 = vmatprep.subr.mxu0 %v371
        %1011 = vmatpush1.msra.mxu0 %v370
        %1012 = vmatprep.subr.mxu0 %v376
        %1013 = vmatpush1.msra.mxu0 %v375
        %1014 = vmatprep.subr.mxu0 %v381
        %1015 = vmatpush1.msra.mxu0 %v380
        %1016 = vmatprep.subr.mxu0 %v386
        %1017 = vmatpush1.msra.mxu0 %v385
        %1018 = vmatprep.subr.mxu0 %v391
        %1019 = vmatpush1.msra.mxu0 %v390
        %1020 = vmatprep.subr.mxu0 %v396
        %1021 = vmatpush1.msra.mxu0 %v395
        %1022 = vmatprep.subr.mxu0 %v401
        %1023 = vmatpush1.msra.mxu0 %v400
        %1024 = vmatprep.subr.mxu0 %v406
        %1025 = vmatpush1.msra.mxu0 %v405
        %1026 = vmatprep.subr.mxu0 %v411
        %1027 = vmatpush1.msra.mxu0 %v410
        %1028 = vmatprep.subr.mxu0 %v416
        %1029 = vmatpush1.msra.mxu0 %v415
        %1030 = vmatprep.subr.mxu0 %v421
        %1031 = vmatpush1.msra.mxu0 %v420
        %1032 = vmatprep.subr.mxu0 0.0
        %1033 = vmatpush1.msra.mxu0 0.0
        %1034 = vmatprep.subr.mxu0 0.0
        %1035 = vmatpush1.msra.mxu0 0.0
        %1036 = vmatprep.subr.mxu0 0.0
        %1037 = vmatpush1.msra.mxu0 0.0
        %1038 = vmatprep.subr.mxu0 0.0
        %1039 = vmatpush1.msra.mxu0 0.0
        %1040 = vmatprep.subr.mxu0 0.0
        %1041 = vmatpush1.msra.mxu0 0.0
        %1042 = vmatprep.subr.mxu0 0.0
        %1043 = vmatpush1.msra.mxu0 0.0
        %1044 = vmatprep.subr.mxu0 0.0
        %1045 = vmatpush1.msra.mxu0 0.0
        %1046 = vmatprep.subr.mxu0 0.0
        %1047 = vmatpush1.msra.mxu0 0.0
        %1048 = vmatprep.subr.mxu0 0.0
        %1049 = vmatpush1.msra.mxu0 0.0
        %1050 = vmatprep.subr.mxu0 0.0
        %1051 = vmatpush1.msra.mxu0 0.0
        %1052 = vmatprep.subr.mxu0 0.0
        %1053 = vmatpush1.msra.mxu0 0.0
        %1054 = vmatprep.subr.mxu0 0.0
        %1055 = vmatpush1.msra.mxu0 0.0
        %1056 = vmatprep.subr.mxu0 0.0
        %1057 = vmatpush1.msra.mxu0 0.0
        %1058 = vmatprep.subr.mxu0 0.0
        %1059 = vmatpush1.msra.mxu0 0.0
        %1060 = vmatprep.subr.mxu0 0.0
        %1061 = vmatpush1.msra.mxu0 0.0
        %1062 = vmatprep.subr.mxu0 0.0
        %1063 = vmatpush1.msra.mxu0 0.0
        %1064 = vmatprep.mubr.f32.mxu0 0.0
        %1065 = vmatmul.mubr.f32.gmra.mrb[0].mxu0 %v998
        %v1066 = vpop.f32.mrb[0].mxu0
        %v1067 = vadd.f32 0.0, %v1066
        %v1068 = vpop.f32.mrb[0].mxu0
        %v1069 = vadd.f32 0.0, %v1068
        %1070 = vdwg.mxu0
        %1071 = vmatprep.subr.mxu0 %v348
        %1072 = vmatpush1.msra.mxu0 %v347
        %1073 = vmatprep.subr.mxu0 %v353
        %1074 = vmatpush1.msra.mxu0 %v352
        %1075 = vmatprep.subr.mxu0 %v358
        %1076 = vmatpush1.msra.mxu0 %v357
        %1077 = vmatprep.subr.mxu0 %v363
        %1078 = vmatpush1.msra.mxu0 %v362
        %1079 = vmatprep.subr.mxu0 %v368
        %1080 = vmatpush1.msra.mxu0 %v367
        %1081 = vmatprep.subr.mxu0 %v373
        %1082 = vmatpush1.msra.mxu0 %v372
        %1083 = vmatprep.subr.mxu0 %v378
        %1084 = vmatpush1.msra.mxu0 %v377
        %1085 = vmatprep.subr.mxu0 %v383
        %1086 = vmatpush1.msra.mxu0 %v382
        %1087 = vmatprep.subr.mxu0 %v388
        %1088 = vmatpush1.msra.mxu0 %v387
        %1089 = vmatprep.subr.mxu0 %v393
        %1090 = vmatpush1.msra.mxu0 %v392
        %1091 = vmatprep.subr.mxu0 %v398
        %1092 = vmatpush1.msra.mxu0 %v397
        %1093 = vmatprep.subr.mxu0 %v403
        %1094 = vmatpush1.msra.mxu0 %v402
        %1095 = vmatprep.subr.mxu0 %v408
        %1096 = vmatpush1.msra.mxu0 %v407
        %1097 = vmatprep.subr.mxu0 %v413
        %1098 = vmatpush1.msra.mxu0 %v412
        %1099 = vmatprep.subr.mxu0 %v418
        %1100 = vmatpush1.msra.mxu0 %v417
        %1101 = vmatprep.subr.mxu0 %v423
        %1102 = vmatpush1.msra.mxu0 %v422
        %1103 = vmatprep.subr.mxu0 0.0
        %1104 = vmatpush1.msra.mxu0 0.0
        %1105 = vmatprep.subr.mxu0 0.0
        %1106 = vmatpush1.msra.mxu0 0.0
        %1107 = vmatprep.subr.mxu0 0.0
        %1108 = vmatpush1.msra.mxu0 0.0
        %1109 = vmatprep.subr.mxu0 0.0
        %1110 = vmatpush1.msra.mxu0 0.0
        %1111 = vmatprep.subr.mxu0 0.0
        %1112 = vmatpush1.msra.mxu0 0.0
        %1113 = vmatprep.subr.mxu0 0.0
        %1114 = vmatpush1.msra.mxu0 0.0
        %1115 = vmatprep.subr.mxu0 0.0
        %1116 = vmatpush1.msra.mxu0 0.0
        %1117 = vmatprep.subr.mxu0 0.0
        %1118 = vmatpush1.msra.mxu0 0.0
        %1119 = vmatprep.subr.mxu0 0.0
        %1120 = vmatpush1.msra.mxu0 0.0
        %1121 = vmatprep.subr.mxu0 0.0
        %1122 = vmatpush1.msra.mxu0 0.0
        %1123 = vmatprep.subr.mxu0 0.0
        %1124 = vmatpush1.msra.mxu0 0.0
        %1125 = vmatprep.subr.mxu0 0.0
        %1126 = vmatpush1.msra.mxu0 0.0
        %1127 = vmatprep.subr.mxu0 0.0
        %1128 = vmatpush1.msra.mxu0 0.0
        %1129 = vmatprep.subr.mxu0 0.0
        %1130 = vmatpush1.msra.mxu0 0.0
        %1131 = vmatprep.subr.mxu0 0.0
        %1132 = vmatpush1.msra.mxu0 0.0
        %1133 = vmatprep.subr.mxu0 0.0
        %1134 = vmatpush1.msra.mxu0 0.0
        %1135 = vmatprep.mubr.f32.mxu0 0.0
        %1136 = vmatmul.mubr.f32.gmra.mrb[0].mxu0 %v998
        %v1137 = vpop.f32.mrb[0].mxu0
        %v1138 = vadd.f32 0.0, %v1137
        %v1139 = vpop.f32.mrb[0].mxu0
        %v1140 = vadd.f32 0.0, %v1139
        %1141 = vdwg.mxu0
        %1142 = vmatprep.subr.mxu0 0.0
        %1143 = vmatpush1.msra.mxu0 %v349
        %1144 = vmatprep.subr.mxu0 0.0
        %1145 = vmatpush1.msra.mxu0 %v354
        %1146 = vmatprep.subr.mxu0 0.0
        %1147 = vmatpush1.msra.mxu0 %v359
        %1148 = vmatprep.subr.mxu0 0.0
        %1149 = vmatpush1.msra.mxu0 %v364
        %1150 = vmatprep.subr.mxu0 0.0
        %1151 = vmatpush1.msra.mxu0 %v369
        %1152 = vmatprep.subr.mxu0 0.0
        %1153 = vmatpush1.msra.mxu0 %v374
        %1154 = vmatprep.subr.mxu0 0.0
        %1155 = vmatpush1.msra.mxu0 %v379
        %1156 = vmatprep.subr.mxu0 0.0
        %1157 = vmatpush1.msra.mxu0 %v384
        %1158 = vmatprep.subr.mxu0 0.0
        %1159 = vmatpush1.msra.mxu0 %v389
        %1160 = vmatprep.subr.mxu0 0.0
        %1161 = vmatpush1.msra.mxu0 %v394
        %1162 = vmatprep.subr.mxu0 0.0
        %1163 = vmatpush1.msra.mxu0 %v399
        %1164 = vmatprep.subr.mxu0 0.0
        %1165 = vmatpush1.msra.mxu0 %v404
        %1166 = vmatprep.subr.mxu0 0.0
        %1167 = vmatpush1.msra.mxu0 %v409
        %1168 = vmatprep.subr.mxu0 0.0
        %1169 = vmatpush1.msra.mxu0 %v414
        %1170 = vmatprep.subr.mxu0 0.0
        %1171 = vmatpush1.msra.mxu0 %v419
        %1172 = vmatprep.subr.mxu0 0.0
        %1173 = vmatpush1.msra.mxu0 %v424
        %1174 = vmatprep.subr.mxu0 0.0
        %1175 = vmatpush1.msra.mxu0 0.0
        %1176 = vmatprep.subr.mxu0 0.0
        %1177 = vmatpush1.msra.mxu0 0.0
        %1178 = vmatprep.subr.mxu0 0.0
        %1179 = vmatpush1.msra.mxu0 0.0
        %1180 = vmatprep.subr.mxu0 0.0
        %1181 = vmatpush1.msra.mxu0 0.0
        %1182 = vmatprep.subr.mxu0 0.0
        %1183 = vmatpush1.msra.mxu0 0.0
        %1184 = vmatprep.subr.mxu0 0.0
        %1185 = vmatpush1.msra.mxu0 0.0
        %1186 = vmatprep.subr.mxu0 0.0
        %1187 = vmatpush1.msra.mxu0 0.0
        %1188 = vmatprep.subr.mxu0 0.0
        %1189 = vmatpush1.msra.mxu0 0.0
        %1190 = vmatprep.subr.mxu0 0.0
        %1191 = vmatpush1.msra.mxu0 0.0
        %1192 = vmatprep.subr.mxu0 0.0
        %1193 = vmatpush1.msra.mxu0 0.0
        %1194 = vmatprep.subr.mxu0 0.0
        %1195 = vmatpush1.msra.mxu0 0.0
        %1196 = vmatprep.subr.mxu0 0.0
        %1197 = vmatpush1.msra.mxu0 0.0
        %1198 = vmatprep.subr.mxu0 0.0
        %1199 = vmatpush1.msra.mxu0 0.0
        %1200 = vmatprep.subr.mxu0 0.0
        %1201 = vmatpush1.msra.mxu0 0.0
        %1202 = vmatprep.subr.mxu0 0.0
        %1203 = vmatpush1.msra.mxu0 0.0
        %1204 = vmatprep.subr.mxu0 0.0
        %1205 = vmatpush1.msra.mxu0 0.0
        %1206 = vmatprep.mubr.f32.mxu0 0.0
        %1207 = vmatmul.mubr.f32.gmra.mrb[0].mxu0 %v998
        %v1208 = vpop.f32.mrb[0].mxu0
        %v1209 = vadd.f32 0.0, %v1208
        %v1210 = vpop.f32.mrb[0].mxu0
        %1211 = vdwg.mxu0
        %v1212 = vadd.f32 %v1209, %v649
        %v1213 = vtanh.pop %v1212
        %v1214 = vmul.f32 %v1213, %v657
        %1215 = vadd.xlane.f32.xlu0 %v1214
        %v1216 = vpop.xlane.xlu0 %1215
        %p1217 = scmp.ge.s32.totalorder %s999, 1
        %s1218 = scalar_select %p1217, 1, 0
        %v1219 = vstv %s1218
        %vm1220 = vcmp.eq.s32.totalorder %v1219, 1
        %v1221 = vsel %vm1220, %v1216, -1e+38
        %v1222 = vmax.f32 %v944, %v1221
        %v1223 = vsub.f32 %v944, %v1222
        %v1224 = vmul.f32 %v1223, 1.442695
        %v1225 = vpow.pop %v1224
        %v1226 = vsub.f32 %v1221, %v1222
        %v1227 = vmul.f32 %v1226, 1.442695
        %v1228 = vpow.pop %v1227
        %v1229 = vmul.f32 %v1225, %v952
        %v1230 = vadd.f32 %v1229, %v1228
        %1232 = vset.pattern.permute.xlu0 0
        %1233 = vperm.xlu0 %1232, %v1225
        %v1234 = vpop.permute.xlu0 %1233
        %v1236 = vmul.f32 %v1234, %v965
        %1238 = vset.pattern.permute.xlu0 0
        %1239 = vperm.xlu0 %1238, %v1228
        %v1240 = vpop.permute.xlu0 %1239
        %v1242 = vmul.f32 %v1240, %v998
        %v1243 = vadd.f32 %v1236, %v1242
        %s1244 = scalar_lea.vmem %s294, 64 [#allocation8]
        %v1245 = vld [vmem:[%s1244] sm:$0xff]
        %v1246 = vld [vmem:[%s1244 + $0x8] sm:$0xff]
        %v1247 = vld [vmem:[%s1244 + $0x10] sm:$0xff]
        %v1248 = vld [vmem:[%s1244 + $0x18] sm:$0xff]
        %v1249 = vadd.f32 %v1245, %v1067
        %v1250 = vadd.f32 %v1246, %v1069
        %v1251 = vadd.f32 %v1247, %v1138
        %v1252 = vadd.f32 %v1248, %v1140
        %v1253 = vxor.u32 %v1249, 2147483648
        %v1254 = vmul.f32 %v1253, 1.442695
        %v1255 = vpow.pop %v1254
        %v1256 = vadd.f32 %v1255, 1.0
        %v1257 = vrcp.pop %v1256
        %v1258 = vmul.f32 1.0, %v1257
        %v1259 = vxor.u32 %v1250, 2147483648
        %v1260 = vmul.f32 %v1259, 1.442695
        %v1261 = vpow.pop %v1260
        %v1262 = vadd.f32 %v1261, 1.0
        %v1263 = vrcp.pop %v1262
        %v1264 = vmul.f32 1.0, %v1263
        %v1265 = vtanh.pop %v1251
        %v1266 = vxor.u32 %v1252, 2147483648
        %v1267 = vmul.f32 %v1266, 1.442695
        %v1268 = vpow.pop %v1267
        %v1269 = vadd.f32 %v1268, 1.0
        %v1270 = vrcp.pop %v1269
        %v1271 = vmul.f32 1.0, %v1270
        %v1272 = vmul.f32 %v1264, %v996
        %v1273 = vmul.f32 %v1258, %v1265
        %v1274 = vadd.f32 %v1272, %v1273
        %v1275 = vtanh.pop %v1274
        %v1276 = vmul.f32 %v1271, %v1275
        %s1277 = sadd.s32 %s427, 3
        %1278 = vmatprep.subr.mxu0 %v346
        %1279 = vmatpush1.msra.mxu0 %v345
        %1280 = vmatprep.subr.mxu0 %v351
        %1281 = vmatpush1.msra.mxu0 %v350
        %1282 = vmatprep.subr.mxu0 %v356
        %1283 = vmatpush1.msra.mxu0 %v355
        %1284 = vmatprep.subr.mxu0 %v361
        %1285 = vmatpush1.msra.mxu0 %v360
        %1286 = vmatprep.subr.mxu0 %v366
        %1287 = vmatpush1.msra.mxu0 %v365
        %1288 = vmatprep.subr.mxu0 %v371
        %1289 = vmatpush1.msra.mxu0 %v370
        %1290 = vmatprep.subr.mxu0 %v376
        %1291 = vmatpush1.msra.mxu0 %v375
        %1292 = vmatprep.subr.mxu0 %v381
        %1293 = vmatpush1.msra.mxu0 %v380
        %1294 = vmatprep.subr.mxu0 %v386
        %1295 = vmatpush1.msra.mxu0 %v385
        %1296 = vmatprep.subr.mxu0 %v391
        %1297 = vmatpush1.msra.mxu0 %v390
        %1298 = vmatprep.subr.mxu0 %v396
        %1299 = vmatpush1.msra.mxu0 %v395
        %1300 = vmatprep.subr.mxu0 %v401
        %1301 = vmatpush1.msra.mxu0 %v400
        %1302 = vmatprep.subr.mxu0 %v406
        %1303 = vmatpush1.msra.mxu0 %v405
        %1304 = vmatprep.subr.mxu0 %v411
        %1305 = vmatpush1.msra.mxu0 %v410
        %1306 = vmatprep.subr.mxu0 %v416
        %1307 = vmatpush1.msra.mxu0 %v415
        %1308 = vmatprep.subr.mxu0 %v421
        %1309 = vmatpush1.msra.mxu0 %v420
        %1310 = vmatprep.subr.mxu0 0.0
        %1311 = vmatpush1.msra.mxu0 0.0
        %1312 = vmatprep.subr.mxu0 0.0
        %1313 = vmatpush1.msra.mxu0 0.0
        %1314 = vmatprep.subr.mxu0 0.0
        %1315 = vmatpush1.msra.mxu0 0.0
        %1316 = vmatprep.subr.mxu0 0.0
        %1317 = vmatpush1.msra.mxu0 0.0
        %1318 = vmatprep.subr.mxu0 0.0
        %1319 = vmatpush1.msra.mxu0 0.0
        %1320 = vmatprep.subr.mxu0 0.0
        %1321 = vmatpush1.msra.mxu0 0.0
        %1322 = vmatprep.subr.mxu0 0.0
        %1323 = vmatpush1.msra.mxu0 0.0
        %1324 = vmatprep.subr.mxu0 0.0
        %1325 = vmatpush1.msra.mxu0 0.0
        %1326 = vmatprep.subr.mxu0 0.0
        %1327 = vmatpush1.msra.mxu0 0.0
        %1328 = vmatprep.subr.mxu0 0.0
        %1329 = vmatpush1.msra.mxu0 0.0
        %1330 = vmatprep.subr.mxu0 0.0
        %1331 = vmatpush1.msra.mxu0 0.0
        %1332 = vmatprep.subr.mxu0 0.0
        %1333 = vmatpush1.msra.mxu0 0.0
        %1334 = vmatprep.subr.mxu0 0.0
        %1335 = vmatpush1.msra.mxu0 0.0
        %1336 = vmatprep.subr.mxu0 0.0
        %1337 = vmatpush1.msra.mxu0 0.0
        %1338 = vmatprep.subr.mxu0 0.0
        %1339 = vmatpush1.msra.mxu0 0.0
        %1340 = vmatprep.subr.mxu0 0.0
        %1341 = vmatpush1.msra.mxu0 0.0
        %1342 = vmatprep.mubr.f32.mxu0 0.0
        %1343 = vmatmul.mubr.f32.gmra.mrb[0].mxu0 %v1276
        %v1344 = vpop.f32.mrb[0].mxu0
        %v1345 = vadd.f32 0.0, %v1344
        %v1346 = vpop.f32.mrb[0].mxu0
        %v1347 = vadd.f32 0.0, %v1346
        %1348 = vdwg.mxu0
        %1349 = vmatprep.subr.mxu0 %v348
        %1350 = vmatpush1.msra.mxu0 %v347
        %1351 = vmatprep.subr.mxu0 %v353
        %1352 = vmatpush1.msra.mxu0 %v352
        %1353 = vmatprep.subr.mxu0 %v358
        %1354 = vmatpush1.msra.mxu0 %v357
        %1355 = vmatprep.subr.mxu0 %v363
        %1356 = vmatpush1.msra.mxu0 %v362
        %1357 = vmatprep.subr.mxu0 %v368
        %1358 = vmatpush1.msra.mxu0 %v367
        %1359 = vmatprep.subr.mxu0 %v373
        %1360 = vmatpush1.msra.mxu0 %v372
        %1361 = vmatprep.subr.mxu0 %v378
        %1362 = vmatpush1.msra.mxu0 %v377
        %1363 = vmatprep.subr.mxu0 %v383
        %1364 = vmatpush1.msra.mxu0 %v382
        %1365 = vmatprep.subr.mxu0 %v388
        %1366 = vmatpush1.msra.mxu0 %v387
        %1367 = vmatprep.subr.mxu0 %v393
        %1368 = vmatpush1.msra.mxu0 %v392
        %1369 = vmatprep.subr.mxu0 %v398
        %1370 = vmatpush1.msra.mxu0 %v397
        %1371 = vmatprep.subr.mxu0 %v403
        %1372 = vmatpush1.msra.mxu0 %v402
        %1373 = vmatprep.subr.mxu0 %v408
        %1374 = vmatpush1.msra.mxu0 %v407
        %1375 = vmatprep.subr.mxu0 %v413
        %1376 = vmatpush1.msra.mxu0 %v412
        %1377 = vmatprep.subr.mxu0 %v418
        %1378 = vmatpush1.msra.mxu0 %v417
        %1379 = vmatprep.subr.mxu0 %v423
        %1380 = vmatpush1.msra.mxu0 %v422
        %1381 = vmatprep.subr.mxu0 0.0
        %1382 = vmatpush1.msra.mxu0 0.0
        %1383 = vmatprep.subr.mxu0 0.0
        %1384 = vmatpush1.msra.mxu0 0.0
        %1385 = vmatprep.subr.mxu0 0.0
        %1386 = vmatpush1.msra.mxu0 0.0
        %1387 = vmatprep.subr.mxu0 0.0
        %1388 = vmatpush1.msra.mxu0 0.0
        %1389 = vmatprep.subr.mxu0 0.0
        %1390 = vmatpush1.msra.mxu0 0.0
        %1391 = vmatprep.subr.mxu0 0.0
        %1392 = vmatpush1.msra.mxu0 0.0
        %1393 = vmatprep.subr.mxu0 0.0
        %1394 = vmatpush1.msra.mxu0 0.0
        %1395 = vmatprep.subr.mxu0 0.0
        %1396 = vmatpush1.msra.mxu0 0.0
        %1397 = vmatprep.subr.mxu0 0.0
        %1398 = vmatpush1.msra.mxu0 0.0
        %1399 = vmatprep.subr.mxu0 0.0
        %1400 = vmatpush1.msra.mxu0 0.0
        %1401 = vmatprep.subr.mxu0 0.0
        %1402 = vmatpush1.msra.mxu0 0.0
        %1403 = vmatprep.subr.mxu0 0.0
        %1404 = vmatpush1.msra.mxu0 0.0
        %1405 = vmatprep.subr.mxu0 0.0
        %1406 = vmatpush1.msra.mxu0 0.0
        %1407 = vmatprep.subr.mxu0 0.0
        %1408 = vmatpush1.msra.mxu0 0.0
        %1409 = vmatprep.subr.mxu0 0.0
        %1410 = vmatpush1.msra.mxu0 0.0
        %1411 = vmatprep.subr.mxu0 0.0
        %1412 = vmatpush1.msra.mxu0 0.0
        %1413 = vmatprep.mubr.f32.mxu0 0.0
        %1414 = vmatmul.mubr.f32.gmra.mrb[0].mxu0 %v1276
        %v1415 = vpop.f32.mrb[0].mxu0
        %v1416 = vadd.f32 0.0, %v1415
        %v1417 = vpop.f32.mrb[0].mxu0
        %v1418 = vadd.f32 0.0, %v1417
        %1419 = vdwg.mxu0
        %1420 = vmatprep.subr.mxu0 0.0
        %1421 = vmatpush1.msra.mxu0 %v349
        %1422 = vmatprep.subr.mxu0 0.0
        %1423 = vmatpush1.msra.mxu0 %v354
        %1424 = vmatprep.subr.mxu0 0.0
        %1425 = vmatpush1.msra.mxu0 %v359
        %1426 = vmatprep.subr.mxu0 0.0
        %1427 = vmatpush1.msra.mxu0 %v364
        %1428 = vmatprep.subr.mxu0 0.0
        %1429 = vmatpush1.msra.mxu0 %v369
        %1430 = vmatprep.subr.mxu0 0.0
        %1431 = vmatpush1.msra.mxu0 %v374
        %1432 = vmatprep.subr.mxu0 0.0
        %1433 = vmatpush1.msra.mxu0 %v379
        %1434 = vmatprep.subr.mxu0 0.0
        %1435 = vmatpush1.msra.mxu0 %v384
        %1436 = vmatprep.subr.mxu0 0.0
        %1437 = vmatpush1.msra.mxu0 %v389
        %1438 = vmatprep.subr.mxu0 0.0
        %1439 = vmatpush1.msra.mxu0 %v394
        %1440 = vmatprep.subr.mxu0 0.0
        %1441 = vmatpush1.msra.mxu0 %v399
        %1442 = vmatprep.subr.mxu0 0.0
        %1443 = vmatpush1.msra.mxu0 %v404
        %1444 = vmatprep.subr.mxu0 0.0
        %1445 = vmatpush1.msra.mxu0 %v409
        %1446 = vmatprep.subr.mxu0 0.0
        %1447 = vmatpush1.msra.mxu0 %v414
        %1448 = vmatprep.subr.mxu0 0.0
        %1449 = vmatpush1.msra.mxu0 %v419
        %1450 = vmatprep.subr.mxu0 0.0
        %1451 = vmatpush1.msra.mxu0 %v424
        %1452 = vmatprep.subr.mxu0 0.0
        %1453 = vmatpush1.msra.mxu0 0.0
        %1454 = vmatprep.subr.mxu0 0.0
        %1455 = vmatpush1.msra.mxu0 0.0
        %1456 = vmatprep.subr.mxu0 0.0
        %1457 = vmatpush1.msra.mxu0 0.0
        %1458 = vmatprep.subr.mxu0 0.0
        %1459 = vmatpush1.msra.mxu0 0.0
        %1460 = vmatprep.subr.mxu0 0.0
        %1461 = vmatpush1.msra.mxu0 0.0
        %1462 = vmatprep.subr.mxu0 0.0
        %1463 = vmatpush1.msra.mxu0 0.0
        %1464 = vmatprep.subr.mxu0 0.0
        %1465 = vmatpush1.msra.mxu0 0.0
        %1466 = vmatprep.subr.mxu0 0.0
        %1467 = vmatpush1.msra.mxu0 0.0
        %1468 = vmatprep.subr.mxu0 0.0
        %1469 = vmatpush1.msra.mxu0 0.0
        %1470 = vmatprep.subr.mxu0 0.0
        %1471 = vmatpush1.msra.mxu0 0.0
        %1472 = vmatprep.subr.mxu0 0.0
        %1473 = vmatpush1.msra.mxu0 0.0
        %1474 = vmatprep.subr.mxu0 0.0
        %1475 = vmatpush1.msra.mxu0 0.0
        %1476 = vmatprep.subr.mxu0 0.0
        %1477 = vmatpush1.msra.mxu0 0.0
        %1478 = vmatprep.subr.mxu0 0.0
        %1479 = vmatpush1.msra.mxu0 0.0
        %1480 = vmatprep.subr.mxu0 0.0
        %1481 = vmatpush1.msra.mxu0 0.0
        %1482 = vmatprep.subr.mxu0 0.0
        %1483 = vmatpush1.msra.mxu0 0.0
        %1484 = vmatprep.mubr.f32.mxu0 0.0
        %1485 = vmatmul.mubr.f32.gmra.mrb[0].mxu0 %v1276
        %v1486 = vpop.f32.mrb[0].mxu0
        %v1487 = vadd.f32 0.0, %v1486
        %v1488 = vpop.f32.mrb[0].mxu0
        %1489 = vdwg.mxu0
        %v1490 = vadd.f32 %v1487, %v649
        %v1491 = vtanh.pop %v1490
        %v1492 = vmul.f32 %v1491, %v657
        %1493 = vadd.xlane.f32.xlu0 %v1492
        %v1494 = vpop.xlane.xlu0 %1493
        %p1495 = scmp.ge.s32.totalorder %s1277, 1
        %s1496 = scalar_select %p1495, 1, 0
        %v1497 = vstv %s1496
        %vm1498 = vcmp.eq.s32.totalorder %v1497, 1
        %v1499 = vsel %vm1498, %v1494, -1e+38
        %v1500 = vmax.f32 %v1222, %v1499
        %v1501 = vsub.f32 %v1222, %v1500
        %v1502 = vmul.f32 %v1501, 1.442695
        %v1503 = vpow.pop %v1502
        %v1504 = vsub.f32 %v1499, %v1500
        %v1505 = vmul.f32 %v1504, 1.442695
        %v1506 = vpow.pop %v1505
        %v1507 = vmul.f32 %v1503, %v1230
        %v1508 = vadd.f32 %v1507, %v1506
        %1510 = vset.pattern.permute.xlu0 0
        %1511 = vperm.xlu0 %1510, %v1503
        %v1512 = vpop.permute.xlu0 %1511
        %v1514 = vmul.f32 %v1512, %v1243
        %1516 = vset.pattern.permute.xlu0 0
        %1517 = vperm.xlu0 %1516, %v1506
        %v1518 = vpop.permute.xlu0 %1517
        %v1520 = vmul.f32 %v1518, %v1276
        %v1521 = vadd.f32 %v1514, %v1520
        %s1522 = scalar_lea.vmem %s294, 96 [#allocation8]
        %v1523 = vld [vmem:[%s1522] sm:$0xff]
        %v1524 = vld [vmem:[%s1522 + $0x8] sm:$0xff]
        %v1525 = vld [vmem:[%s1522 + $0x10] sm:$0xff]
        %v1526 = vld [vmem:[%s1522 + $0x18] sm:$0xff]
        %v1527 = vadd.f32 %v1523, %v1345
        %v1528 = vadd.f32 %v1524, %v1347
        %v1529 = vadd.f32 %v1525, %v1416
        %v1530 = vadd.f32 %v1526, %v1418
        %v1531 = vxor.u32 %v1527, 2147483648
        %v1532 = vmul.f32 %v1531, 1.442695
        %v1533 = vpow.pop %v1532
        %v1534 = vadd.f32 %v1533, 1.0
        %v1535 = vrcp.pop %v1534
        %v1536 = vmul.f32 1.0, %v1535
        %v1537 = vxor.u32 %v1528, 2147483648
        %v1538 = vmul.f32 %v1537, 1.442695
        %v1539 = vpow.pop %v1538
        %v1540 = vadd.f32 %v1539, 1.0
        %v1541 = vrcp.pop %v1540
        %v1542 = vmul.f32 1.0, %v1541
        %v1543 = vtanh.pop %v1529
        %v1544 = vxor.u32 %v1530, 2147483648
        %v1545 = vmul.f32 %v1544, 1.442695
        %v1546 = vpow.pop %v1545
        %v1547 = vadd.f32 %v1546, 1.0
        %v1548 = vrcp.pop %v1547
        %v1549 = vmul.f32 1.0, %v1548
        %v1550 = vmul.f32 %v1542, %v1274
        %v1551 = vmul.f32 %v1536, %v1543
        %v1552 = vadd.f32 %v1550, %v1551
        %v1553 = vtanh.pop %v1552
        %v1554 = vmul.f32 %v1549, %v1553
        %1555 = vst [vmem:[#allocation2] sm:$0xff] %v1554
        %1556 = vst [vmem:[#allocation3] sm:$0xff] %v1552
        %vm1557 = vcmask 7168
        %1558 = vst.msk [vmem:[#allocation4] sm:$0xff] %vm1557, %v1500
        %1559 = vst.msk [vmem:[#allocation5] sm:$0xff] %vm1557, %v1508
        %1560 = vst [vmem:[#allocation6] sm:$0xff] %v1521
        %p1561 = scmp.eq.s32.totalorder %s30, 1
        // Predicated region
        $region69: #{tpu_custom_call.1} parent=43 // pred_check
          %p1562 = pneg %p1561
        $region70: #{tpu_custom_call.1} parent=43 // pred_check_branch
          %1564 = sbr.rel (%p1562) target = $region72
        $region71: #{tpu_custom_call.1} parent=43 // pred_region
          %1565 = vmatprep.subr.mxu0 0.0
          %1566 = vmatpush1.msra.mxu0 %v349
          %1567 = vmatprep.subr.mxu0 0.0
          %1568 = vmatpush1.msra.mxu0 %v354
          %1569 = vmatprep.subr.mxu0 0.0
          %1570 = vmatpush1.msra.mxu0 %v359
          %1571 = vmatprep.subr.mxu0 0.0
          %1572 = vmatpush1.msra.mxu0 %v364
          %1573 = vmatprep.subr.mxu0 0.0
          %1574 = vmatpush1.msra.mxu0 %v369
          %1575 = vmatprep.subr.mxu0 0.0
          %1576 = vmatpush1.msra.mxu0 %v374
          %1577 = vmatprep.subr.mxu0 0.0
          %1578 = vmatpush1.msra.mxu0 %v379
          %1579 = vmatprep.subr.mxu0 0.0
          %1580 = vmatpush1.msra.mxu0 %v384
          %1581 = vmatprep.subr.mxu0 0.0
          %1582 = vmatpush1.msra.mxu0 %v389
          %1583 = vmatprep.subr.mxu0 0.0
          %1584 = vmatpush1.msra.mxu0 %v394
          %1585 = vmatprep.subr.mxu0 0.0
          %1586 = vmatpush1.msra.mxu0 %v399
          %1587 = vmatprep.subr.mxu0 0.0
          %1588 = vmatpush1.msra.mxu0 %v404
          %1589 = vmatprep.subr.mxu0 0.0
          %1590 = vmatpush1.msra.mxu0 %v409
          %1591 = vmatprep.subr.mxu0 0.0
          %1592 = vmatpush1.msra.mxu0 %v414
          %1593 = vmatprep.subr.mxu0 0.0
          %1594 = vmatpush1.msra.mxu0 %v419
          %1595 = vmatprep.subr.mxu0 0.0
          %1596 = vmatpush1.msra.mxu0 %v424
          %1597 = vmatprep.subr.mxu0 0.0
          %1598 = vmatpush1.msra.mxu0 0.0
          %1599 = vmatprep.subr.mxu0 0.0
          %1600 = vmatpush1.msra.mxu0 0.0
          %1601 = vmatprep.subr.mxu0 0.0
          %1602 = vmatpush1.msra.mxu0 0.0
          %1603 = vmatprep.subr.mxu0 0.0
          %1604 = vmatpush1.msra.mxu0 0.0
          %1605 = vmatprep.subr.mxu0 0.0
          %1606 = vmatpush1.msra.mxu0 0.0
          %1607 = vmatprep.subr.mxu0 0.0
          %1608 = vmatpush1.msra.mxu0 0.0
          %1609 = vmatprep.subr.mxu0 0.0
          %1610 = vmatpush1.msra.mxu0 0.0
          %1611 = vmatprep.subr.mxu0 0.0
          %1612 = vmatpush1.msra.mxu0 0.0
          %1613 = vmatprep.subr.mxu0 0.0
          %1614 = vmatpush1.msra.mxu0 0.0
          %1615 = vmatprep.subr.mxu0 0.0
          %1616 = vmatpush1.msra.mxu0 0.0
          %1617 = vmatprep.subr.mxu0 0.0
          %1618 = vmatpush1.msra.mxu0 0.0
          %1619 = vmatprep.subr.mxu0 0.0
          %1620 = vmatpush1.msra.mxu0 0.0
          %1621 = vmatprep.subr.mxu0 0.0
          %1622 = vmatpush1.msra.mxu0 0.0
          %1623 = vmatprep.subr.mxu0 0.0
          %1624 = vmatpush1.msra.mxu0 0.0
          %1625 = vmatprep.subr.mxu0 0.0
          %1626 = vmatpush1.msra.mxu0 0.0
          %1627 = vmatprep.subr.mxu0 0.0
          %1628 = vmatpush1.msra.mxu0 0.0
          %1629 = vmatprep.mubr.f32.mxu0 0.0
          %1630 = vmatmul.mubr.f32.gmra.mrb[0].mxu0 %v1554
          %v1631 = vpop.f32.mrb[0].mxu0
          %v1632 = vadd.f32 %v649, %v1631
          %v1633 = vpop.f32.mrb[0].mxu0
          %1634 = vdwg.mxu0
          %v1635 = vtanh.pop %v1632
          %v1636 = vmul.f32 %v1635, %v657
          %1637 = vadd.xlane.f32.xlu0 %v1636
          %v1638 = vpop.xlane.xlu0 %1637
          %v1639 = vmax.f32 %v1500, %v1638
          %v1640 = vsub.f32 %v1500, %v1639
          %v1641 = vmul.f32 %v1640, 1.442695
          %v1642 = vpow.pop %v1641
          %v1643 = vsub.f32 %v1638, %v1639
          %v1644 = vmul.f32 %v1643, 1.442695
          %v1645 = vpow.pop %v1644
          %v1646 = vmul.f32 %v1642, %v1508
          %v1647 = vadd.f32 %v1646, %v1645
          %1649 = vset.pattern.permute.xlu0 0
          %1650 = vperm.xlu0 %1649, %v1642
          %v1651 = vpop.permute.xlu0 %1650
          %v1653 = vmul.f32 %v1651, %v1521
          %1655 = vset.pattern.permute.xlu0 0
          %1656 = vperm.xlu0 %1655, %v1645
          %v1657 = vpop.permute.xlu0 %1656
          %v1659 = vmul.f32 %v1657, %v1554
          %v1660 = vadd.f32 %v1653, %v1659
          %1662 = vset.pattern.permute.xlu0 0
          %1663 = vperm.xlu0 %1662, %v1647
          %v1664 = vpop.permute.xlu0 %1663
          %v1666 = vrcp.pop %v1664
          %v1667 = vmul.f32 %v1660, %v1666
          %v1668 = vld [vmem:[#allocation16] sm:$0x1]
          %v1670 = vlaneseq
          %v1671 = vshrl.u32 %v1670, 7
          %v1672 = vsub.s32 0, %v1671
          %v1673 = vrot.slane %v1668, %v1672
          %v1675 = vmul.f32 %v1667, %v1673
          %1676 = vadd.xlane.f32.xlu0 %v1675
          %v1677 = vpop.xlane.xlu0 %1676
          %v1678 = vld [vmem:[#allocation7] sm:$0x1]
          %v1680 = vlaneseq
          %v1681 = vshrl.u32 %v1680, 7
          %v1682 = vsub.s32 0, %v1681
          %v1683 = vrot.slane %v1678, %v1682
          %v1685 = vadd.f32 %v1677, %v1683
          %1686 = vst.msk [vmem:[#allocation17] sm:$0xff] %vm1557, %v1685
        $region72: #{tpu_custom_call.1} parent=43 // pred_fallthru
          _
        // Predicated region
        $region73: #{tpu_custom_call.1} parent=43 // pred_check
          %p1687 = pneg %p188
        $region74: #{tpu_custom_call.1} parent=43 // pred_check_branch
          %1689 = sbr.rel (%p1687) target = $region76
        $region75: #{tpu_custom_call.1} parent=43 // pred_region
          %s1691 = ssub.s32 128, 128
          %1692 = vsyncadd [#allocation10], %s1691
          %s1693 = smul.addr %s29, 128
          %s1694 = scalar_lea.hbm %s6, %s1693
          %s1696 = sshll.u32 [#allocation17], 4
          %s1697 = int_to_ptr.vmem [resolvable:$true] %s1696
          %1699 = dma.vmem_to_hbm [thread:$0]  %s1697, 128, %s1694, [#allocation10]
        $region76: #{tpu_custom_call.1} parent=43 // pred_fallthru
          _
        // Predicated region
        $region77: #{tpu_custom_call.1} parent=43 // pred_check
          %p1700 = pneg %p188
        $region78: #{tpu_custom_call.1} parent=43 // pred_check_branch
          %1702 = sbr.rel (%p1700) target = $region80
        $region79: #{tpu_custom_call.1} parent=43 // pred_region
          %1703 = dma.done [#allocation10], 128
        $region80: #{tpu_custom_call.1} parent=43 // pred_fallthru
          _
      $region44: #{tpu_custom_call.1} parent=5 // pred_fallthru
        _
      %p1704 = scmp.le.s32.totalorder 2, %s20
      // Predicated region
      $region81: #{tpu_custom_call.1} parent=5 // pred_check
        %p1705 = pneg %p1704
      $region82: #{tpu_custom_call.1} parent=5 // pred_check_branch
        %1707 = sbr.rel (%p1705) target = $region84
      $region83: #{tpu_custom_call.1} parent=5 // pred_region
        %s1708 = ssub.s32 %s20, 2
      $region84: #{tpu_custom_call.1} parent=5 // pred_fallthru
        _
    $region6: #{tpu_custom_call.1} parent=1 // loop_footer
      %s24 = sadd.s32 1, %s20
    $region7: #{tpu_custom_call.1} parent=1 // loop_footer_branch
      %19 = sbr.rel target = $region3
    $region8: #{tpu_custom_call.1} parent=1 // loop_exit
      _
    %1709 = vsyncpa [#allocation9], 1
    %s1710 = scalar_lea.sflag [#allocation9], 1
    %1711 = vsyncpa %s1710, 1
    %1712 = vsyncpa [#allocation12], 1
    %1713 = vsyncpa [#allocation15], 1
    %1714 = vsyncpa [#allocation10], 1
    %s1715 = scalar_lea.sflag [#allocation10], 1
    %1716 = vsyncpa %s1715, 1

</llo_original>
